<compile_context>
chip_gen: v6e
topology: v6e:2x2x1
jax: 0.10.0
libtpu: 0.0.40
codegen_flags: <defaults>
</compile_context>

<pallas_src>
import functools

import jax
import jax.numpy as jnp
from jax import lax
from jax.experimental import pallas as pl
from jax.experimental.pallas import tpu as pltpu

EPS = 1e-5
VMEM_LIMIT = 32 * 1024 * 1024   # explicit scoped-VMEM cap (>= v5e's 16 MiB default)


# ----------------------------------------------------------------------------
# Kernel 1/2: [optional fused BN+ReLU] -> 3x3 "same" conv (9 per-tap matmuls,
# VMEM-scratch zero halo) + bias -> per-batch partial BN statistics.
# ----------------------------------------------------------------------------
def _conv3x3_stats_kernel(*refs, apply_act):
    if apply_act:
        (x_ref, sc_ref, sh_ref, w_ref, b_ref,
         y_ref, psum_ref, pssq_ref, xp_ref) = refs
    else:
        x_ref, w_ref, b_ref, y_ref, psum_ref, pssq_ref, xp_ref = refs

    H, W, Cout = y_ref.shape[1], y_ref.shape[2], y_ref.shape[3]
    Cin = x_ref.shape[3]

    x = x_ref[0]                                             # (H, W, Cin)
    if apply_act:
        # BN (affine form) + ReLU fused into the consumer (f32 math).
        x = jnp.maximum(x * sc_ref[...] + sh_ref[...], 0.0)

    # Zero halo kept in a persistent VMEM scratch: re-zero only the border
    # every step (4 tiny stores, megacore-safe) and store the bf16 tile
    # interior once.  No misaligned (H+2, W+2) concatenate copy.
    xp_ref[0:1, :, :] = jnp.zeros((1, W + 2, Cin), jnp.bfloat16)
    xp_ref[H + 1:H + 2, :, :] = jnp.zeros((1, W + 2, Cin), jnp.bfloat16)
    xp_ref[:, 0:1, :] = jnp.zeros((H + 2, 1, Cin), jnp.bfloat16)
    xp_ref[:, W + 1:W + 2, :] = jnp.zeros((H + 2, 1, Cin), jnp.bfloat16)
    xp_ref[1:H + 1, 1:W + 1, :] = x.astype(jnp.bfloat16)

    # 9 per-tap accumulating MXU matmuls (pure vld+vmatmul; no materialized
    # (H*W, 9*Cin) im2col patch pushed through the vst slot).
    acc = jnp.zeros((H * W, Cout), jnp.float32)
    for kh in range(3):
        for kw in range(3):
            xt = xp_ref[kh:kh + H, kw:kw + W, :].reshape(H * W, Cin)
            acc = acc + jnp.dot(xt, w_ref[kh * 3 + kw],
                                preferred_element_type=jnp.float32)
    acc = acc + b_ref[...]                                   # conv bias (VPU)

    y_ref[0] = acc.reshape(H, W, Cout).astype(y_ref.dtype)   # bf16 pre-BN out
    psum_ref[0] = jnp.sum(acc, axis=0, keepdims=True)        # (1, Cout) f32
    pssq_ref[0] = jnp.sum(acc * acc, axis=0, keepdims=True)


def _conv3x3_with_stats(x, w9, bias, cout, scale=None, shift=None):
    # TODO(synk): for real UNet resolutions (and v7x's 64 MiB VMEM) the image
    # should be tiled into row bands with a 2-row halo (manual async copy /
    # pl.Element offsets); one image per grid step is fine at these toy sizes.
    N, H, W, Cin = x.shape
    apply_act = scale is not None
    kernel = functools.partial(_conv3x3_stats_kernel, apply_act=apply_act)

    in_specs = [pl.BlockSpec((1, H, W, Cin), lambda n: (n, 0, 0, 0))]
    args = [x]
    if apply_act:
        in_specs += [pl.BlockSpec((1, 1, Cin), lambda n: (0, 0, 0)),
                     pl.BlockSpec((1, 1, Cin), lambda n: (0, 0, 0))]
        args += [scale.reshape(1, 1, Cin).astype(jnp.float32),
                 shift.reshape(1, 1, Cin).astype(jnp.float32)]
    in_specs += [pl.BlockSpec((9, Cin, cout), lambda n: (0, 0, 0)),
                 pl.BlockSpec((1, cout), lambda n: (0, 0))]
    args += [w9, bias.reshape(1, cout).astype(jnp.float32)]

    flops = 2 * N * H * W * 9 * Cin * cout
    bytes_accessed = (x.size * x.dtype.itemsize + w9.size * 2 + cout * 4
                      + N * H * W * cout * 2 + 2 * N * cout * 4)

    return pl.pallas_call(
        kernel,
        out_shape=(jax.ShapeDtypeStruct((N, H, W, cout), jnp.bfloat16),
                   jax.ShapeDtypeStruct((N, 1, cout), jnp.float32),
                   jax.ShapeDtypeStruct((N, 1, cout), jnp.float32)),
        grid=(N,),
        in_specs=in_specs,
        out_specs=(pl.BlockSpec((1, H, W, cout), lambda n: (n, 0, 0, 0)),
                   pl.BlockSpec((1, 1, cout), lambda n: (n, 0, 0)),
                   pl.BlockSpec((1, 1, cout), lambda n: (n, 0, 0))),
        scratch_shapes=[pltpu.VMEM((H + 2, W + 2, Cin), jnp.bfloat16)],
        compiler_params=pltpu.CompilerParams(
            dimension_semantics=("parallel",),
            vmem_limit_bytes=VMEM_LIMIT),
        cost_estimate=pl.CostEstimate(flops=flops, transcendentals=0,
                                      bytes_accessed=bytes_accessed),
    )(*args)


# ----------------------------------------------------------------------------
# Kernel 3: fused BN+ReLU -> ConvTranspose2d(k=2, s=2) (single matmul) ->
# even/odd-row contiguous stores + skip written into its own channel range.
# ----------------------------------------------------------------------------
def _bnrelu_upconv_concat_kernel(*refs, has_skip):
    if has_skip:
        y_ref, sc_ref, sh_ref, w_ref, b_ref, skip_ref, o_ref = refs
    else:
        y_ref, sc_ref, sh_ref, w_ref, b_ref, o_ref = refs

    TH, W, C = y_ref.shape[1], y_ref.shape[2], y_ref.shape[3]
    W2 = o_ref.shape[3]                      # = 2*W
    cout = w_ref.shape[1] // 4

    a = jnp.maximum(y_ref[0] * sc_ref[...] + sh_ref[...], 0.0)   # BN + ReLU
    t = a.reshape(TH * W, C).astype(jnp.bfloat16)

    # One matmul for all 4 sub-pixels; columns packed as (kh*2+kw)*cout + co
    # for output pixel (2h+kh, 2w+kw).
    up = jnp.dot(t, w_ref[...], preferred_element_type=jnp.float32) + b_ref[...]

    # Two contiguous stores (even rows / odd rows) into the (TH, 2, 2W, ctot)
    # block -- no row interleave relayout, no extra VMEM copy of the tile.
    o_ref[:, :, 0:1, :, 0:cout] = up[:, :2 * cout].reshape(1, TH, 1, W2, cout)
    o_ref[:, :, 1:2, :, 0:cout] = up[:, 2 * cout:].reshape(1, TH, 1, W2, cout)
    if has_skip:
        # Skip is a pure pass-through written into its own channel range.
        o_ref[:, :, :, :, cout:] = skip_ref[...]


def _bnrelu_upconv_concat(y, scale, shift, wt, bt, skip=None):
    N, H, W, C = y.shape
    Cout = wt.shape[1]
    # Repack ConvTranspose2d weight (Cin, Cout, 2, 2) -> (Cin, 4*Cout),
    # column index = (kh*2 + kw)*Cout + co.
    w4 = jnp.transpose(wt, (0, 2, 3, 1)).reshape(C, 4 * Cout).astype(jnp.bfloat16)
    b4 = jnp.tile(bt, 4).reshape(1, 4 * Cout).astype(jnp.float32)

    has_skip = skip is not None
    cskip = skip.shape[-1] if has_skip else 0
    ctot = Cout + cskip
    TH = 8 if H % 8 == 0 else H              # row-band grid axis (parallel)
    kernel = functools.partial(_bnrelu_upconv_concat_kernel, has_skip=has_skip)

    in_specs = [pl.BlockSpec((1, TH, W, C), lambda n, h: (n, h, 0, 0)),
                pl.BlockSpec((1, 1, C), lambda n, h: (0, 0, 0)),
                pl.BlockSpec((1, 1, C), lambda n, h: (0, 0, 0)),
                pl.BlockSpec((C, 4 * Cout), lambda n, h: (0, 0)),
                pl.BlockSpec((1, 4 * Cout), lambda n, h: (0, 0))]
    args = [y, scale.reshape(1, 1, C).astype(jnp.float32),
            shift.reshape(1, 1, C).astype(jnp.float32), w4, b4]
    if has_skip:
        # Free reshape: (N, 2H, 2W, cskip) -> (N, H, 2, 2W, cskip).
        args.append(skip.reshape(N, H, 2, 2 * W, cskip))
        in_specs.append(pl.BlockSpec((1, TH, 2, 2 * W, cskip),
                                     lambda n, h: (n, h, 0, 0, 0)))

    flops = 2 * N * H * W * C * 4 * Cout
    bytes_accessed = (y.size * y.dtype.itemsize + w4.size * 2
                      + (skip.size * skip.dtype.itemsize if has_skip else 0)
                      + N * 4 * H * W * ctot * 4)

    out5 = pl.pallas_call(
        kernel,
        out_shape=jax.ShapeDtypeStruct((N, H, 2, 2 * W, ctot), jnp.float32),
        grid=(N, H // TH),
        in_specs=in_specs,
        out_specs=pl.BlockSpec((1, TH, 2, 2 * W, ctot),
                               lambda n, h: (n, h, 0, 0, 0)),
        compiler_params=pltpu.CompilerParams(
            dimension_semantics=("parallel", "parallel"),
            vmem_limit_bytes=VMEM_LIMIT),
        cost_estimate=pl.CostEstimate(flops=flops, transcendentals=0,
                                      bytes_accessed=bytes_accessed),
    )(*args)
    # Free (row-major) reshape back to NHWC.
    return out5.reshape(N, 2 * H, 2 * W, ctot)


# ----------------------------------------------------------------------------
# UNetBlock forward (Pallas version)
# ----------------------------------------------------------------------------
def _bn_affine(psum, pssq, count, gamma, beta):
    s = jnp.sum(psum, axis=(0, 1))
    q = jnp.sum(pssq, axis=(0, 1))
    mean = s / count
    var = jnp.maximum(q / count - mean * mean, 0.0)   # guard tiny negative var
    scale = gamma * lax.rsqrt(var + EPS)
    shift = beta - mean * scale
    return scale, shift


def unet_block_forward(x, p, skip=None):
    N, H, W, Cin = x.shape
    C1 = p["w1"].shape[-1]
    C2 = p["w2"].shape[-1]
    count = float(N * H * W)

    w1 = p["w1"].reshape(9, Cin, C1).astype(jnp.bfloat16)
    w2 = p["w2"].reshape(9, C1, C2).astype(jnp.bfloat16)

    # conv1 + bias (+ per-batch stats); y1 stored in bf16.
    y1, s1, q1 = _conv3x3_with_stats(x, w1, p["b1"], C1)
    sc1, sh1 = _bn_affine(s1, q1, count, p["g1"], p["beta1"])

    # BN1+ReLU fused into conv2's kernel (+ stats); y2 stored in bf16.
    y2, s2, q2 = _conv3x3_with_stats(y1, w2, p["b2"], C2, sc1, sh1)
    sc2, sh2 = _bn_affine(s2, q2, count, p["g2"], p["beta2"])

    # BN2+ReLU + 2x upsample + skip concat fused into one kernel.
    return _bnrelu_upconv_concat(y2, sc2, sh2, p["wt"], p["bt"], skip)


# ----------------------------------------------------------------------------
# Pure-JAX reference (same semantics; matched bf16 MXU / bf16-intermediate
# precision so the comparison is tight).
# ----------------------------------------------------------------------------
def _ref_forward(x, p, skip=None):
    def conv_bn_relu(x, w, b, g, beta):
        y = lax.conv_general_dilated(
            x.astype(jnp.bfloat16), w.astype(jnp.bfloat16), (1, 1), "SAME",
            dimension_numbers=("NHWC", "HWIO", "NHWC"),
            preferred_element_type=jnp.float32) + b
        mean = y.mean(axis=(0, 1, 2))
        var = ((y - mean) ** 2).mean(axis=(0, 1, 2))
        # Mirror the kernel's bf16 storage of the pre-BN activation.
        yq = y.astype(jnp.bfloat16).astype(jnp.float32)
        return jnp.maximum((yq - mean) * lax.rsqrt(var + EPS) * g + beta, 0.0)

    y = conv_bn_relu(x, p["w1"], p["b1"], p["g1"], p["beta1"])
    y = conv_bn_relu(y, p["w2"], p["b2"], p["g2"], p["beta2"])
    N, H, W, C = y.shape
    u = jnp.einsum("nijc,cdab->niajbd", y.astype(jnp.bfloat16),
                   p["wt"].astype(jnp.bfloat16),
                   preferred_element_type=jnp.float32)
    u = u.reshape(N, 2 * H, 2 * W, -1) + p["bt"]
    if skip is not None:
        u = jnp.concatenate([u, skip], axis=-1)
    return u


if __name__ == "__main__":
    N, H, W = 2, 16, 16
    Cin, Cout, Cskip = 4, 8, 8

    key = jax.random.PRNGKey(0)
    ks = jax.random.split(key, 12)
    params = {
        "w1": 0.3 * jax.random.normal(ks[0], (3, 3, Cin, Cout), jnp.float32),
        "b1": 0.1 * jax.random.normal(ks[1], (Cout,), jnp.float32),
        "g1": 1.0 + 0.1 * jax.random.normal(ks[2], (Cout,), jnp.float32),
        "beta1": 0.1 * jax.random.normal(ks[3], (Cout,), jnp.float32),
        "w2": 0.3 * jax.random.normal(ks[4], (3, 3, Cout, Cout), jnp.float32),
        "b2": 0.1 * jax.random.normal(ks[5], (Cout,), jnp.float32),
        "g2": 1.0 + 0.1 * jax.random.normal(ks[6], (Cout,), jnp.float32),
        "beta2": 0.1 * jax.random.normal(ks[7], (Cout,), jnp.float32),
        "wt": 0.3 * jax.random.normal(ks[8], (Cout, Cout, 2, 2), jnp.float32),  # (Cin,Cout,kh,kw)
        "bt": 0.1 * jax.random.normal(ks[9], (Cout,), jnp.float32),
    }
    x = jax.random.normal(ks[10], (N, H, W, Cin), jnp.float32)              # NHWC
    skip = jax.random.normal(ks[11], (N, 2 * H, 2 * W, Cskip), jnp.float32)

    out = jax.block_until_ready(unet_block_forward(x, params, skip))
    ref = jax.block_until_ready(_ref_forward(x, params, skip))

    assert out.shape == (N, 2 * H, 2 * W, Cout + Cskip), out.shape
    max_err = float(jnp.max(jnp.abs(out - ref)))
    assert jnp.allclose(out, ref, atol=2e-2, rtol=2e-2), max_err
    print("KERNEL_OK")
</pallas_src>

<mosaic_0001>
module attributes {stable_mosaic.version = 11 : i64} {
  func.func @_conv3x3_stats_kernel(%arg0: i32, %arg1: memref<1x16x16x4xf32, #tpu.memory_space<vmem>>, %arg2: memref<9x4x8xbf16, #tpu.memory_space<vmem>>, %arg3: memref<1x8xf32, #tpu.memory_space<vmem>>, %arg4: memref<1x16x16x8xbf16, #tpu.memory_space<vmem>>, %arg5: memref<1x1x8xf32, #tpu.memory_space<vmem>>, %arg6: memref<1x1x8xf32, #tpu.memory_space<vmem>>, %arg7: memref<18x18x4xbf16, #tpu.memory_space<vmem>>) attributes {dimension_semantics = [#tpu.dimension_semantics<parallel>], iteration_bounds = array<i64: 2>, scalar_prefetch = 0 : i64, scratch_operands = 1 : i64, tpu.core_type = #tpu.core_type<tc>, window_params = [{transform_indices = @transform_0, window_bounds = array<i64: 1, 16, 16, 4>}, {pipeline_mode = #tpu.pipeline_mode<synchronous>, transform_indices = @transform_1, window_bounds = array<i64: 9, 4, 8>}, {pipeline_mode = #tpu.pipeline_mode<synchronous>, transform_indices = @transform_2, window_bounds = array<i64: 1, 8>}, {transform_indices = @transform_3, window_bounds = array<i64: 1, 16, 16, 8>}, {transform_indices = @transform_4, window_bounds = array<i64: 1, 1, 8>}, {transform_indices = @transform_5, window_bounds = array<i64: 1, 1, 8>}]} {
    %c0 = arith.constant 0 : index
    %c0_0 = arith.constant 0 : index
    %c0_1 = arith.constant 0 : index
    %c0_2 = arith.constant 0 : index
    %0 = vector.load %arg1[%c0, %c0_0, %c0_1, %c0_2] : memref<1x16x16x4xf32, #tpu.memory_space<vmem>>, vector<1x16x16x4xf32>
    %1 = vector.shape_cast %0 : vector<1x16x16x4xf32> to vector<16x16x4xf32>
    %cst = arith.constant 0.000000e+00 : bf16
    %2 = vector.broadcast %cst : bf16 to vector<1x18x4xbf16>
    %c0_3 = arith.constant 0 : index
    %c0_4 = arith.constant 0 : index
    %c0_5 = arith.constant 0 : index
    %3 = vector.load %arg7[%c0_3, %c0_4, %c0_5] : memref<18x18x4xbf16, #tpu.memory_space<vmem>>, vector<1x18x4xbf16>
    tpu.vector_store %arg7[%c0_3, %c0_4, %c0_5], %2 {strides = array<i32>} : memref<18x18x4xbf16, #tpu.memory_space<vmem>>, vector<1x18x4xbf16>,
    %cst_6 = arith.constant 0.000000e+00 : bf16
    %4 = vector.broadcast %cst_6 : bf16 to vector<1x18x4xbf16>
    %c17 = arith.constant 17 : index
    %c0_7 = arith.constant 0 : index
    %c0_8 = arith.constant 0 : index
    %5 = vector.load %arg7[%c17, %c0_7, %c0_8] : memref<18x18x4xbf16, #tpu.memory_space<vmem>>, vector<1x18x4xbf16>
    tpu.vector_store %arg7[%c17, %c0_7, %c0_8], %4 {strides = array<i32>} : memref<18x18x4xbf16, #tpu.memory_space<vmem>>, vector<1x18x4xbf16>,
    %cst_9 = arith.constant 0.000000e+00 : bf16
    %6 = vector.broadcast %cst_9 : bf16 to vector<18x1x4xbf16>
    %c0_10 = arith.constant 0 : index
    %c0_11 = arith.constant 0 : index
    %c0_12 = arith.constant 0 : index
    %7 = vector.load %arg7[%c0_10, %c0_11, %c0_12] : memref<18x18x4xbf16, #tpu.memory_space<vmem>>, vector<18x1x4xbf16>
    tpu.vector_store %arg7[%c0_10, %c0_11, %c0_12], %6 {strides = array<i32>} : memref<18x18x4xbf16, #tpu.memory_space<vmem>>, vector<18x1x4xbf16>,
    %cst_13 = arith.constant 0.000000e+00 : bf16
    %8 = vector.broadcast %cst_13 : bf16 to vector<18x1x4xbf16>
    %c0_14 = arith.constant 0 : index
    %c17_15 = arith.constant 17 : index
    %c0_16 = arith.constant 0 : index
    %9 = vector.load %arg7[%c0_14, %c17_15, %c0_16] : memref<18x18x4xbf16, #tpu.memory_space<vmem>>, vector<18x1x4xbf16>
    tpu.vector_store %arg7[%c0_14, %c17_15, %c0_16], %8 {strides = array<i32>} : memref<18x18x4xbf16, #tpu.memory_space<vmem>>, vector<18x1x4xbf16>,
    %10 = arith.truncf %1 : vector<16x16x4xf32> to vector<16x16x4xbf16>
    %c1 = arith.constant 1 : index
    %c1_17 = arith.constant 1 : index
    %c0_18 = arith.constant 0 : index
    %11 = vector.load %arg7[%c1, %c1_17, %c0_18] : memref<18x18x4xbf16, #tpu.memory_space<vmem>>, vector<16x16x4xbf16>
    tpu.vector_store %arg7[%c1, %c1_17, %c0_18], %10 {strides = array<i32>} : memref<18x18x4xbf16, #tpu.memory_space<vmem>>, vector<16x16x4xbf16>,
    %cst_19 = arith.constant 0.000000e+00 : f32
    %12 = vector.broadcast %cst_19 : f32 to vector<256x8xf32>
    %c0_20 = arith.constant 0 : index
    %c0_21 = arith.constant 0 : index
    %c0_22 = arith.constant 0 : index
    %13 = vector.load %arg7[%c0_20, %c0_21, %c0_22] : memref<18x18x4xbf16, #tpu.memory_space<vmem>>, vector<16x16x4xbf16>
    %14 = vector.shape_cast %13 : vector<16x16x4xbf16> to vector<256x4xbf16>
    %c0_23 = arith.constant 0 : index
    %c0_24 = arith.constant 0 : index
    %c0_25 = arith.constant 0 : index
    %15 = vector.load %arg2[%c0_23, %c0_24, %c0_25] : memref<9x4x8xbf16, #tpu.memory_space<vmem>>, vector<1x4x8xbf16>
    %16 = vector.shape_cast %15 : vector<1x4x8xbf16> to vector<4x8xbf16>
    %cst_26 = arith.constant dense<0.000000e+00> : vector<256x8xf32>
    %17 = tpu.matmul %14, %16, %cst_26 {dimension_numbers = #tpu.dot_dimension_numbers<[1], [0], [0], [1], [0, 0, 1, 1], [], []>} : vector<256x4xbf16>, vector<4x8xbf16>, vector<256x8xf32> -> vector<256x8xf32>
    %18 = arith.addf %12, %17 : vector<256x8xf32>
    %c0_27 = arith.constant 0 : index
    %c1_28 = arith.constant 1 : index
    %c0_29 = arith.constant 0 : index
    %19 = vector.load %arg7[%c0_27, %c1_28, %c0_29] : memref<18x18x4xbf16, #tpu.memory_space<vmem>>, vector<16x16x4xbf16>
    %20 = vector.shape_cast %19 : vector<16x16x4xbf16> to vector<256x4xbf16>
    %c1_30 = arith.constant 1 : index
    %c0_31 = arith.constant 0 : index
    %c0_32 = arith.constant 0 : index
    %21 = vector.load %arg2[%c1_30, %c0_31, %c0_32] : memref<9x4x8xbf16, #tpu.memory_space<vmem>>, vector<1x4x8xbf16>
    %22 = vector.shape_cast %21 : vector<1x4x8xbf16> to vector<4x8xbf16>
    %cst_33 = arith.constant dense<0.000000e+00> : vector<256x8xf32>
    %23 = tpu.matmul %20, %22, %cst_33 {dimension_numbers = #tpu.dot_dimension_numbers<[1], [0], [0], [1], [0, 0, 1, 1], [], []>} : vector<256x4xbf16>, vector<4x8xbf16>, vector<256x8xf32> -> vector<256x8xf32>
    %24 = arith.addf %18, %23 : vector<256x8xf32>
    %c0_34 = arith.constant 0 : index
    %c2 = arith.constant 2 : index
    %c0_35 = arith.constant 0 : index
    %25 = vector.load %arg7[%c0_34, %c2, %c0_35] : memref<18x18x4xbf16, #tpu.memory_space<vmem>>, vector<16x16x4xbf16>
    %26 = vector.shape_cast %25 : vector<16x16x4xbf16> to vector<256x4xbf16>
    %c2_36 = arith.constant 2 : index
    %c0_37 = arith.constant 0 : index
    %c0_38 = arith.constant 0 : index
    %27 = vector.load %arg2[%c2_36, %c0_37, %c0_38] : memref<9x4x8xbf16, #tpu.memory_space<vmem>>, vector<1x4x8xbf16>
    %28 = vector.shape_cast %27 : vector<1x4x8xbf16> to vector<4x8xbf16>
    %cst_39 = arith.constant dense<0.000000e+00> : vector<256x8xf32>
    %29 = tpu.matmul %26, %28, %cst_39 {dimension_numbers = #tpu.dot_dimension_numbers<[1], [0], [0], [1], [0, 0, 1, 1], [], []>} : vector<256x4xbf16>, vector<4x8xbf16>, vector<256x8xf32> -> vector<256x8xf32>
    %30 = arith.addf %24, %29 : vector<256x8xf32>
    %c1_40 = arith.constant 1 : index
    %c0_41 = arith.constant 0 : index
    %c0_42 = arith.constant 0 : index
    %31 = vector.load %arg7[%c1_40, %c0_41, %c0_42] : memref<18x18x4xbf16, #tpu.memory_space<vmem>>, vector<16x16x4xbf16>
    %32 = vector.shape_cast %31 : vector<16x16x4xbf16> to vector<256x4xbf16>
    %c3 = arith.constant 3 : index
    %c0_43 = arith.constant 0 : index
    %c0_44 = arith.constant 0 : index
    %33 = vector.load %arg2[%c3, %c0_43, %c0_44] : memref<9x4x8xbf16, #tpu.memory_space<vmem>>, vector<1x4x8xbf16>
    %34 = vector.shape_cast %33 : vector<1x4x8xbf16> to vector<4x8xbf16>
    %cst_45 = arith.constant dense<0.000000e+00> : vector<256x8xf32>
    %35 = tpu.matmul %32, %34, %cst_45 {dimension_numbers = #tpu.dot_dimension_numbers<[1], [0], [0], [1], [0, 0, 1, 1], [], []>} : vector<256x4xbf16>, vector<4x8xbf16>, vector<256x8xf32> -> vector<256x8xf32>
    %36 = arith.addf %30, %35 : vector<256x8xf32>
    %c1_46 = arith.constant 1 : index
    %c1_47 = arith.constant 1 : index
    %c0_48 = arith.constant 0 : index
    %37 = vector.load %arg7[%c1_46, %c1_47, %c0_48] : memref<18x18x4xbf16, #tpu.memory_space<vmem>>, vector<16x16x4xbf16>
    %38 = vector.shape_cast %37 : vector<16x16x4xbf16> to vector<256x4xbf16>
    %c4 = arith.constant 4 : index
    %c0_49 = arith.constant 0 : index
    %c0_50 = arith.constant 0 : index
    %39 = vector.load %arg2[%c4, %c0_49, %c0_50] : memref<9x4x8xbf16, #tpu.memory_space<vmem>>, vector<1x4x8xbf16>
    %40 = vector.shape_cast %39 : vector<1x4x8xbf16> to vector<4x8xbf16>
    %cst_51 = arith.constant dense<0.000000e+00> : vector<256x8xf32>
    %41 = tpu.matmul %38, %40, %cst_51 {dimension_numbers = #tpu.dot_dimension_numbers<[1], [0], [0], [1], [0, 0, 1, 1], [], []>} : vector<256x4xbf16>, vector<4x8xbf16>, vector<256x8xf32> -> vector<256x8xf32>
    %42 = arith.addf %36, %41 : vector<256x8xf32>
    %c1_52 = arith.constant 1 : index
    %c2_53 = arith.constant 2 : index
    %c0_54 = arith.constant 0 : index
    %43 = vector.load %arg7[%c1_52, %c2_53, %c0_54] : memref<18x18x4xbf16, #tpu.memory_space<vmem>>, vector<16x16x4xbf16>
    %44 = vector.shape_cast %43 : vector<16x16x4xbf16> to vector<256x4xbf16>
    %c5 = arith.constant 5 : index
    %c0_55 = arith.constant 0 : index
    %c0_56 = arith.constant 0 : index
    %45 = vector.load %arg2[%c5, %c0_55, %c0_56] : memref<9x4x8xbf16, #tpu.memory_space<vmem>>, vector<1x4x8xbf16>
    %46 = vector.shape_cast %45 : vector<1x4x8xbf16> to vector<4x8xbf16>
    %cst_57 = arith.constant dense<0.000000e+00> : vector<256x8xf32>
    %47 = tpu.matmul %44, %46, %cst_57 {dimension_numbers = #tpu.dot_dimension_numbers<[1], [0], [0], [1], [0, 0, 1, 1], [], []>} : vector<256x4xbf16>, vector<4x8xbf16>, vector<256x8xf32> -> vector<256x8xf32>
    %48 = arith.addf %42, %47 : vector<256x8xf32>
    %c2_58 = arith.constant 2 : index
    %c0_59 = arith.constant 0 : index
    %c0_60 = arith.constant 0 : index
    %49 = vector.load %arg7[%c2_58, %c0_59, %c0_60] : memref<18x18x4xbf16, #tpu.memory_space<vmem>>, vector<16x16x4xbf16>
    %50 = vector.shape_cast %49 : vector<16x16x4xbf16> to vector<256x4xbf16>
    %c6 = arith.constant 6 : index
    %c0_61 = arith.constant 0 : index
    %c0_62 = arith.constant 0 : index
    %51 = vector.load %arg2[%c6, %c0_61, %c0_62] : memref<9x4x8xbf16, #tpu.memory_space<vmem>>, vector<1x4x8xbf16>
    %52 = vector.shape_cast %51 : vector<1x4x8xbf16> to vector<4x8xbf16>
    %cst_63 = arith.constant dense<0.000000e+00> : vector<256x8xf32>
    %53 = tpu.matmul %50, %52, %cst_63 {dimension_numbers = #tpu.dot_dimension_numbers<[1], [0], [0], [1], [0, 0, 1, 1], [], []>} : vector<256x4xbf16>, vector<4x8xbf16>, vector<256x8xf32> -> vector<256x8xf32>
    %54 = arith.addf %48, %53 : vector<256x8xf32>
    %c2_64 = arith.constant 2 : index
    %c1_65 = arith.constant 1 : index
    %c0_66 = arith.constant 0 : index
    %55 = vector.load %arg7[%c2_64, %c1_65, %c0_66] : memref<18x18x4xbf16, #tpu.memory_space<vmem>>, vector<16x16x4xbf16>
    %56 = vector.shape_cast %55 : vector<16x16x4xbf16> to vector<256x4xbf16>
    %c7 = arith.constant 7 : index
    %c0_67 = arith.constant 0 : index
    %c0_68 = arith.constant 0 : index
    %57 = vector.load %arg2[%c7, %c0_67, %c0_68] : memref<9x4x8xbf16, #tpu.memory_space<vmem>>, vector<1x4x8xbf16>
    %58 = vector.shape_cast %57 : vector<1x4x8xbf16> to vector<4x8xbf16>
    %cst_69 = arith.constant dense<0.000000e+00> : vector<256x8xf32>
    %59 = tpu.matmul %56, %58, %cst_69 {dimension_numbers = #tpu.dot_dimension_numbers<[1], [0], [0], [1], [0, 0, 1, 1], [], []>} : vector<256x4xbf16>, vector<4x8xbf16>, vector<256x8xf32> -> vector<256x8xf32>
    %60 = arith.addf %54, %59 : vector<256x8xf32>
    %c2_70 = arith.constant 2 : index
    %c2_71 = arith.constant 2 : index
    %c0_72 = arith.constant 0 : index
    %61 = vector.load %arg7[%c2_70, %c2_71, %c0_72] : memref<18x18x4xbf16, #tpu.memory_space<vmem>>, vector<16x16x4xbf16>
    %62 = vector.shape_cast %61 : vector<16x16x4xbf16> to vector<256x4xbf16>
    %c8 = arith.constant 8 : index
    %c0_73 = arith.constant 0 : index
    %c0_74 = arith.constant 0 : index
    %63 = vector.load %arg2[%c8, %c0_73, %c0_74] : memref<9x4x8xbf16, #tpu.memory_space<vmem>>, vector<1x4x8xbf16>
    %64 = vector.shape_cast %63 : vector<1x4x8xbf16> to vector<4x8xbf16>
    %cst_75 = arith.constant dense<0.000000e+00> : vector<256x8xf32>
    %65 = tpu.matmul %62, %64, %cst_75 {dimension_numbers = #tpu.dot_dimension_numbers<[1], [0], [0], [1], [0, 0, 1, 1], [], []>} : vector<256x4xbf16>, vector<4x8xbf16>, vector<256x8xf32> -> vector<256x8xf32>
    %66 = arith.addf %60, %65 : vector<256x8xf32>
    %c0_76 = arith.constant 0 : index
    %c0_77 = arith.constant 0 : index
    %67 = vector.load %arg3[%c0_76, %c0_77] : memref<1x8xf32, #tpu.memory_space<vmem>>, vector<1x8xf32>
    %68 = vector.broadcast %67 : vector<1x8xf32> to vector<256x8xf32>
    %69 = arith.addf %66, %68 : vector<256x8xf32>
    %70 = vector.shape_cast %69 : vector<256x8xf32> to vector<16x16x8xf32>
    %71 = arith.truncf %70 : vector<16x16x8xf32> to vector<16x16x8xbf16>
    %c0_78 = arith.constant 0 : index
    %c0_79 = arith.constant 0 : index
    %c0_80 = arith.constant 0 : index
    %c0_81 = arith.constant 0 : index
    %72 = vector.load %arg4[%c0_78, %c0_79, %c0_80, %c0_81] : memref<1x16x16x8xbf16, #tpu.memory_space<vmem>>, vector<1x16x16x8xbf16>
    %73 = vector.shape_cast %72 : vector<1x16x16x8xbf16> to vector<16x16x8xbf16>
    %74 = vector.shape_cast %71 : vector<16x16x8xbf16> to vector<1x16x16x8xbf16>
    tpu.vector_store %arg4[%c0_78, %c0_79, %c0_80, %c0_81], %74 {strides = array<i32>} : memref<1x16x16x8xbf16, #tpu.memory_space<vmem>>, vector<1x16x16x8xbf16>,
    %cst_82 = arith.constant dense<0.000000e+00> : vector<8xf32>
    %75 = vector.multi_reduction <add>, %69, %cst_82 [0] : vector<256x8xf32> to vector<8xf32>
    %76 = vector.shape_cast %75 : vector<8xf32> to vector<1x8xf32>
    %c0_83 = arith.constant 0 : index
    %c0_84 = arith.constant 0 : index
    %c0_85 = arith.constant 0 : index
    %77 = vector.load %arg5[%c0_83, %c0_84, %c0_85] : memref<1x1x8xf32, #tpu.memory_space<vmem>>, vector<1x1x8xf32>
    %78 = vector.shape_cast %77 : vector<1x1x8xf32> to vector<1x8xf32>
    %79 = vector.shape_cast %76 : vector<1x8xf32> to vector<1x1x8xf32>
    tpu.vector_store %arg5[%c0_83, %c0_84, %c0_85], %79 {strides = array<i32>} : memref<1x1x8xf32, #tpu.memory_space<vmem>>, vector<1x1x8xf32>,
    %80 = arith.mulf %69, %69 : vector<256x8xf32>
    %cst_86 = arith.constant dense<0.000000e+00> : vector<8xf32>
    %81 = vector.multi_reduction <add>, %80, %cst_86 [0] : vector<256x8xf32> to vector<8xf32>
    %82 = vector.shape_cast %81 : vector<8xf32> to vector<1x8xf32>
    %c0_87 = arith.constant 0 : index
    %c0_88 = arith.constant 0 : index
    %c0_89 = arith.constant 0 : index
    %83 = vector.load %arg6[%c0_87, %c0_88, %c0_89] : memref<1x1x8xf32, #tpu.memory_space<vmem>>, vector<1x1x8xf32>
    %84 = vector.shape_cast %83 : vector<1x1x8xf32> to vector<1x8xf32>
    %85 = vector.shape_cast %82 : vector<1x8xf32> to vector<1x1x8xf32>
    tpu.vector_store %arg6[%c0_87, %c0_88, %c0_89], %85 {strides = array<i32>} : memref<1x1x8xf32, #tpu.memory_space<vmem>>, vector<1x1x8xf32>,
    return
  }
  func.func @transform_0(%arg0: i32) -> (i32, i32, i32, i32) {
    %c0_i32 = arith.constant 0 : i32
    %c0_i32_0 = arith.constant 0 : i32
    %c0_i32_1 = arith.constant 0 : i32
    %c0_i32_2 = arith.constant 0 : i32
    return %arg0, %c0_i32, %c0_i32_0, %c0_i32_1 : i32, i32, i32, i32
  }
  func.func @transform_1(%arg0: i32) -> (i32, i32, i32) {
    %c0_i32 = arith.constant 0 : i32
    %c0_i32_0 = arith.constant 0 : i32
    %c0_i32_1 = arith.constant 0 : i32
    %c0_i32_2 = arith.constant 0 : i32
    return %c0_i32, %c0_i32_0, %c0_i32_1 : i32, i32, i32
  }
  func.func @transform_2(%arg0: i32) -> (i32, i32) {
    %c0_i32 = arith.constant 0 : i32
    %c0_i32_0 = arith.constant 0 : i32
    %c0_i32_1 = arith.constant 0 : i32
    return %c0_i32, %c0_i32_0 : i32, i32
  }
  func.func @transform_3(%arg0: i32) -> (i32, i32, i32, i32) {
    %c0_i32 = arith.constant 0 : i32
    %c0_i32_0 = arith.constant 0 : i32
    %c0_i32_1 = arith.constant 0 : i32
    %c0_i32_2 = arith.constant 0 : i32
    return %arg0, %c0_i32, %c0_i32_0, %c0_i32_1 : i32, i32, i32, i32
  }
  func.func @transform_4(%arg0: i32) -> (i32, i32, i32) {
    %c0_i32 = arith.constant 0 : i32
    %c0_i32_0 = arith.constant 0 : i32
    %c0_i32_1 = arith.constant 0 : i32
    return %arg0, %c0_i32, %c0_i32_0 : i32, i32, i32
  }
  func.func @transform_5(%arg0: i32) -> (i32, i32, i32) {
    %c0_i32 = arith.constant 0 : i32
    %c0_i32_0 = arith.constant 0 : i32
    %c0_i32_1 = arith.constant 0 : i32
    return %arg0, %c0_i32, %c0_i32_0 : i32, i32, i32
  }
}

</mosaic_0001>

<llo_original>
// kernel: tpu_custom_call.1
$region0: #{tpu_custom_call.1}
  #allocation0 [shape = 'u32[]', space=smem, size = 0x4, offset = 0x4, fixed_abs, tag = 'smem constant byte address 0x4 - core index']
  #allocation1 [shape = 'u32[144,128]{1,0:T(1,128)}', space=vmem, size = 0x12000, scoped, tag = 'internal scratch']
  #allocation2 [shape = 'bf16[18,18,4]{2,1,0:T(8,128)(2,1)}', space=vmem, size = 0x1b000, scoped, tag = 'scratch operand']
  %s0 = inlined_call_operand.vmem [shape: f32[2,16,16,4], index: 0, kind: input, shape index: {}]
  %s1 = inlined_call_operand.vmem [shape: bf16[9,4,8], index: 1, kind: input, shape index: {}]
  %s2 = inlined_call_operand.vmem [shape: f32[1,8], index: 2, kind: input, shape index: {}]
  %s3 = inlined_call_operand.vmem [shape: bf16[2,16,16,8], index: 3, kind: output, shape index: {0}]
  %s4 = inlined_call_operand.hbm [shape: f32[2,1,8], index: 4, kind: output, shape index: {1}]
  %s5 = inlined_call_operand.hbm [shape: f32[2,1,8], index: 5, kind: output, shape index: {2}]
  %6 = xla_tuple %s3, %s4, %s5
  %s7 = sld [smem:[#allocation0]]
  $region61: #{tpu_custom_call.1} parent=0
    _
  %s9 = ssub.s32 1, %s7
  %s10 = scalar_select 0, %s9, %s7
  $region1: #{tpu_custom_call.1} parent=0
    #allocation3 [shape = 'u8[1024]{0}', space=vmem, size = 0x400, scoped, tag = 'output window, operand 1']
    #allocation4 [shape = 's32[2]{0}', space=sflag, size = 0x8, scoped, tag = 'scoped memory for tpu_custom_call.1']
    #allocation5 [shape = 'u8[1024]{0}', space=vmem, size = 0x400, scoped, tag = 'output window, operand 2']
    #allocation6 [shape = 's32[2]{0}', space=sflag, size = 0x8, scoped, tag = 'scoped memory for tpu_custom_call.1']
    %11 = vsyncpa [#allocation4], 0
    %s12 = scalar_lea.sflag [#allocation4], 1
    %13 = vsyncpa %s12, 0
    %14 = vsyncpa [#allocation6], 0
    %s15 = scalar_lea.sflag [#allocation6], 1
    %16 = vsyncpa %s15, 0
    loop: start=0, step=1, limit=4
    $region2: #{tpu_custom_call.1} parent=1 // loop_pre_header
      _
    $region3: #{tpu_custom_call.1} parent=1 // loop_header
      %s18 = sphi 0, %s22
      %p19 = scmp.ge.s32.totalorder %s18, 4
      %s28 = sphi 0, %s30
      %s31 = sphi 0, %s28
      %s32 = sphi 0, %s31
      %s48 = sphi 0, %s32
      %s52 = sphi 0, %s52
      %s54 = sphi 0, %s52
      %s55 = sphi 0, %s54
      %s69 = sphi 0, %s55
      %s73 = sphi 0, %s73
      %s75 = sphi 0, %s73
      %s76 = sphi 0, %s75
      %s90 = sphi 0, %s76
      %s96 = sphi 0, %s98
      %s99 = sphi 0, %s96
      %s100 = sphi 0, %s99
      %s116 = sphi 0, %s100
      %s122 = sphi 0, %s124
      %s125 = sphi 0, %s122
      %s126 = sphi 0, %s125
      %s142 = sphi 0, %s126
      %s148 = sphi 0, %s150
      %s151 = sphi 0, %s148
      %s152 = sphi 0, %s151
      %s168 = sphi 0, %s152
    $region4: #{tpu_custom_call.1} parent=1 // loop_header_branch
      %21 = sbr.rel (%p19) target = $region8
    $region5: #{tpu_custom_call.1} parent=1 // loop_body
      %s23 = ssub.s32 %s18, 1
      %s24 = ssub.s32 %s18, 2
      %s25 = sadd.s32 %s18, 1
      %s26 = ssub.s32 %s18, %s25
      %p27 = scmp.eq.s32.totalorder %s26, 0
      %s29 = sadd.s32 %s28, 1
      %s30 = scalar_select %p27, %s28, %s29
      %p33 = pneg %p27
      %p34 = scmp.eq.s32.totalorder %s18, 1
      %p35 = por %p33, %p34
      %p36 = scmp.ne.s32.totalorder %s28, %s31
      %p37 = scmp.eq.s32.totalorder %s18, 0
      %p38 = por %p36, %p37
      %p39 = scmp.ne.s32.totalorder %s28, %s31
      %p40 = scmp.eq.s32.totalorder %s23, 1
      %p41 = por %p39, %p40
      %p42 = scmp.ne.s32.totalorder %s31, %s32
      %p43 = scmp.eq.s32.totalorder %s23, 0
      %p44 = por %p42, %p43
      %p45 = scmp.ne.s32.totalorder %s31, %s32
      %p46 = scmp.eq.s32.totalorder %s24, 1
      %p47 = por %p45, %p46
      %p49 = scmp.ne.s32.totalorder %s32, %s48
      %p50 = scmp.eq.s32.totalorder %s24, 0
      %p51 = por %p49, %p50
      %s53 = sadd.s32 %s52, 1
      %p56 = scmp.eq.s32.totalorder %s18, 1
      %p57 = scmp.ne.s32.totalorder %s52, %s54
      %p58 = scmp.eq.s32.totalorder %s18, 0
      %p59 = por %p57, %p58
      %p60 = scmp.ne.s32.totalorder %s52, %s54
      %p61 = scmp.eq.s32.totalorder %s23, 1
      %p62 = por %p60, %p61
      %p63 = scmp.ne.s32.totalorder %s54, %s55
      %p64 = scmp.eq.s32.totalorder %s23, 0
      %p65 = por %p63, %p64
      %p66 = scmp.ne.s32.totalorder %s54, %s55
      %p67 = scmp.eq.s32.totalorder %s24, 1
      %p68 = por %p66, %p67
      %p70 = scmp.ne.s32.totalorder %s55, %s69
      %p71 = scmp.eq.s32.totalorder %s24, 0
      %p72 = por %p70, %p71
      %s74 = sadd.s32 %s73, 1
      %p77 = scmp.eq.s32.totalorder %s18, 1
      %p78 = scmp.ne.s32.totalorder %s73, %s75
      %p79 = scmp.eq.s32.totalorder %s18, 0
      %p80 = por %p78, %p79
      %p81 = scmp.ne.s32.totalorder %s73, %s75
      %p82 = scmp.eq.s32.totalorder %s23, 1
      %p83 = por %p81, %p82
      %p84 = scmp.ne.s32.totalorder %s75, %s76
      %p85 = scmp.eq.s32.totalorder %s23, 0
      %p86 = por %p84, %p85
      %p87 = scmp.ne.s32.totalorder %s75, %s76
      %p88 = scmp.eq.s32.totalorder %s24, 1
      %p89 = por %p87, %p88
      %p91 = scmp.ne.s32.totalorder %s76, %s90
      %p92 = scmp.eq.s32.totalorder %s24, 0
      %p93 = por %p91, %p92
      %s94 = ssub.s32 %s18, %s25
      %p95 = scmp.eq.s32.totalorder %s94, 0
      %s97 = sadd.s32 %s96, 1
      %s98 = scalar_select %p95, %s96, %s97
      %p101 = pneg %p95
      %p102 = scmp.eq.s32.totalorder %s18, 1
      %p103 = por %p101, %p102
      %p104 = scmp.ne.s32.totalorder %s96, %s99
      %p105 = scmp.eq.s32.totalorder %s18, 0
      %p106 = por %p104, %p105
      %p107 = scmp.ne.s32.totalorder %s96, %s99
      %p108 = scmp.eq.s32.totalorder %s23, 1
      %p109 = por %p107, %p108
      %p110 = scmp.ne.s32.totalorder %s99, %s100
      %p111 = scmp.eq.s32.totalorder %s23, 0
      %p112 = por %p110, %p111
      %p113 = scmp.ne.s32.totalorder %s99, %s100
      %p114 = scmp.eq.s32.totalorder %s24, 1
      %p115 = por %p113, %p114
      %p117 = scmp.ne.s32.totalorder %s100, %s116
      %p118 = scmp.eq.s32.totalorder %s24, 0
      %p119 = por %p117, %p118
      %s120 = ssub.s32 %s18, %s25
      %p121 = scmp.eq.s32.totalorder %s120, 0
      %s123 = sadd.s32 %s122, 1
      %s124 = scalar_select %p121, %s122, %s123
      %p127 = pneg %p121
      %p128 = scmp.eq.s32.totalorder %s18, 1
      %p129 = por %p127, %p128
      %p130 = scmp.ne.s32.totalorder %s122, %s125
      %p131 = scmp.eq.s32.totalorder %s18, 0
      %p132 = por %p130, %p131
      %p133 = scmp.ne.s32.totalorder %s122, %s125
      %p134 = scmp.eq.s32.totalorder %s23, 1
      %p135 = por %p133, %p134
      %p136 = scmp.ne.s32.totalorder %s125, %s126
      %p137 = scmp.eq.s32.totalorder %s23, 0
      %p138 = por %p136, %p137
      %p139 = scmp.ne.s32.totalorder %s125, %s126
      %p140 = scmp.eq.s32.totalorder %s24, 1
      %p141 = por %p139, %p140
      %p143 = scmp.ne.s32.totalorder %s126, %s142
      %p144 = scmp.eq.s32.totalorder %s24, 0
      %p145 = por %p143, %p144
      %s146 = ssub.s32 %s18, %s25
      %p147 = scmp.eq.s32.totalorder %s146, 0
      %s149 = sadd.s32 %s148, 1
      %s150 = scalar_select %p147, %s148, %s149
      %p153 = pneg %p147
      %p154 = scmp.eq.s32.totalorder %s18, 1
      %p155 = por %p153, %p154
      %p156 = scmp.ne.s32.totalorder %s148, %s151
      %p157 = scmp.eq.s32.totalorder %s18, 0
      %p158 = por %p156, %p157
      %p159 = scmp.ne.s32.totalorder %s148, %s151
      %p160 = scmp.eq.s32.totalorder %s23, 1
      %p161 = por %p159, %p160
      %p162 = scmp.ne.s32.totalorder %s151, %s152
      %p163 = scmp.eq.s32.totalorder %s23, 0
      %p164 = por %p162, %p163
      %p165 = scmp.ne.s32.totalorder %s151, %s152
      %p166 = scmp.eq.s32.totalorder %s24, 1
      %p167 = por %p165, %p166
      %p169 = scmp.ne.s32.totalorder %s152, %s168
      %p170 = scmp.eq.s32.totalorder %s24, 0
      %p171 = por %p169, %p170
      %p172 = scmp.le.s32.totalorder 1, %s18
      %p173 = scmp.lt.s32.totalorder %s18, 3
      %p174 = pnand %p172, %p173
      %p175 = pneg %p174
      // Predicated region
      $region9: #{tpu_custom_call.1} parent=5 // pred_check
        _
      $region10: #{tpu_custom_call.1} parent=5 // pred_check_branch
        %177 = sbr.rel (%p174) target = $region12
      $region11: #{tpu_custom_call.1} parent=5 // pred_region
        %s178 = ssub.s32 %s18, 1
        // Predicated region
        $region13: #{tpu_custom_call.1} parent=11 // pred_check
          %p179 = pneg %p65
        $region14: #{tpu_custom_call.1} parent=11 // pred_check_branch
          %181 = sbr.rel (%p179) target = $region16
        $region15: #{tpu_custom_call.1} parent=11 // pred_region
          _
        $region16: #{tpu_custom_call.1} parent=11 // pred_fallthru
          _
        // Predicated region
        $region17: #{tpu_custom_call.1} parent=11 // pred_check
          %p182 = pneg %p86
        $region18: #{tpu_custom_call.1} parent=11 // pred_check_branch
          %184 = sbr.rel (%p182) target = $region20
        $region19: #{tpu_custom_call.1} parent=11 // pred_region
          _
        $region20: #{tpu_custom_call.1} parent=11 // pred_fallthru
          _
      $region12: #{tpu_custom_call.1} parent=5 // pred_fallthru
        _
      %p185 = scmp.lt.s32.totalorder %s18, 2
      // Predicated region
      $region21: #{tpu_custom_call.1} parent=5 // pred_check
        %p186 = pneg %p185
      $region22: #{tpu_custom_call.1} parent=5 // pred_check_branch
        %188 = sbr.rel (%p186) target = $region24
      $region23: #{tpu_custom_call.1} parent=5 // pred_region
        // Predicated region
        $region25: #{tpu_custom_call.1} parent=23 // pred_check
          %p189 = pneg %p38
        $region26: #{tpu_custom_call.1} parent=23 // pred_check_branch
          %191 = sbr.rel (%p189) target = $region28
        $region27: #{tpu_custom_call.1} parent=23 // pred_region
          %p192 = scmp.lt.s32.totalorder %s18, 1
          %s193 = scalar_select %p192, %s18, 1
          %s194 = smul.addr %s193, 32
          %s195 = smul.addr %s194, 8
          %s196 = scalar_lea.vmem %s0, %s195
        $region28: #{tpu_custom_call.1} parent=23 // pred_fallthru
          _
      $region24: #{tpu_custom_call.1} parent=5 // pred_fallthru
        _
      %p197 = scmp.le.s32.totalorder 1, %s18
      %p198 = scmp.lt.s32.totalorder %s18, 3
      %p199 = pnand %p197, %p198
      %p200 = pneg %p199
      // Predicated region
      $region29: #{tpu_custom_call.1} parent=5 // pred_check
        _
      $region30: #{tpu_custom_call.1} parent=5 // pred_check_branch
        %202 = sbr.rel (%p199) target = $region32
      $region31: #{tpu_custom_call.1} parent=5 // pred_region
        %s203 = ssub.s32 %s18, 1
        %p204 = scmp.lt.s32.totalorder %s23, 1
        %s205 = scalar_select %p204, %s23, 1
        %s206 = smul.addr %s205, 32
        %s207 = smul.addr %s206, 8
        %s208 = scalar_lea.vmem %s0, %s207
        %p209 = pneg %p44
        %p210 = pneg %p41
        %p211 = pneg %p65
        %p212 = pneg %p62
        %p213 = pneg %p86
        %p214 = pneg %p83
        %p215 = pneg %p112
        %p216 = pneg %p109
        %p217 = scmp.lt.s32.totalorder %s23, 1
        %s218 = scalar_select %p217, %s23, 1
        %s219 = smul.addr %s218, 32
        %s220 = smul.addr %s219, 4
        %s221 = scalar_lea.vmem %s3, %s220
        %p222 = pneg %p138
        %p223 = pneg %p135
        %s224 = sand.u32 %s125, 1
        %s225 = scalar_lea.sflag [#allocation4], %s224
        %s226 = sand.u32 %s125, 1
        %s227 = scalar_lea.vmem [#allocation3], %s226
        %p228 = pneg %p164
        %p229 = pneg %p161
        %s230 = sand.u32 %s151, 1
        %s231 = scalar_lea.sflag [#allocation6], %s230
        %s232 = sand.u32 %s151, 1
        %s233 = scalar_lea.vmem [#allocation5], %s232
        %p234 = scmp.lt.s32.totalorder %s23, 1
        %s235 = scalar_select %p234, %s23, 1
        %s236 = smul.addr %s235, 32
        %s237 = smul.addr %s236, 8
        %s238 = scalar_lea.vmem %s0, %s237
        %p239 = scmp.lt.s32.totalorder %s23, 1
        %s240 = scalar_select %p239, %s23, 1
        %s241 = smul.addr %s240, 32
        %s242 = smul.addr %s241, 4
        %s243 = scalar_lea.vmem %s3, %s242
        %v245 = vld [vmem:[%s238] sm:$0xff]
        %v246 = vld [vmem:[%s238 + $0x8] sm:$0xff]
        %v247 = vld [vmem:[%s238 + $0x10] sm:$0xff]
        %v248 = vld [vmem:[%s238 + $0x18] sm:$0xff]
        %v249 = vld [vmem:[%s238 + $0x20] sm:$0xff]
        %v250 = vld [vmem:[%s238 + $0x28] sm:$0xff]
        %v251 = vld [vmem:[%s238 + $0x30] sm:$0xff]
        %v252 = vld [vmem:[%s238 + $0x38] sm:$0xff]
        %v253 = vld [vmem:[%s238 + $0x40] sm:$0xff]
        %v254 = vld [vmem:[%s238 + $0x48] sm:$0xff]
        %v255 = vld [vmem:[%s238 + $0x50] sm:$0xff]
        %v256 = vld [vmem:[%s238 + $0x58] sm:$0xff]
        %v257 = vld [vmem:[%s238 + $0x60] sm:$0xff]
        %v258 = vld [vmem:[%s238 + $0x68] sm:$0xff]
        %v259 = vld [vmem:[%s238 + $0x70] sm:$0xff]
        %v260 = vld [vmem:[%s238 + $0x78] sm:$0xff]
        %v261 = vld [vmem:[%s238 + $0x80] sm:$0xff]
        %v262 = vld [vmem:[%s238 + $0x88] sm:$0xff]
        %v263 = vld [vmem:[%s238 + $0x90] sm:$0xff]
        %v264 = vld [vmem:[%s238 + $0x98] sm:$0xff]
        %v265 = vld [vmem:[%s238 + $0xa0] sm:$0xff]
        %v266 = vld [vmem:[%s238 + $0xa8] sm:$0xff]
        %v267 = vld [vmem:[%s238 + $0xb0] sm:$0xff]
        %v268 = vld [vmem:[%s238 + $0xb8] sm:$0xff]
        %v269 = vld [vmem:[%s238 + $0xc0] sm:$0xff]
        %v270 = vld [vmem:[%s238 + $0xc8] sm:$0xff]
        %v271 = vld [vmem:[%s238 + $0xd0] sm:$0xff]
        %v272 = vld [vmem:[%s238 + $0xd8] sm:$0xff]
        %v273 = vld [vmem:[%s238 + $0xe0] sm:$0xff]
        %v274 = vld [vmem:[%s238 + $0xe8] sm:$0xff]
        %v275 = vld [vmem:[%s238 + $0xf0] sm:$0xff]
        %v276 = vld [vmem:[%s238 + $0xf8] sm:$0xff]
        %vm277 = vcmask 27648
        %278 = vst.msk [vmem:[#allocation2] sm:$0xf] %vm277, 0
        %279 = vst.msk [vmem:[#allocation2 + $0x4] sm:$0xf] %vm277, 0
        %vm280 = vcmask 24576
        %281 = vst.msk [vmem:[#allocation2 + $0x8] sm:$0x1] %vm280, 0
        %s282 = scalar_lea.vmem [#allocation2], 204
        %283 = vst.msk [vmem:[%s282] sm:$0xf] %vm277, 0
        %284 = vst.msk [vmem:[%s282 + $0x4] sm:$0xf] %vm277, 0
        %285 = vst.msk [vmem:[%s282 + $0x8] sm:$0x1] %vm280, 0
        %vm286 = vcmask 24576
        %vm287 = vsmask.f32 256
        %vm288 = vmand %vm286, %vm287
        %v289 = vld [vmem:[#allocation2] sm:$0x1]
        %v290 = vsel %vm288, 0, %v289
        %291 = vst [vmem:[#allocation2] sm:$0x1] %v290
        %v292 = vld [vmem:[#allocation2 + $0xc] sm:$0x1]
        %v293 = vsel %vm288, 0, %v292
        %294 = vst [vmem:[#allocation2 + $0xc] sm:$0x1] %v293
        %v295 = vld [vmem:[#allocation2 + $0x18] sm:$0x1]
        %v296 = vsel %vm288, 0, %v295
        %297 = vst [vmem:[#allocation2 + $0x18] sm:$0x1] %v296
        %v298 = vld [vmem:[#allocation2 + $0x24] sm:$0x1]
        %v299 = vsel %vm288, 0, %v298
        %300 = vst [vmem:[#allocation2 + $0x24] sm:$0x1] %v299
        %v301 = vld [vmem:[#allocation2 + $0x30] sm:$0x1]
        %v302 = vsel %vm288, 0, %v301
        %303 = vst [vmem:[#allocation2 + $0x30] sm:$0x1] %v302
        %v304 = vld [vmem:[#allocation2 + $0x3c] sm:$0x1]
        %v305 = vsel %vm288, 0, %v304
        %306 = vst [vmem:[#allocation2 + $0x3c] sm:$0x1] %v305
        %v307 = vld [vmem:[#allocation2 + $0x48] sm:$0x1]
        %v308 = vsel %vm288, 0, %v307
        %309 = vst [vmem:[#allocation2 + $0x48] sm:$0x1] %v308
        %v310 = vld [vmem:[#allocation2 + $0x54] sm:$0x1]
        %v311 = vsel %vm288, 0, %v310
        %312 = vst [vmem:[#allocation2 + $0x54] sm:$0x1] %v311
        %v313 = vld [vmem:[#allocation2 + $0x60] sm:$0x1]
        %v314 = vsel %vm288, 0, %v313
        %315 = vst [vmem:[#allocation2 + $0x60] sm:$0x1] %v314
        %v316 = vld [vmem:[#allocation2 + $0x6c] sm:$0x1]
        %v317 = vsel %vm288, 0, %v316
        %318 = vst [vmem:[#allocation2 + $0x6c] sm:$0x1] %v317
        %v319 = vld [vmem:[#allocation2 + $0x78] sm:$0x1]
        %v320 = vsel %vm288, 0, %v319
        %321 = vst [vmem:[#allocation2 + $0x78] sm:$0x1] %v320
        %v322 = vld [vmem:[#allocation2 + $0x84] sm:$0x1]
        %v323 = vsel %vm288, 0, %v322
        %324 = vst [vmem:[#allocation2 + $0x84] sm:$0x1] %v323
        %v325 = vld [vmem:[#allocation2 + $0x90] sm:$0x1]
        %v326 = vsel %vm288, 0, %v325
        %327 = vst [vmem:[#allocation2 + $0x90] sm:$0x1] %v326
        %v328 = vld [vmem:[#allocation2 + $0x9c] sm:$0x1]
        %v329 = vsel %vm288, 0, %v328
        %330 = vst [vmem:[#allocation2 + $0x9c] sm:$0x1] %v329
        %v331 = vld [vmem:[#allocation2 + $0xa8] sm:$0x1]
        %v332 = vsel %vm288, 0, %v331
        %333 = vst [vmem:[#allocation2 + $0xa8] sm:$0x1] %v332
        %v334 = vld [vmem:[#allocation2 + $0xb4] sm:$0x1]
        %v335 = vsel %vm288, 0, %v334
        %336 = vst [vmem:[#allocation2 + $0xb4] sm:$0x1] %v335
        %v337 = vld [vmem:[#allocation2 + $0xc0] sm:$0x1]
        %v338 = vsel %vm288, 0, %v337
        %339 = vst [vmem:[#allocation2 + $0xc0] sm:$0x1] %v338
        %v340 = vld [vmem:[#allocation2 + $0xcc] sm:$0x1]
        %v341 = vsel %vm288, 0, %v340
        %342 = vst [vmem:[#allocation2 + $0xcc] sm:$0x1] %v341
        %vm343 = vsmask.f32 7938
        %vm344 = vmand %vm286, %vm343
        %v345 = vld [vmem:[#allocation2 + $0x8] sm:$0x1]
        %v346 = vsel %vm344, 0, %v345
        %347 = vst [vmem:[#allocation2 + $0x8] sm:$0x1] %v346
        %v348 = vld [vmem:[#allocation2 + $0x14] sm:$0x1]
        %v349 = vsel %vm344, 0, %v348
        %350 = vst [vmem:[#allocation2 + $0x14] sm:$0x1] %v349
        %v351 = vld [vmem:[#allocation2 + $0x20] sm:$0x1]
        %v352 = vsel %vm344, 0, %v351
        %353 = vst [vmem:[#allocation2 + $0x20] sm:$0x1] %v352
        %v354 = vld [vmem:[#allocation2 + $0x2c] sm:$0x1]
        %v355 = vsel %vm344, 0, %v354
        %356 = vst [vmem:[#allocation2 + $0x2c] sm:$0x1] %v355
        %v357 = vld [vmem:[#allocation2 + $0x38] sm:$0x1]
        %v358 = vsel %vm344, 0, %v357
        %359 = vst [vmem:[#allocation2 + $0x38] sm:$0x1] %v358
        %v360 = vld [vmem:[#allocation2 + $0x44] sm:$0x1]
        %v361 = vsel %vm344, 0, %v360
        %362 = vst [vmem:[#allocation2 + $0x44] sm:$0x1] %v361
        %v363 = vld [vmem:[#allocation2 + $0x50] sm:$0x1]
        %v364 = vsel %vm344, 0, %v363
        %365 = vst [vmem:[#allocation2 + $0x50] sm:$0x1] %v364
        %v366 = vld [vmem:[#allocation2 + $0x5c] sm:$0x1]
        %v367 = vsel %vm344, 0, %v366
        %368 = vst [vmem:[#allocation2 + $0x5c] sm:$0x1] %v367
        %v369 = vld [vmem:[#allocation2 + $0x68] sm:$0x1]
        %v370 = vsel %vm344, 0, %v369
        %371 = vst [vmem:[#allocation2 + $0x68] sm:$0x1] %v370
        %v372 = vld [vmem:[#allocation2 + $0x74] sm:$0x1]
        %v373 = vsel %vm344, 0, %v372
        %374 = vst [vmem:[#allocation2 + $0x74] sm:$0x1] %v373
        %v375 = vld [vmem:[#allocation2 + $0x80] sm:$0x1]
        %v376 = vsel %vm344, 0, %v375
        %377 = vst [vmem:[#allocation2 + $0x80] sm:$0x1] %v376
        %v378 = vld [vmem:[#allocation2 + $0x8c] sm:$0x1]
        %v379 = vsel %vm344, 0, %v378
        %380 = vst [vmem:[#allocation2 + $0x8c] sm:$0x1] %v379
        %v381 = vld [vmem:[#allocation2 + $0x98] sm:$0x1]
        %v382 = vsel %vm344, 0, %v381
        %383 = vst [vmem:[#allocation2 + $0x98] sm:$0x1] %v382
        %v384 = vld [vmem:[#allocation2 + $0xa4] sm:$0x1]
        %v385 = vsel %vm344, 0, %v384
        %386 = vst [vmem:[#allocation2 + $0xa4] sm:$0x1] %v385
        %v387 = vld [vmem:[#allocation2 + $0xb0] sm:$0x1]
        %v388 = vsel %vm344, 0, %v387
        %389 = vst [vmem:[#allocation2 + $0xb0] sm:$0x1] %v388
        %v390 = vld [vmem:[#allocation2 + $0xbc] sm:$0x1]
        %v391 = vsel %vm344, 0, %v390
        %392 = vst [vmem:[#allocation2 + $0xbc] sm:$0x1] %v391
        %v393 = vld [vmem:[#allocation2 + $0xc8] sm:$0x1]
        %v394 = vsel %vm344, 0, %v393
        %395 = vst [vmem:[#allocation2 + $0xc8] sm:$0x1] %v394
        %v396 = vld [vmem:[#allocation2 + $0xd4] sm:$0x1]
        %v397 = vsel %vm344, 0, %v396
        %398 = vst [vmem:[#allocation2 + $0xd4] sm:$0x1] %v397
        %v399 = vpack.c.bf16 %v246, %v245
        %v400 = vpack.c.bf16 %v248, %v247
        %v401 = vpack.c.bf16 %v250, %v249
        %v402 = vpack.c.bf16 %v252, %v251
        %v403 = vpack.c.bf16 %v254, %v253
        %v404 = vpack.c.bf16 %v256, %v255
        %v405 = vpack.c.bf16 %v258, %v257
        %v406 = vpack.c.bf16 %v260, %v259
        %v407 = vpack.c.bf16 %v262, %v261
        %v408 = vpack.c.bf16 %v264, %v263
        %v409 = vpack.c.bf16 %v266, %v265
        %v410 = vpack.c.bf16 %v268, %v267
        %v411 = vpack.c.bf16 %v270, %v269
        %v412 = vpack.c.bf16 %v272, %v271
        %v413 = vpack.c.bf16 %v274, %v273
        %v414 = vpack.c.bf16 %v276, %v275
        %v431 = vunpack.c.l.b16 %v399
        %v432 = vunpack.c.h.b16 %v399
        %v433 = vunpack.c.l.b16 %v400
        %v434 = vunpack.c.h.b16 %v400
        %v435 = vunpack.c.l.b16 %v401
        %v436 = vunpack.c.h.b16 %v401
        %v437 = vunpack.c.l.b16 %v402
        %v438 = vunpack.c.h.b16 %v402
        %v439 = vunpack.c.l.b16 %v403
        %v440 = vunpack.c.h.b16 %v403
        %v441 = vunpack.c.l.b16 %v404
        %v442 = vunpack.c.h.b16 %v404
        %v443 = vunpack.c.l.b16 %v405
        %v444 = vunpack.c.h.b16 %v405
        %v445 = vunpack.c.l.b16 %v406
        %v446 = vunpack.c.h.b16 %v406
        %v447 = vunpack.c.l.b16 %v407
        %v448 = vunpack.c.h.b16 %v407
        %v449 = vunpack.c.l.b16 %v408
        %v450 = vunpack.c.h.b16 %v408
        %v451 = vunpack.c.l.b16 %v409
        %v452 = vunpack.c.h.b16 %v409
        %v453 = vunpack.c.l.b16 %v410
        %v454 = vunpack.c.h.b16 %v410
        %v455 = vunpack.c.l.b16 %v411
        %v456 = vunpack.c.h.b16 %v411
        %v457 = vunpack.c.l.b16 %v412
        %v458 = vunpack.c.h.b16 %v412
        %v459 = vunpack.c.l.b16 %v413
        %v460 = vunpack.c.h.b16 %v413
        %v461 = vunpack.c.l.b16 %v414
        %v462 = vunpack.c.h.b16 %v414
        %v463 = vpack.c.b16 %v431, %v431
        %v464 = vpack.c.b16 %v432, %v432
        %v465 = vpack.c.b16 %v433, %v433
        %v466 = vpack.c.b16 %v434, %v434
        %v467 = vpack.c.b16 %v435, %v435
        %v468 = vpack.c.b16 %v436, %v436
        %v469 = vpack.c.b16 %v437, %v437
        %v470 = vpack.c.b16 %v438, %v438
        %v471 = vpack.c.b16 %v439, %v439
        %v472 = vpack.c.b16 %v440, %v440
        %v473 = vpack.c.b16 %v441, %v441
        %v474 = vpack.c.b16 %v442, %v442
        %v475 = vpack.c.b16 %v443, %v443
        %v476 = vpack.c.b16 %v444, %v444
        %v477 = vpack.c.b16 %v445, %v445
        %v478 = vpack.c.b16 %v446, %v446
        %v479 = vpack.c.b16 %v447, %v447
        %v480 = vpack.c.b16 %v448, %v448
        %v481 = vpack.c.b16 %v449, %v449
        %v482 = vpack.c.b16 %v450, %v450
        %v483 = vpack.c.b16 %v451, %v451
        %v484 = vpack.c.b16 %v452, %v452
        %v485 = vpack.c.b16 %v453, %v453
        %v486 = vpack.c.b16 %v454, %v454
        %v487 = vpack.c.b16 %v455, %v455
        %v488 = vpack.c.b16 %v456, %v456
        %v489 = vpack.c.b16 %v457, %v457
        %v490 = vpack.c.b16 %v458, %v458
        %v491 = vpack.c.b16 %v459, %v459
        %v492 = vpack.c.b16 %v460, %v460
        %v493 = vpack.c.b16 %v461, %v461
        %v494 = vpack.c.b16 %v462, %v462
        %vm495 = vsmask.f32 4368
        %vm496 = vmor %vm287, %vm495
        %v498 = vshrl.u32 %v463, 16
        %v500 = vrot.slane %v498, 7
        %v501 = vshll.u32 %v463, 16
        %v503 = vor.u32 %v500, %v501
        %v504 = vrot.slane %v500, 4
        %v506 = vshrl.u32 %v464, 16
        %v508 = vrot.slane %v506, 7
        %v509 = vshll.u32 %v464, 16
        %v511 = vor.u32 %v508, %v509
        %v512 = vsel %vm496, %v504, %v511
        %v513 = vrot.slane %v508, 4
        %v515 = vshrl.u32 %v465, 16
        %v517 = vrot.slane %v515, 7
        %v518 = vshll.u32 %v465, 16
        %v520 = vor.u32 %v517, %v518
        %v521 = vrot.slane %v517, 4
        %v523 = vshrl.u32 %v466, 16
        %v525 = vrot.slane %v523, 7
        %v526 = vshll.u32 %v466, 16
        %v528 = vor.u32 %v525, %v526
        %v529 = vsel %vm496, %v521, %v528
        %v530 = vrot.slane %v525, 4
        %v532 = vshrl.u32 %v467, 16
        %v534 = vrot.slane %v532, 7
        %v535 = vshll.u32 %v467, 16
        %v537 = vor.u32 %v534, %v535
        %v538 = vrot.slane %v534, 4
        %v540 = vshrl.u32 %v468, 16
        %v542 = vrot.slane %v540, 7
        %v543 = vshll.u32 %v468, 16
        %v545 = vor.u32 %v542, %v543
        %v546 = vsel %vm496, %v538, %v545
        %v547 = vrot.slane %v542, 4
        %v549 = vshrl.u32 %v469, 16
        %v551 = vrot.slane %v549, 7
        %v552 = vshll.u32 %v469, 16
        %v554 = vor.u32 %v551, %v552
        %v555 = vrot.slane %v551, 4
        %v557 = vshrl.u32 %v470, 16
        %v559 = vrot.slane %v557, 7
        %v560 = vshll.u32 %v470, 16
        %v562 = vor.u32 %v559, %v560
        %v563 = vsel %vm496, %v555, %v562
        %v564 = vrot.slane %v559, 4
        %v566 = vshrl.u32 %v471, 16
        %v568 = vrot.slane %v566, 7
        %v569 = vshll.u32 %v471, 16
        %v571 = vor.u32 %v568, %v569
        %v572 = vrot.slane %v568, 4
        %v574 = vshrl.u32 %v472, 16
        %v576 = vrot.slane %v574, 7
        %v577 = vshll.u32 %v472, 16
        %v579 = vor.u32 %v576, %v577
        %v580 = vsel %vm496, %v572, %v579
        %v581 = vrot.slane %v576, 4
        %v583 = vshrl.u32 %v473, 16
        %v585 = vrot.slane %v583, 7
        %v586 = vshll.u32 %v473, 16
        %v588 = vor.u32 %v585, %v586
        %v589 = vrot.slane %v585, 4
        %v591 = vshrl.u32 %v474, 16
        %v593 = vrot.slane %v591, 7
        %v594 = vshll.u32 %v474, 16
        %v596 = vor.u32 %v593, %v594
        %v597 = vsel %vm496, %v589, %v596
        %v598 = vrot.slane %v593, 4
        %v600 = vshrl.u32 %v475, 16
        %v602 = vrot.slane %v600, 7
        %v603 = vshll.u32 %v475, 16
        %v605 = vor.u32 %v602, %v603
        %v606 = vrot.slane %v602, 4
        %v608 = vshrl.u32 %v476, 16
        %v610 = vrot.slane %v608, 7
        %v611 = vshll.u32 %v476, 16
        %v613 = vor.u32 %v610, %v611
        %v614 = vsel %vm496, %v606, %v613
        %v615 = vrot.slane %v610, 4
        %v617 = vshrl.u32 %v477, 16
        %v619 = vrot.slane %v617, 7
        %v620 = vshll.u32 %v477, 16
        %v622 = vor.u32 %v619, %v620
        %v623 = vrot.slane %v619, 4
        %v625 = vshrl.u32 %v478, 16
        %v627 = vrot.slane %v625, 7
        %v628 = vshll.u32 %v478, 16
        %v630 = vor.u32 %v627, %v628
        %v631 = vsel %vm496, %v623, %v630
        %v632 = vrot.slane %v627, 4
        %v634 = vshrl.u32 %v479, 16
        %v636 = vrot.slane %v634, 7
        %v637 = vshll.u32 %v479, 16
        %v639 = vor.u32 %v636, %v637
        %v640 = vrot.slane %v636, 4
        %v642 = vshrl.u32 %v480, 16
        %v644 = vrot.slane %v642, 7
        %v645 = vshll.u32 %v480, 16
        %v647 = vor.u32 %v644, %v645
        %v648 = vsel %vm496, %v640, %v647
        %v649 = vrot.slane %v644, 4
        %v651 = vshrl.u32 %v481, 16
        %v653 = vrot.slane %v651, 7
        %v654 = vshll.u32 %v481, 16
        %v656 = vor.u32 %v653, %v654
        %v657 = vrot.slane %v653, 4
        %v659 = vshrl.u32 %v482, 16
        %v661 = vrot.slane %v659, 7
        %v662 = vshll.u32 %v482, 16
        %v664 = vor.u32 %v661, %v662
        %v665 = vsel %vm496, %v657, %v664
        %v666 = vrot.slane %v661, 4
        %v668 = vshrl.u32 %v483, 16
        %v670 = vrot.slane %v668, 7
        %v671 = vshll.u32 %v483, 16
        %v673 = vor.u32 %v670, %v671
        %v674 = vrot.slane %v670, 4
        %v676 = vshrl.u32 %v484, 16
        %v678 = vrot.slane %v676, 7
        %v679 = vshll.u32 %v484, 16
        %v681 = vor.u32 %v678, %v679
        %v682 = vsel %vm496, %v674, %v681
        %v683 = vrot.slane %v678, 4
        %v685 = vshrl.u32 %v485, 16
        %v687 = vrot.slane %v685, 7
        %v688 = vshll.u32 %v485, 16
        %v690 = vor.u32 %v687, %v688
        %v691 = vrot.slane %v687, 4
        %v693 = vshrl.u32 %v486, 16
        %v695 = vrot.slane %v693, 7
        %v696 = vshll.u32 %v486, 16
        %v698 = vor.u32 %v695, %v696
        %v699 = vsel %vm496, %v691, %v698
        %v700 = vrot.slane %v695, 4
        %v702 = vshrl.u32 %v487, 16
        %v704 = vrot.slane %v702, 7
        %v705 = vshll.u32 %v487, 16
        %v707 = vor.u32 %v704, %v705
        %v708 = vrot.slane %v704, 4
        %v710 = vshrl.u32 %v488, 16
        %v712 = vrot.slane %v710, 7
        %v713 = vshll.u32 %v488, 16
        %v715 = vor.u32 %v712, %v713
        %v716 = vsel %vm496, %v708, %v715
        %v717 = vrot.slane %v712, 4
        %v719 = vshrl.u32 %v489, 16
        %v721 = vrot.slane %v719, 7
        %v722 = vshll.u32 %v489, 16
        %v724 = vor.u32 %v721, %v722
        %v725 = vrot.slane %v721, 4
        %v727 = vshrl.u32 %v490, 16
        %v729 = vrot.slane %v727, 7
        %v730 = vshll.u32 %v490, 16
        %v732 = vor.u32 %v729, %v730
        %v733 = vsel %vm496, %v725, %v732
        %v734 = vrot.slane %v729, 4
        %v736 = vshrl.u32 %v491, 16
        %v738 = vrot.slane %v736, 7
        %v739 = vshll.u32 %v491, 16
        %v741 = vor.u32 %v738, %v739
        %v742 = vrot.slane %v738, 4
        %v744 = vshrl.u32 %v492, 16
        %v746 = vrot.slane %v744, 7
        %v747 = vshll.u32 %v492, 16
        %v749 = vor.u32 %v746, %v747
        %v750 = vsel %vm496, %v742, %v749
        %v751 = vrot.slane %v746, 4
        %v753 = vshrl.u32 %v493, 16
        %v755 = vrot.slane %v753, 7
        %v756 = vshll.u32 %v493, 16
        %v758 = vor.u32 %v755, %v756
        %v759 = vrot.slane %v755, 4
        %v761 = vshrl.u32 %v494, 16
        %v763 = vrot.slane %v761, 7
        %v764 = vshll.u32 %v494, 16
        %v766 = vor.u32 %v763, %v764
        %v767 = vsel %vm496, %v759, %v766
        %v768 = vrot.slane %v763, 4
        %s817 = scalar_lea.vmem [#allocation2], 12
        %vm818 = vcmask 27648
        %vm819 = vmand %vm818, %vm343
        %v820 = vld [vmem:[%s817] sm:$0xf]
        %v821 = vsel %vm819, %v503, %v820
        %822 = vst [vmem:[%s817] sm:$0xf] %v821
        %823 = vst.msk [vmem:[%s817 + $0x4] sm:$0xf] %vm277, %v512
        %v824 = vld [vmem:[%s817 + $0x8] sm:$0x1]
        %v825 = vsel %vm288, %v513, %v824
        %826 = vst [vmem:[%s817 + $0x8] sm:$0x1] %v825
        %v827 = vld [vmem:[%s817 + $0xc] sm:$0xf]
        %v828 = vsel %vm819, %v520, %v827
        %829 = vst [vmem:[%s817 + $0xc] sm:$0xf] %v828
        %830 = vst.msk [vmem:[%s817 + $0x10] sm:$0xf] %vm277, %v529
        %v831 = vld [vmem:[%s817 + $0x14] sm:$0x1]
        %v832 = vsel %vm288, %v530, %v831
        %833 = vst [vmem:[%s817 + $0x14] sm:$0x1] %v832
        %v834 = vld [vmem:[%s817 + $0x18] sm:$0xf]
        %v835 = vsel %vm819, %v537, %v834
        %836 = vst [vmem:[%s817 + $0x18] sm:$0xf] %v835
        %837 = vst.msk [vmem:[%s817 + $0x1c] sm:$0xf] %vm277, %v546
        %v838 = vld [vmem:[%s817 + $0x20] sm:$0x1]
        %v839 = vsel %vm288, %v547, %v838
        %840 = vst [vmem:[%s817 + $0x20] sm:$0x1] %v839
        %v841 = vld [vmem:[%s817 + $0x24] sm:$0xf]
        %v842 = vsel %vm819, %v554, %v841
        %843 = vst [vmem:[%s817 + $0x24] sm:$0xf] %v842
        %844 = vst.msk [vmem:[%s817 + $0x28] sm:$0xf] %vm277, %v563
        %v845 = vld [vmem:[%s817 + $0x2c] sm:$0x1]
        %v846 = vsel %vm288, %v564, %v845
        %847 = vst [vmem:[%s817 + $0x2c] sm:$0x1] %v846
        %v848 = vld [vmem:[%s817 + $0x30] sm:$0xf]
        %v849 = vsel %vm819, %v571, %v848
        %850 = vst [vmem:[%s817 + $0x30] sm:$0xf] %v849
        %851 = vst.msk [vmem:[%s817 + $0x34] sm:$0xf] %vm277, %v580
        %v852 = vld [vmem:[%s817 + $0x38] sm:$0x1]
        %v853 = vsel %vm288, %v581, %v852
        %854 = vst [vmem:[%s817 + $0x38] sm:$0x1] %v853
        %v855 = vld [vmem:[%s817 + $0x3c] sm:$0xf]
        %v856 = vsel %vm819, %v588, %v855
        %857 = vst [vmem:[%s817 + $0x3c] sm:$0xf] %v856
        %858 = vst.msk [vmem:[%s817 + $0x40] sm:$0xf] %vm277, %v597
        %v859 = vld [vmem:[%s817 + $0x44] sm:$0x1]
        %v860 = vsel %vm288, %v598, %v859
        %861 = vst [vmem:[%s817 + $0x44] sm:$0x1] %v860
        %v862 = vld [vmem:[%s817 + $0x48] sm:$0xf]
        %v863 = vsel %vm819, %v605, %v862
        %864 = vst [vmem:[%s817 + $0x48] sm:$0xf] %v863
        %865 = vst.msk [vmem:[%s817 + $0x4c] sm:$0xf] %vm277, %v614
        %v866 = vld [vmem:[%s817 + $0x50] sm:$0x1]
        %v867 = vsel %vm288, %v615, %v866
        %868 = vst [vmem:[%s817 + $0x50] sm:$0x1] %v867
        %v869 = vld [vmem:[%s817 + $0x54] sm:$0xf]
        %v870 = vsel %vm819, %v622, %v869
        %871 = vst [vmem:[%s817 + $0x54] sm:$0xf] %v870
        %872 = vst.msk [vmem:[%s817 + $0x58] sm:$0xf] %vm277, %v631
        %v873 = vld [vmem:[%s817 + $0x5c] sm:$0x1]
        %v874 = vsel %vm288, %v632, %v873
        %875 = vst [vmem:[%s817 + $0x5c] sm:$0x1] %v874
        %v876 = vld [vmem:[%s817 + $0x60] sm:$0xf]
        %v877 = vsel %vm819, %v639, %v876
        %878 = vst [vmem:[%s817 + $0x60] sm:$0xf] %v877
        %879 = vst.msk [vmem:[%s817 + $0x64] sm:$0xf] %vm277, %v648
        %v880 = vld [vmem:[%s817 + $0x68] sm:$0x1]
        %v881 = vsel %vm288, %v649, %v880
        %882 = vst [vmem:[%s817 + $0x68] sm:$0x1] %v881
        %v883 = vld [vmem:[%s817 + $0x6c] sm:$0xf]
        %v884 = vsel %vm819, %v656, %v883
        %885 = vst [vmem:[%s817 + $0x6c] sm:$0xf] %v884
        %886 = vst.msk [vmem:[%s817 + $0x70] sm:$0xf] %vm277, %v665
        %v887 = vld [vmem:[%s817 + $0x74] sm:$0x1]
        %v888 = vsel %vm288, %v666, %v887
        %889 = vst [vmem:[%s817 + $0x74] sm:$0x1] %v888
        %v890 = vld [vmem:[%s817 + $0x78] sm:$0xf]
        %v891 = vsel %vm819, %v673, %v890
        %892 = vst [vmem:[%s817 + $0x78] sm:$0xf] %v891
        %893 = vst.msk [vmem:[%s817 + $0x7c] sm:$0xf] %vm277, %v682
        %v894 = vld [vmem:[%s817 + $0x80] sm:$0x1]
        %v895 = vsel %vm288, %v683, %v894
        %896 = vst [vmem:[%s817 + $0x80] sm:$0x1] %v895
        %v897 = vld [vmem:[%s817 + $0x84] sm:$0xf]
        %v898 = vsel %vm819, %v690, %v897
        %899 = vst [vmem:[%s817 + $0x84] sm:$0xf] %v898
        %900 = vst.msk [vmem:[%s817 + $0x88] sm:$0xf] %vm277, %v699
        %v901 = vld [vmem:[%s817 + $0x8c] sm:$0x1]
        %v902 = vsel %vm288, %v700, %v901
        %903 = vst [vmem:[%s817 + $0x8c] sm:$0x1] %v902
        %v904 = vld [vmem:[%s817 + $0x90] sm:$0xf]
        %v905 = vsel %vm819, %v707, %v904
        %906 = vst [vmem:[%s817 + $0x90] sm:$0xf] %v905
        %907 = vst.msk [vmem:[%s817 + $0x94] sm:$0xf] %vm277, %v716
        %v908 = vld [vmem:[%s817 + $0x98] sm:$0x1]
        %v909 = vsel %vm288, %v717, %v908
        %910 = vst [vmem:[%s817 + $0x98] sm:$0x1] %v909
        %v911 = vld [vmem:[%s817 + $0x9c] sm:$0xf]
        %v912 = vsel %vm819, %v724, %v911
        %913 = vst [vmem:[%s817 + $0x9c] sm:$0xf] %v912
        %914 = vst.msk [vmem:[%s817 + $0xa0] sm:$0xf] %vm277, %v733
        %v915 = vld [vmem:[%s817 + $0xa4] sm:$0x1]
        %v916 = vsel %vm288, %v734, %v915
        %917 = vst [vmem:[%s817 + $0xa4] sm:$0x1] %v916
        %v918 = vld [vmem:[%s817 + $0xa8] sm:$0xf]
        %v919 = vsel %vm819, %v741, %v918
        %920 = vst [vmem:[%s817 + $0xa8] sm:$0xf] %v919
        %921 = vst.msk [vmem:[%s817 + $0xac] sm:$0xf] %vm277, %v750
        %v922 = vld [vmem:[%s817 + $0xb0] sm:$0x1]
        %v923 = vsel %vm288, %v751, %v922
        %924 = vst [vmem:[%s817 + $0xb0] sm:$0x1] %v923
        %v925 = vld [vmem:[%s817 + $0xb4] sm:$0xf]
        %v926 = vsel %vm819, %v758, %v925
        %927 = vst [vmem:[%s817 + $0xb4] sm:$0xf] %v926
        %928 = vst.msk [vmem:[%s817 + $0xb8] sm:$0xf] %vm277, %v767
        %v929 = vld [vmem:[%s817 + $0xbc] sm:$0x1]
        %v930 = vsel %vm288, %v768, %v929
        %931 = vst [vmem:[%s817 + $0xbc] sm:$0x1] %v930
        %v932 = vld [vmem:[#allocation2] sm:$0xf]
        %v933 = vld [vmem:[#allocation2 + $0x4] sm:$0xf]
        %v934 = vld [vmem:[#allocation2 + $0xc] sm:$0xf]
        %v935 = vld [vmem:[#allocation2 + $0x10] sm:$0xf]
        %v936 = vld [vmem:[#allocation2 + $0x18] sm:$0xf]
        %v937 = vld [vmem:[#allocation2 + $0x1c] sm:$0xf]
        %v938 = vld [vmem:[#allocation2 + $0x24] sm:$0xf]
        %v939 = vld [vmem:[#allocation2 + $0x28] sm:$0xf]
        %v940 = vld [vmem:[#allocation2 + $0x30] sm:$0xf]
        %v941 = vld [vmem:[#allocation2 + $0x34] sm:$0xf]
        %v942 = vld [vmem:[#allocation2 + $0x3c] sm:$0xf]
        %v943 = vld [vmem:[#allocation2 + $0x40] sm:$0xf]
        %v944 = vld [vmem:[#allocation2 + $0x48] sm:$0xf]
        %v945 = vld [vmem:[#allocation2 + $0x4c] sm:$0xf]
        %v946 = vld [vmem:[#allocation2 + $0x54] sm:$0xf]
        %v947 = vld [vmem:[#allocation2 + $0x58] sm:$0xf]
        %v948 = vld [vmem:[#allocation2 + $0x60] sm:$0xf]
        %v949 = vld [vmem:[#allocation2 + $0x64] sm:$0xf]
        %v950 = vld [vmem:[#allocation2 + $0x6c] sm:$0xf]
        %v951 = vld [vmem:[#allocation2 + $0x70] sm:$0xf]
        %v952 = vld [vmem:[#allocation2 + $0x78] sm:$0xf]
        %v953 = vld [vmem:[#allocation2 + $0x7c] sm:$0xf]
        %v954 = vld [vmem:[#allocation2 + $0x84] sm:$0xf]
        %v955 = vld [vmem:[#allocation2 + $0x88] sm:$0xf]
        %v956 = vld [vmem:[#allocation2 + $0x90] sm:$0xf]
        %v957 = vld [vmem:[#allocation2 + $0x94] sm:$0xf]
        %v958 = vld [vmem:[#allocation2 + $0x9c] sm:$0xf]
        %v959 = vld [vmem:[#allocation2 + $0xa0] sm:$0xf]
        %v960 = vld [vmem:[#allocation2 + $0xa8] sm:$0xf]
        %v961 = vld [vmem:[#allocation2 + $0xac] sm:$0xf]
        %v962 = vld [vmem:[#allocation2 + $0xb4] sm:$0xf]
        %v963 = vld [vmem:[#allocation2 + $0xb8] sm:$0xf]
        %v964 = vld [vmem:[%s1] sm:$0x3]
        %v965 = vld [vmem:[#allocation2 + $0x8] sm:$0x1]
        %v966 = vld [vmem:[#allocation2 + $0x14] sm:$0x1]
        %v967 = vld [vmem:[#allocation2 + $0x20] sm:$0x1]
        %v968 = vld [vmem:[#allocation2 + $0x2c] sm:$0x1]
        %v969 = vld [vmem:[#allocation2 + $0x38] sm:$0x1]
        %v970 = vld [vmem:[#allocation2 + $0x44] sm:$0x1]
        %v971 = vld [vmem:[#allocation2 + $0x50] sm:$0x1]
        %v972 = vld [vmem:[#allocation2 + $0x5c] sm:$0x1]
        %v973 = vld [vmem:[#allocation2 + $0x68] sm:$0x1]
        %v974 = vld [vmem:[#allocation2 + $0x74] sm:$0x1]
        %v975 = vld [vmem:[#allocation2 + $0x80] sm:$0x1]
        %v976 = vld [vmem:[#allocation2 + $0x8c] sm:$0x1]
        %v977 = vld [vmem:[#allocation2 + $0x98] sm:$0x1]
        %v978 = vld [vmem:[#allocation2 + $0xa4] sm:$0x1]
        %v979 = vld [vmem:[#allocation2 + $0xb0] sm:$0x1]
        %v980 = vld [vmem:[#allocation2 + $0xbc] sm:$0x1]
        %vm981 = vsmask.f32 3328
        %vm982 = vsmask.f32 7440
        %vm983 = vmor %vm981, %vm982
        %v985 = vshrl.u32 %v932, 16
        %v987 = vrot.slane %v985, 4
        %v988 = vshll.u32 %v932, 16
        %v990 = vrot.slane %v988, 5
        %v991 = vor.u32 %v987, %v990
        %v992 = vrot.slane %v991, 4
        %v994 = vshll.u32 %v933, 16
        %v996 = vrot.slane %v994, 5
        %v997 = vsel %vm983, %v992, %v996
        %v998 = vshrl.u32 %v933, 16
        %v1000 = vrot.slane %v998, 4
        %v1001 = vor.u32 %v1000, %v996
        %v1002 = vrot.slane %v1001, 4
        %v1004 = vshll.u32 %v965, 16
        %v1006 = vrot.slane %v1004, 5
        %v1007 = vsel %vm983, %v1002, %v1006
        %v1009 = vshrl.u32 %v934, 16
        %v1011 = vrot.slane %v1009, 4
        %v1012 = vshll.u32 %v934, 16
        %v1014 = vrot.slane %v1012, 5
        %v1015 = vor.u32 %v1011, %v1014
        %v1016 = vrot.slane %v1015, 4
        %v1018 = vshll.u32 %v935, 16
        %v1020 = vrot.slane %v1018, 5
        %v1021 = vsel %vm983, %v1016, %v1020
        %v1022 = vshrl.u32 %v935, 16
        %v1024 = vrot.slane %v1022, 4
        %v1025 = vor.u32 %v1024, %v1020
        %v1026 = vrot.slane %v1025, 4
        %v1028 = vshll.u32 %v966, 16
        %v1030 = vrot.slane %v1028, 5
        %v1031 = vsel %vm983, %v1026, %v1030
        %v1033 = vshrl.u32 %v936, 16
        %v1035 = vrot.slane %v1033, 4
        %v1036 = vshll.u32 %v936, 16
        %v1038 = vrot.slane %v1036, 5
        %v1039 = vor.u32 %v1035, %v1038
        %v1040 = vrot.slane %v1039, 4
        %v1042 = vshll.u32 %v937, 16
        %v1044 = vrot.slane %v1042, 5
        %v1045 = vsel %vm983, %v1040, %v1044
        %v1046 = vshrl.u32 %v937, 16
        %v1048 = vrot.slane %v1046, 4
        %v1049 = vor.u32 %v1048, %v1044
        %v1050 = vrot.slane %v1049, 4
        %v1052 = vshll.u32 %v967, 16
        %v1054 = vrot.slane %v1052, 5
        %v1055 = vsel %vm983, %v1050, %v1054
        %v1057 = vshrl.u32 %v938, 16
        %v1059 = vrot.slane %v1057, 4
        %v1060 = vshll.u32 %v938, 16
        %v1062 = vrot.slane %v1060, 5
        %v1063 = vor.u32 %v1059, %v1062
        %v1064 = vrot.slane %v1063, 4
        %v1066 = vshll.u32 %v939, 16
        %v1068 = vrot.slane %v1066, 5
        %v1069 = vsel %vm983, %v1064, %v1068
        %v1070 = vshrl.u32 %v939, 16
        %v1072 = vrot.slane %v1070, 4
        %v1073 = vor.u32 %v1072, %v1068
        %v1074 = vrot.slane %v1073, 4
        %v1076 = vshll.u32 %v968, 16
        %v1078 = vrot.slane %v1076, 5
        %v1079 = vsel %vm983, %v1074, %v1078
        %v1081 = vshrl.u32 %v940, 16
        %v1083 = vrot.slane %v1081, 4
        %v1084 = vshll.u32 %v940, 16
        %v1086 = vrot.slane %v1084, 5
        %v1087 = vor.u32 %v1083, %v1086
        %v1088 = vrot.slane %v1087, 4
        %v1090 = vshll.u32 %v941, 16
        %v1092 = vrot.slane %v1090, 5
        %v1093 = vsel %vm983, %v1088, %v1092
        %v1094 = vshrl.u32 %v941, 16
        %v1096 = vrot.slane %v1094, 4
        %v1097 = vor.u32 %v1096, %v1092
        %v1098 = vrot.slane %v1097, 4
        %v1100 = vshll.u32 %v969, 16
        %v1102 = vrot.slane %v1100, 5
        %v1103 = vsel %vm983, %v1098, %v1102
        %v1105 = vshrl.u32 %v942, 16
        %v1107 = vrot.slane %v1105, 4
        %v1108 = vshll.u32 %v942, 16
        %v1110 = vrot.slane %v1108, 5
        %v1111 = vor.u32 %v1107, %v1110
        %v1112 = vrot.slane %v1111, 4
        %v1114 = vshll.u32 %v943, 16
        %v1116 = vrot.slane %v1114, 5
        %v1117 = vsel %vm983, %v1112, %v1116
        %v1118 = vshrl.u32 %v943, 16
        %v1120 = vrot.slane %v1118, 4
        %v1121 = vor.u32 %v1120, %v1116
        %v1122 = vrot.slane %v1121, 4
        %v1124 = vshll.u32 %v970, 16
        %v1126 = vrot.slane %v1124, 5
        %v1127 = vsel %vm983, %v1122, %v1126
        %v1129 = vshrl.u32 %v944, 16
        %v1131 = vrot.slane %v1129, 4
        %v1132 = vshll.u32 %v944, 16
        %v1134 = vrot.slane %v1132, 5
        %v1135 = vor.u32 %v1131, %v1134
        %v1136 = vrot.slane %v1135, 4
        %v1138 = vshll.u32 %v945, 16
        %v1140 = vrot.slane %v1138, 5
        %v1141 = vsel %vm983, %v1136, %v1140
        %v1142 = vshrl.u32 %v945, 16
        %v1144 = vrot.slane %v1142, 4
        %v1145 = vor.u32 %v1144, %v1140
        %v1146 = vrot.slane %v1145, 4
        %v1148 = vshll.u32 %v971, 16
        %v1150 = vrot.slane %v1148, 5
        %v1151 = vsel %vm983, %v1146, %v1150
        %v1153 = vshrl.u32 %v946, 16
        %v1155 = vrot.slane %v1153, 4
        %v1156 = vshll.u32 %v946, 16
        %v1158 = vrot.slane %v1156, 5
        %v1159 = vor.u32 %v1155, %v1158
        %v1160 = vrot.slane %v1159, 4
        %v1162 = vshll.u32 %v947, 16
        %v1164 = vrot.slane %v1162, 5
        %v1165 = vsel %vm983, %v1160, %v1164
        %v1166 = vshrl.u32 %v947, 16
        %v1168 = vrot.slane %v1166, 4
        %v1169 = vor.u32 %v1168, %v1164
        %v1170 = vrot.slane %v1169, 4
        %v1172 = vshll.u32 %v972, 16
        %v1174 = vrot.slane %v1172, 5
        %v1175 = vsel %vm983, %v1170, %v1174
        %v1177 = vshrl.u32 %v948, 16
        %v1179 = vrot.slane %v1177, 4
        %v1180 = vshll.u32 %v948, 16
        %v1182 = vrot.slane %v1180, 5
        %v1183 = vor.u32 %v1179, %v1182
        %v1184 = vrot.slane %v1183, 4
        %v1186 = vshll.u32 %v949, 16
        %v1188 = vrot.slane %v1186, 5
        %v1189 = vsel %vm983, %v1184, %v1188
        %v1190 = vshrl.u32 %v949, 16
        %v1192 = vrot.slane %v1190, 4
        %v1193 = vor.u32 %v1192, %v1188
        %v1194 = vrot.slane %v1193, 4
        %v1196 = vshll.u32 %v973, 16
        %v1198 = vrot.slane %v1196, 5
        %v1199 = vsel %vm983, %v1194, %v1198
        %v1201 = vshrl.u32 %v950, 16
        %v1203 = vrot.slane %v1201, 4
        %v1204 = vshll.u32 %v950, 16
        %v1206 = vrot.slane %v1204, 5
        %v1207 = vor.u32 %v1203, %v1206
        %v1208 = vrot.slane %v1207, 4
        %v1210 = vshll.u32 %v951, 16
        %v1212 = vrot.slane %v1210, 5
        %v1213 = vsel %vm983, %v1208, %v1212
        %v1214 = vshrl.u32 %v951, 16
        %v1216 = vrot.slane %v1214, 4
        %v1217 = vor.u32 %v1216, %v1212
        %v1218 = vrot.slane %v1217, 4
        %v1220 = vshll.u32 %v974, 16
        %v1222 = vrot.slane %v1220, 5
        %v1223 = vsel %vm983, %v1218, %v1222
        %v1225 = vshrl.u32 %v952, 16
        %v1227 = vrot.slane %v1225, 4
        %v1228 = vshll.u32 %v952, 16
        %v1230 = vrot.slane %v1228, 5
        %v1231 = vor.u32 %v1227, %v1230
        %v1232 = vrot.slane %v1231, 4
        %v1234 = vshll.u32 %v953, 16
        %v1236 = vrot.slane %v1234, 5
        %v1237 = vsel %vm983, %v1232, %v1236
        %v1238 = vshrl.u32 %v953, 16
        %v1240 = vrot.slane %v1238, 4
        %v1241 = vor.u32 %v1240, %v1236
        %v1242 = vrot.slane %v1241, 4
        %v1244 = vshll.u32 %v975, 16
        %v1246 = vrot.slane %v1244, 5
        %v1247 = vsel %vm983, %v1242, %v1246
        %v1249 = vshrl.u32 %v954, 16
        %v1251 = vrot.slane %v1249, 4
        %v1252 = vshll.u32 %v954, 16
        %v1254 = vrot.slane %v1252, 5
        %v1255 = vor.u32 %v1251, %v1254
        %v1256 = vrot.slane %v1255, 4
        %v1258 = vshll.u32 %v955, 16
        %v1260 = vrot.slane %v1258, 5
        %v1261 = vsel %vm983, %v1256, %v1260
        %v1262 = vshrl.u32 %v955, 16
        %v1264 = vrot.slane %v1262, 4
        %v1265 = vor.u32 %v1264, %v1260
        %v1266 = vrot.slane %v1265, 4
        %v1268 = vshll.u32 %v976, 16
        %v1270 = vrot.slane %v1268, 5
        %v1271 = vsel %vm983, %v1266, %v1270
        %v1273 = vshrl.u32 %v956, 16
        %v1275 = vrot.slane %v1273, 4
        %v1276 = vshll.u32 %v956, 16
        %v1278 = vrot.slane %v1276, 5
        %v1279 = vor.u32 %v1275, %v1278
        %v1280 = vrot.slane %v1279, 4
        %v1282 = vshll.u32 %v957, 16
        %v1284 = vrot.slane %v1282, 5
        %v1285 = vsel %vm983, %v1280, %v1284
        %v1286 = vshrl.u32 %v957, 16
        %v1288 = vrot.slane %v1286, 4
        %v1289 = vor.u32 %v1288, %v1284
        %v1290 = vrot.slane %v1289, 4
        %v1292 = vshll.u32 %v977, 16
        %v1294 = vrot.slane %v1292, 5
        %v1295 = vsel %vm983, %v1290, %v1294
        %v1297 = vshrl.u32 %v958, 16
        %v1299 = vrot.slane %v1297, 4
        %v1300 = vshll.u32 %v958, 16
        %v1302 = vrot.slane %v1300, 5
        %v1303 = vor.u32 %v1299, %v1302
        %v1304 = vrot.slane %v1303, 4
        %v1306 = vshll.u32 %v959, 16
        %v1308 = vrot.slane %v1306, 5
        %v1309 = vsel %vm983, %v1304, %v1308
        %v1310 = vshrl.u32 %v959, 16
        %v1312 = vrot.slane %v1310, 4
        %v1313 = vor.u32 %v1312, %v1308
        %v1314 = vrot.slane %v1313, 4
        %v1316 = vshll.u32 %v978, 16
        %v1318 = vrot.slane %v1316, 5
        %v1319 = vsel %vm983, %v1314, %v1318
        %v1321 = vshrl.u32 %v960, 16
        %v1323 = vrot.slane %v1321, 4
        %v1324 = vshll.u32 %v960, 16
        %v1326 = vrot.slane %v1324, 5
        %v1327 = vor.u32 %v1323, %v1326
        %v1328 = vrot.slane %v1327, 4
        %v1330 = vshll.u32 %v961, 16
        %v1332 = vrot.slane %v1330, 5
        %v1333 = vsel %vm983, %v1328, %v1332
        %v1334 = vshrl.u32 %v961, 16
        %v1336 = vrot.slane %v1334, 4
        %v1337 = vor.u32 %v1336, %v1332
        %v1338 = vrot.slane %v1337, 4
        %v1340 = vshll.u32 %v979, 16
        %v1342 = vrot.slane %v1340, 5
        %v1343 = vsel %vm983, %v1338, %v1342
        %v1345 = vshrl.u32 %v962, 16
        %v1347 = vrot.slane %v1345, 4
        %v1348 = vshll.u32 %v962, 16
        %v1350 = vrot.slane %v1348, 5
        %v1351 = vor.u32 %v1347, %v1350
        %v1352 = vrot.slane %v1351, 4
        %v1354 = vshll.u32 %v963, 16
        %v1356 = vrot.slane %v1354, 5
        %v1357 = vsel %vm983, %v1352, %v1356
        %v1358 = vshrl.u32 %v963, 16
        %v1360 = vrot.slane %v1358, 4
        %v1361 = vor.u32 %v1360, %v1356
        %v1362 = vrot.slane %v1361, 4
        %v1364 = vshll.u32 %v980, 16
        %v1366 = vrot.slane %v1364, 5
        %v1367 = vsel %vm983, %v1362, %v1366
        %s1368 = scalar_lea.vmem %s1, 2
        %v1369 = vld [vmem:[%s1368] sm:$0x3]
        %v1370 = vunpack.c.l.b16 %v997
        %v1371 = vunpack.c.l.b16 %v1007
        %v1372 = vunpack.c.l.b16 %v1021
        %v1373 = vunpack.c.l.b16 %v1031
        %v1374 = vunpack.c.l.b16 %v1045
        %v1375 = vunpack.c.l.b16 %v1055
        %v1376 = vunpack.c.l.b16 %v1069
        %v1377 = vunpack.c.l.b16 %v1079
        %v1378 = vunpack.c.l.b16 %v1093
        %v1379 = vunpack.c.l.b16 %v1103
        %v1380 = vunpack.c.l.b16 %v1117
        %v1381 = vunpack.c.l.b16 %v1127
        %v1382 = vunpack.c.l.b16 %v1141
        %v1383 = vunpack.c.l.b16 %v1151
        %v1384 = vunpack.c.l.b16 %v1165
        %v1385 = vunpack.c.l.b16 %v1175
        %v1386 = vunpack.c.l.b16 %v1189
        %v1387 = vunpack.c.l.b16 %v1199
        %v1388 = vunpack.c.l.b16 %v1213
        %v1389 = vunpack.c.l.b16 %v1223
        %v1390 = vunpack.c.l.b16 %v1237
        %v1391 = vunpack.c.l.b16 %v1247
        %v1392 = vunpack.c.l.b16 %v1261
        %v1393 = vunpack.c.l.b16 %v1271
        %v1394 = vunpack.c.l.b16 %v1285
        %v1395 = vunpack.c.l.b16 %v1295
        %v1396 = vunpack.c.l.b16 %v1309
        %v1397 = vunpack.c.l.b16 %v1319
        %v1398 = vunpack.c.l.b16 %v1333
        %v1399 = vunpack.c.l.b16 %v1343
        %v1400 = vunpack.c.l.b16 %v1357
        %v1401 = vunpack.c.l.b16 %v1367
        %v1402 = vpack.c.b16 %v1371, %v1370
        %v1403 = vpack.c.b16 %v1373, %v1372
        %v1404 = vpack.c.b16 %v1375, %v1374
        %v1405 = vpack.c.b16 %v1377, %v1376
        %v1406 = vpack.c.b16 %v1379, %v1378
        %v1407 = vpack.c.b16 %v1381, %v1380
        %v1408 = vpack.c.b16 %v1383, %v1382
        %v1409 = vpack.c.b16 %v1385, %v1384
        %v1410 = vpack.c.b16 %v1387, %v1386
        %v1411 = vpack.c.b16 %v1389, %v1388
        %v1412 = vpack.c.b16 %v1391, %v1390
        %v1413 = vpack.c.b16 %v1393, %v1392
        %v1414 = vpack.c.b16 %v1395, %v1394
        %v1415 = vpack.c.b16 %v1397, %v1396
        %v1416 = vpack.c.b16 %v1399, %v1398
        %v1417 = vpack.c.b16 %v1401, %v1400
        %vm1418 = vcmask 31744
        %v1420 = vsel %vm1418, %v1402, 0
        %v1423 = vsel %vm1418, %v1403, 0
        %v1426 = vsel %vm1418, %v1404, 0
        %v1429 = vsel %vm1418, %v1405, 0
        %v1432 = vsel %vm1418, %v1406, 0
        %v1435 = vsel %vm1418, %v1407, 0
        %v1438 = vsel %vm1418, %v1408, 0
        %v1441 = vsel %vm1418, %v1409, 0
        %v1444 = vsel %vm1418, %v1410, 0
        %v1447 = vsel %vm1418, %v1411, 0
        %v1450 = vsel %vm1418, %v1412, 0
        %v1453 = vsel %vm1418, %v1413, 0
        %v1456 = vsel %vm1418, %v1414, 0
        %v1459 = vsel %vm1418, %v1415, 0
        %v1462 = vsel %vm1418, %v1416, 0
        %v1465 = vsel %vm1418, %v1417, 0
        %vm1467 = vcmask 1041408
        %v1469 = vsel %vm1467, %v1369, 0
        %1471 = vmatprep.subr.bf16.mxu0 0
        %1472 = vmatpush1.bf16.msra.mxu0 0
        %1473 = vmatprep.subr.bf16.mxu0 0
        %1474 = vmatpush1.bf16.msra.mxu0 0
        %1475 = vmatprep.subr.bf16.mxu0 0
        %1476 = vmatpush1.bf16.msra.mxu0 0
        %1477 = vmatprep.subr.bf16.mxu0 0
        %1478 = vmatpush1.bf16.msra.mxu0 0
        %1479 = vmatprep.subr.bf16.mxu0 0
        %1480 = vmatpush1.bf16.msra.mxu0 0
        %1481 = vmatprep.subr.bf16.mxu0 0
        %1482 = vmatpush1.bf16.msra.mxu0 0
        %1483 = vmatprep.subr.bf16.mxu0 0
        %1484 = vmatpush1.bf16.msra.mxu0 0
        %1485 = vmatprep.subr.bf16.mxu0 0
        %1486 = vmatpush1.bf16.msra.mxu0 %v1469
        %1487 = vmatprep.subr.bf16.mxu0 0
        %1488 = vmatpush2.bf16.msra.mxu0 0
        %1489 = vmatprep.subr.bf16.mxu0 0
        %1490 = vmatpush2.bf16.msra.mxu0 0
        %1491 = vmatprep.subr.bf16.mxu0 0
        %1492 = vmatpush2.bf16.msra.mxu0 0
        %1493 = vmatprep.subr.bf16.mxu0 0
        %1494 = vmatpush2.bf16.msra.mxu0 0
        %1495 = vmatprep.subr.bf16.mxu0 0
        %1496 = vmatpush2.bf16.msra.mxu0 0
        %1497 = vmatprep.subr.bf16.mxu0 0
        %1498 = vmatpush2.bf16.msra.mxu0 0
        %1499 = vmatprep.subr.bf16.mxu0 0
        %1500 = vmatpush2.bf16.msra.mxu0 0
        %1501 = vmatprep.subr.bf16.mxu0 0
        %1502 = vmatpush2.bf16.msra.mxu0 0
        %1503 = vmatprep.mubr.bf16.mxu0 0
        %1504 = vmatmul.mubr.bf16.gmra.mxu0 %v1420
        %v1505 = vpop.f32.mrf.mxu0
        %v1506 = vadd.f32 0.0, %v1505
        %v1507 = vpop.f32.mrf.mxu0
        %v1508 = vpop.f32.mrf.mxu0
        %v1509 = vadd.f32 0.0, %v1508
        %v1510 = vpop.f32.mrf.mxu0
        %1511 = vmatprep.mubr.bf16.mxu0 0
        %1512 = vmatmul.mubr.bf16.gmra.mxu0 %v1423
        %v1513 = vpop.f32.mrf.mxu0
        %v1514 = vadd.f32 0.0, %v1513
        %v1515 = vpop.f32.mrf.mxu0
        %v1516 = vpop.f32.mrf.mxu0
        %v1517 = vadd.f32 0.0, %v1516
        %v1518 = vpop.f32.mrf.mxu0
        %1519 = vmatprep.mubr.bf16.mxu0 0
        %1520 = vmatmul.mubr.bf16.gmra.mxu0 %v1426
        %v1521 = vpop.f32.mrf.mxu0
        %v1522 = vadd.f32 0.0, %v1521
        %v1523 = vpop.f32.mrf.mxu0
        %v1524 = vpop.f32.mrf.mxu0
        %v1525 = vadd.f32 0.0, %v1524
        %v1526 = vpop.f32.mrf.mxu0
        %1527 = vmatprep.mubr.bf16.mxu0 0
        %1528 = vmatmul.mubr.bf16.gmra.mxu0 %v1429
        %v1529 = vpop.f32.mrf.mxu0
        %v1530 = vadd.f32 0.0, %v1529
        %v1531 = vpop.f32.mrf.mxu0
        %v1532 = vpop.f32.mrf.mxu0
        %v1533 = vadd.f32 0.0, %v1532
        %v1534 = vpop.f32.mrf.mxu0
        %1535 = vmatprep.mubr.bf16.mxu0 0
        %1536 = vmatmul.mubr.bf16.gmra.mxu0 %v1432
        %v1537 = vpop.f32.mrf.mxu0
        %v1538 = vadd.f32 0.0, %v1537
        %v1539 = vpop.f32.mrf.mxu0
        %v1540 = vpop.f32.mrf.mxu0
        %v1541 = vadd.f32 0.0, %v1540
        %v1542 = vpop.f32.mrf.mxu0
        %1543 = vmatprep.mubr.bf16.mxu0 0
        %1544 = vmatmul.mubr.bf16.gmra.mxu0 %v1435
        %v1545 = vpop.f32.mrf.mxu0
        %v1546 = vadd.f32 0.0, %v1545
        %v1547 = vpop.f32.mrf.mxu0
        %v1548 = vpop.f32.mrf.mxu0
        %v1549 = vadd.f32 0.0, %v1548
        %v1550 = vpop.f32.mrf.mxu0
        %1551 = vmatprep.mubr.bf16.mxu0 0
        %1552 = vmatmul.mubr.bf16.gmra.mxu0 %v1438
        %v1553 = vpop.f32.mrf.mxu0
        %v1554 = vadd.f32 0.0, %v1553
        %v1555 = vpop.f32.mrf.mxu0
        %v1556 = vpop.f32.mrf.mxu0
        %v1557 = vadd.f32 0.0, %v1556
        %v1558 = vpop.f32.mrf.mxu0
        %1559 = vmatprep.mubr.bf16.mxu0 0
        %1560 = vmatmul.mubr.bf16.gmra.mxu0 %v1441
        %v1561 = vpop.f32.mrf.mxu0
        %v1562 = vadd.f32 0.0, %v1561
        %v1563 = vpop.f32.mrf.mxu0
        %v1564 = vpop.f32.mrf.mxu0
        %v1565 = vadd.f32 0.0, %v1564
        %v1566 = vpop.f32.mrf.mxu0
        %1567 = vmatprep.mubr.bf16.mxu0 0
        %1568 = vmatmul.mubr.bf16.gmra.mxu0 %v1444
        %v1569 = vpop.f32.mrf.mxu0
        %v1570 = vadd.f32 0.0, %v1569
        %v1571 = vpop.f32.mrf.mxu0
        %v1572 = vpop.f32.mrf.mxu0
        %v1573 = vadd.f32 0.0, %v1572
        %v1574 = vpop.f32.mrf.mxu0
        %1575 = vmatprep.mubr.bf16.mxu0 0
        %1576 = vmatmul.mubr.bf16.gmra.mxu0 %v1447
        %v1577 = vpop.f32.mrf.mxu0
        %v1578 = vadd.f32 0.0, %v1577
        %v1579 = vpop.f32.mrf.mxu0
        %v1580 = vpop.f32.mrf.mxu0
        %v1581 = vadd.f32 0.0, %v1580
        %v1582 = vpop.f32.mrf.mxu0
        %1583 = vmatprep.mubr.bf16.mxu0 0
        %1584 = vmatmul.mubr.bf16.gmra.mxu0 %v1450
        %v1585 = vpop.f32.mrf.mxu0
        %v1586 = vadd.f32 0.0, %v1585
        %v1587 = vpop.f32.mrf.mxu0
        %v1588 = vpop.f32.mrf.mxu0
        %v1589 = vadd.f32 0.0, %v1588
        %v1590 = vpop.f32.mrf.mxu0
        %1591 = vmatprep.mubr.bf16.mxu0 0
        %1592 = vmatmul.mubr.bf16.gmra.mxu0 %v1453
        %v1593 = vpop.f32.mrf.mxu0
        %v1594 = vadd.f32 0.0, %v1593
        %v1595 = vpop.f32.mrf.mxu0
        %v1596 = vpop.f32.mrf.mxu0
        %v1597 = vadd.f32 0.0, %v1596
        %v1598 = vpop.f32.mrf.mxu0
        %1599 = vmatprep.mubr.bf16.mxu0 0
        %1600 = vmatmul.mubr.bf16.gmra.mxu0 %v1456
        %v1601 = vpop.f32.mrf.mxu0
        %v1602 = vadd.f32 0.0, %v1601
        %v1603 = vpop.f32.mrf.mxu0
        %v1604 = vpop.f32.mrf.mxu0
        %v1605 = vadd.f32 0.0, %v1604
        %v1606 = vpop.f32.mrf.mxu0
        %1607 = vmatprep.mubr.bf16.mxu0 0
        %1608 = vmatmul.mubr.bf16.gmra.mxu0 %v1459
        %v1609 = vpop.f32.mrf.mxu0
        %v1610 = vadd.f32 0.0, %v1609
        %v1611 = vpop.f32.mrf.mxu0
        %v1612 = vpop.f32.mrf.mxu0
        %v1613 = vadd.f32 0.0, %v1612
        %v1614 = vpop.f32.mrf.mxu0
        %1615 = vmatprep.mubr.bf16.mxu0 0
        %1616 = vmatmul.mubr.bf16.gmra.mxu0 %v1462
        %v1617 = vpop.f32.mrf.mxu0
        %v1618 = vadd.f32 0.0, %v1617
        %v1619 = vpop.f32.mrf.mxu0
        %v1620 = vpop.f32.mrf.mxu0
        %v1621 = vadd.f32 0.0, %v1620
        %v1622 = vpop.f32.mrf.mxu0
        %1623 = vmatprep.mubr.bf16.mxu0 0
        %1624 = vmatmul.mubr.bf16.gmra.mxu0 %v1465
        %v1625 = vpop.f32.mrf.mxu0
        %v1626 = vadd.f32 0.0, %v1625
        %v1627 = vpop.f32.mrf.mxu0
        %v1628 = vpop.f32.mrf.mxu0
        %v1629 = vadd.f32 0.0, %v1628
        %v1630 = vpop.f32.mrf.mxu0
        %1631 = vdwg.mxu0
        %v1664 = vunpack.c.l.b16 %v932
        %v1665 = vunpack.c.l.b16 %v933
        %v1666 = vunpack.c.l.b16 %v934
        %v1667 = vunpack.c.l.b16 %v935
        %v1668 = vunpack.c.l.b16 %v936
        %v1669 = vunpack.c.l.b16 %v937
        %v1670 = vunpack.c.l.b16 %v938
        %v1671 = vunpack.c.l.b16 %v939
        %v1672 = vunpack.c.l.b16 %v940
        %v1673 = vunpack.c.l.b16 %v941
        %v1674 = vunpack.c.l.b16 %v942
        %v1675 = vunpack.c.l.b16 %v943
        %v1676 = vunpack.c.l.b16 %v944
        %v1677 = vunpack.c.l.b16 %v945
        %v1678 = vunpack.c.l.b16 %v946
        %v1679 = vunpack.c.l.b16 %v947
        %v1680 = vunpack.c.l.b16 %v948
        %v1681 = vunpack.c.l.b16 %v949
        %v1682 = vunpack.c.l.b16 %v950
        %v1683 = vunpack.c.l.b16 %v951
        %v1684 = vunpack.c.l.b16 %v952
        %v1685 = vunpack.c.l.b16 %v953
        %v1686 = vunpack.c.l.b16 %v954
        %v1687 = vunpack.c.l.b16 %v955
        %v1688 = vunpack.c.l.b16 %v956
        %v1689 = vunpack.c.l.b16 %v957
        %v1690 = vunpack.c.l.b16 %v958
        %v1691 = vunpack.c.l.b16 %v959
        %v1692 = vunpack.c.l.b16 %v960
        %v1693 = vunpack.c.l.b16 %v961
        %v1694 = vunpack.c.l.b16 %v962
        %v1695 = vunpack.c.l.b16 %v963
        %v1696 = vpack.c.b16 %v1665, %v1664
        %v1697 = vpack.c.b16 %v1667, %v1666
        %v1698 = vpack.c.b16 %v1669, %v1668
        %v1699 = vpack.c.b16 %v1671, %v1670
        %v1700 = vpack.c.b16 %v1673, %v1672
        %v1701 = vpack.c.b16 %v1675, %v1674
        %v1702 = vpack.c.b16 %v1677, %v1676
        %v1703 = vpack.c.b16 %v1679, %v1678
        %v1704 = vpack.c.b16 %v1681, %v1680
        %v1705 = vpack.c.b16 %v1683, %v1682
        %v1706 = vpack.c.b16 %v1685, %v1684
        %v1707 = vpack.c.b16 %v1687, %v1686
        %v1708 = vpack.c.b16 %v1689, %v1688
        %v1709 = vpack.c.b16 %v1691, %v1690
        %v1710 = vpack.c.b16 %v1693, %v1692
        %v1711 = vpack.c.b16 %v1695, %v1694
        %v1713 = vsel %vm1418, %v1696, 0
        %v1716 = vsel %vm1418, %v1697, 0
        %v1719 = vsel %vm1418, %v1698, 0
        %v1722 = vsel %vm1418, %v1699, 0
        %v1725 = vsel %vm1418, %v1700, 0
        %v1728 = vsel %vm1418, %v1701, 0
        %v1731 = vsel %vm1418, %v1702, 0
        %v1734 = vsel %vm1418, %v1703, 0
        %v1737 = vsel %vm1418, %v1704, 0
        %v1740 = vsel %vm1418, %v1705, 0
        %v1743 = vsel %vm1418, %v1706, 0
        %v1746 = vsel %vm1418, %v1707, 0
        %v1749 = vsel %vm1418, %v1708, 0
        %v1752 = vsel %vm1418, %v1709, 0
        %v1755 = vsel %vm1418, %v1710, 0
        %v1758 = vsel %vm1418, %v1711, 0
        %v1761 = vsel %vm1467, %v964, 0
        %1763 = vmatprep.subr.bf16.mxu0 0
        %1764 = vmatpush1.bf16.msra.mxu0 0
        %1765 = vmatprep.subr.bf16.mxu0 0
        %1766 = vmatpush1.bf16.msra.mxu0 0
        %1767 = vmatprep.subr.bf16.mxu0 0
        %1768 = vmatpush1.bf16.msra.mxu0 0
        %1769 = vmatprep.subr.bf16.mxu0 0
        %1770 = vmatpush1.bf16.msra.mxu0 0
        %1771 = vmatprep.subr.bf16.mxu0 0
        %1772 = vmatpush1.bf16.msra.mxu0 0
        %1773 = vmatprep.subr.bf16.mxu0 0
        %1774 = vmatpush1.bf16.msra.mxu0 0
        %1775 = vmatprep.subr.bf16.mxu0 0
        %1776 = vmatpush1.bf16.msra.mxu0 0
        %1777 = vmatprep.subr.bf16.mxu0 0
        %1778 = vmatpush1.bf16.msra.mxu0 %v1761
        %1779 = vmatprep.subr.bf16.mxu0 0
        %1780 = vmatpush2.bf16.msra.mxu0 0
        %1781 = vmatprep.subr.bf16.mxu0 0
        %1782 = vmatpush2.bf16.msra.mxu0 0
        %1783 = vmatprep.subr.bf16.mxu0 0
        %1784 = vmatpush2.bf16.msra.mxu0 0
        %1785 = vmatprep.subr.bf16.mxu0 0
        %1786 = vmatpush2.bf16.msra.mxu0 0
        %1787 = vmatprep.subr.bf16.mxu0 0
        %1788 = vmatpush2.bf16.msra.mxu0 0
        %1789 = vmatprep.subr.bf16.mxu0 0
        %1790 = vmatpush2.bf16.msra.mxu0 0
        %1791 = vmatprep.subr.bf16.mxu0 0
        %1792 = vmatpush2.bf16.msra.mxu0 0
        %1793 = vmatprep.subr.bf16.mxu0 0
        %1794 = vmatpush2.bf16.msra.mxu0 0
        %1795 = vmatprep.mubr.bf16.mxu0 0
        %1796 = vmatmul.mubr.bf16.gmra.mxu0 %v1713
        %v1797 = vpop.f32.mrf.mxu0
        %v1798 = vadd.f32 %v1506, %v1797
        %v1799 = vpop.f32.mrf.mxu0
        %v1800 = vpop.f32.mrf.mxu0
        %v1801 = vadd.f32 %v1509, %v1800
        %v1802 = vpop.f32.mrf.mxu0
        %1803 = vmatprep.mubr.bf16.mxu0 0
        %1804 = vmatmul.mubr.bf16.gmra.mxu0 %v1716
        %v1805 = vpop.f32.mrf.mxu0
        %v1806 = vadd.f32 %v1514, %v1805
        %v1807 = vpop.f32.mrf.mxu0
        %v1808 = vpop.f32.mrf.mxu0
        %v1809 = vadd.f32 %v1517, %v1808
        %v1810 = vpop.f32.mrf.mxu0
        %1811 = vmatprep.mubr.bf16.mxu0 0
        %1812 = vmatmul.mubr.bf16.gmra.mxu0 %v1719
        %v1813 = vpop.f32.mrf.mxu0
        %v1814 = vadd.f32 %v1522, %v1813
        %v1815 = vpop.f32.mrf.mxu0
        %v1816 = vpop.f32.mrf.mxu0
        %v1817 = vadd.f32 %v1525, %v1816
        %v1818 = vpop.f32.mrf.mxu0
        %1819 = vmatprep.mubr.bf16.mxu0 0
        %1820 = vmatmul.mubr.bf16.gmra.mxu0 %v1722
        %v1821 = vpop.f32.mrf.mxu0
        %v1822 = vadd.f32 %v1530, %v1821
        %v1823 = vpop.f32.mrf.mxu0
        %v1824 = vpop.f32.mrf.mxu0
        %v1825 = vadd.f32 %v1533, %v1824
        %v1826 = vpop.f32.mrf.mxu0
        %1827 = vmatprep.mubr.bf16.mxu0 0
        %1828 = vmatmul.mubr.bf16.gmra.mxu0 %v1725
        %v1829 = vpop.f32.mrf.mxu0
        %v1830 = vadd.f32 %v1538, %v1829
        %v1831 = vpop.f32.mrf.mxu0
        %v1832 = vpop.f32.mrf.mxu0
        %v1833 = vadd.f32 %v1541, %v1832
        %v1834 = vpop.f32.mrf.mxu0
        %1835 = vmatprep.mubr.bf16.mxu0 0
        %1836 = vmatmul.mubr.bf16.gmra.mxu0 %v1728
        %v1837 = vpop.f32.mrf.mxu0
        %v1838 = vadd.f32 %v1546, %v1837
        %v1839 = vpop.f32.mrf.mxu0
        %v1840 = vpop.f32.mrf.mxu0
        %v1841 = vadd.f32 %v1549, %v1840
        %v1842 = vpop.f32.mrf.mxu0
        %1843 = vmatprep.mubr.bf16.mxu0 0
        %1844 = vmatmul.mubr.bf16.gmra.mxu0 %v1731
        %v1845 = vpop.f32.mrf.mxu0
        %v1846 = vadd.f32 %v1554, %v1845
        %v1847 = vpop.f32.mrf.mxu0
        %v1848 = vpop.f32.mrf.mxu0
        %v1849 = vadd.f32 %v1557, %v1848
        %v1850 = vpop.f32.mrf.mxu0
        %1851 = vmatprep.mubr.bf16.mxu0 0
        %1852 = vmatmul.mubr.bf16.gmra.mxu0 %v1734
        %v1853 = vpop.f32.mrf.mxu0
        %v1854 = vadd.f32 %v1562, %v1853
        %v1855 = vpop.f32.mrf.mxu0
        %v1856 = vpop.f32.mrf.mxu0
        %v1857 = vadd.f32 %v1565, %v1856
        %v1858 = vpop.f32.mrf.mxu0
        %1859 = vmatprep.mubr.bf16.mxu0 0
        %1860 = vmatmul.mubr.bf16.gmra.mxu0 %v1737
        %v1861 = vpop.f32.mrf.mxu0
        %v1862 = vadd.f32 %v1570, %v1861
        %v1863 = vpop.f32.mrf.mxu0
        %v1864 = vpop.f32.mrf.mxu0
        %v1865 = vadd.f32 %v1573, %v1864
        %v1866 = vpop.f32.mrf.mxu0
        %1867 = vmatprep.mubr.bf16.mxu0 0
        %1868 = vmatmul.mubr.bf16.gmra.mxu0 %v1740
        %v1869 = vpop.f32.mrf.mxu0
        %v1870 = vadd.f32 %v1578, %v1869
        %v1871 = vpop.f32.mrf.mxu0
        %v1872 = vpop.f32.mrf.mxu0
        %v1873 = vadd.f32 %v1581, %v1872
        %v1874 = vpop.f32.mrf.mxu0
        %1875 = vmatprep.mubr.bf16.mxu0 0
        %1876 = vmatmul.mubr.bf16.gmra.mxu0 %v1743
        %v1877 = vpop.f32.mrf.mxu0
        %v1878 = vadd.f32 %v1586, %v1877
        %v1879 = vpop.f32.mrf.mxu0
        %v1880 = vpop.f32.mrf.mxu0
        %v1881 = vadd.f32 %v1589, %v1880
        %v1882 = vpop.f32.mrf.mxu0
        %1883 = vmatprep.mubr.bf16.mxu0 0
        %1884 = vmatmul.mubr.bf16.gmra.mxu0 %v1746
        %v1885 = vpop.f32.mrf.mxu0
        %v1886 = vadd.f32 %v1594, %v1885
        %v1887 = vpop.f32.mrf.mxu0
        %v1888 = vpop.f32.mrf.mxu0
        %v1889 = vadd.f32 %v1597, %v1888
        %v1890 = vpop.f32.mrf.mxu0
        %1891 = vmatprep.mubr.bf16.mxu0 0
        %1892 = vmatmul.mubr.bf16.gmra.mxu0 %v1749
        %v1893 = vpop.f32.mrf.mxu0
        %v1894 = vadd.f32 %v1602, %v1893
        %v1895 = vpop.f32.mrf.mxu0
        %v1896 = vpop.f32.mrf.mxu0
        %v1897 = vadd.f32 %v1605, %v1896
        %v1898 = vpop.f32.mrf.mxu0
        %1899 = vmatprep.mubr.bf16.mxu0 0
        %1900 = vmatmul.mubr.bf16.gmra.mxu0 %v1752
        %v1901 = vpop.f32.mrf.mxu0
        %v1902 = vadd.f32 %v1610, %v1901
        %v1903 = vpop.f32.mrf.mxu0
        %v1904 = vpop.f32.mrf.mxu0
        %v1905 = vadd.f32 %v1613, %v1904
        %v1906 = vpop.f32.mrf.mxu0
        %1907 = vmatprep.mubr.bf16.mxu0 0
        %1908 = vmatmul.mubr.bf16.gmra.mxu0 %v1755
        %v1909 = vpop.f32.mrf.mxu0
        %v1910 = vadd.f32 %v1618, %v1909
        %v1911 = vpop.f32.mrf.mxu0
        %v1912 = vpop.f32.mrf.mxu0
        %v1913 = vadd.f32 %v1621, %v1912
        %v1914 = vpop.f32.mrf.mxu0
        %1915 = vmatprep.mubr.bf16.mxu0 0
        %1916 = vmatmul.mubr.bf16.gmra.mxu0 %v1758
        %v1917 = vpop.f32.mrf.mxu0
        %v1918 = vadd.f32 %v1626, %v1917
        %v1919 = vpop.f32.mrf.mxu0
        %v1920 = vpop.f32.mrf.mxu0
        %v1921 = vadd.f32 %v1629, %v1920
        %v1922 = vpop.f32.mrf.mxu0
        %1923 = vdwg.mxu0
        %v1924 = vld [vmem:[#allocation2] sm:$0xe]
        %v1925 = vld [vmem:[#allocation2 + $0xc] sm:$0xe]
        %v1926 = vld [vmem:[#allocation2 + $0x18] sm:$0xe]
        %v1927 = vld [vmem:[#allocation2 + $0x24] sm:$0xe]
        %v1928 = vld [vmem:[#allocation2 + $0x30] sm:$0xe]
        %v1929 = vld [vmem:[#allocation2 + $0x3c] sm:$0xe]
        %v1930 = vld [vmem:[#allocation2 + $0x48] sm:$0xe]
        %v1931 = vld [vmem:[#allocation2 + $0x54] sm:$0xe]
        %v1932 = vld [vmem:[#allocation2 + $0x60] sm:$0xe]
        %v1933 = vld [vmem:[#allocation2 + $0x6c] sm:$0xe]
        %v1934 = vld [vmem:[#allocation2 + $0x78] sm:$0xe]
        %v1935 = vld [vmem:[#allocation2 + $0x84] sm:$0xe]
        %v1936 = vld [vmem:[#allocation2 + $0x90] sm:$0xe]
        %v1937 = vld [vmem:[#allocation2 + $0x9c] sm:$0xe]
        %v1938 = vld [vmem:[#allocation2 + $0xa8] sm:$0xe]
        %v1939 = vld [vmem:[#allocation2 + $0xb4] sm:$0xe]
        %vm1972 = vcmask 1042432
        %vm1973 = vcmask 1046532
        %vm1974 = vmor %vm1972, %vm1973
        %v1975 = vrot.slane %v1924, 5
        %v1976 = vrot.slane %v1975, 4
        %v1977 = vrot.slane %v933, 5
        %v1978 = vsel %vm1974, %v1976, %v1977
        %v1979 = vrot.slane %v1977, 4
        %v1980 = vrot.slane %v965, 5
        %v1981 = vsel %vm1974, %v1979, %v1980
        %v1982 = vrot.slane %v1925, 5
        %v1983 = vrot.slane %v1982, 4
        %v1984 = vrot.slane %v935, 5
        %v1985 = vsel %vm1974, %v1983, %v1984
        %v1986 = vrot.slane %v1984, 4
        %v1987 = vrot.slane %v966, 5
        %v1988 = vsel %vm1974, %v1986, %v1987
        %v1989 = vrot.slane %v1926, 5
        %v1990 = vrot.slane %v1989, 4
        %v1991 = vrot.slane %v937, 5
        %v1992 = vsel %vm1974, %v1990, %v1991
        %v1993 = vrot.slane %v1991, 4
        %v1994 = vrot.slane %v967, 5
        %v1995 = vsel %vm1974, %v1993, %v1994
        %v1996 = vrot.slane %v1927, 5
        %v1997 = vrot.slane %v1996, 4
        %v1998 = vrot.slane %v939, 5
        %v1999 = vsel %vm1974, %v1997, %v1998
        %v2000 = vrot.slane %v1998, 4
        %v2001 = vrot.slane %v968, 5
        %v2002 = vsel %vm1974, %v2000, %v2001
        %v2003 = vrot.slane %v1928, 5
        %v2004 = vrot.slane %v2003, 4
        %v2005 = vrot.slane %v941, 5
        %v2006 = vsel %vm1974, %v2004, %v2005
        %v2007 = vrot.slane %v2005, 4
        %v2008 = vrot.slane %v969, 5
        %v2009 = vsel %vm1974, %v2007, %v2008
        %v2010 = vrot.slane %v1929, 5
        %v2011 = vrot.slane %v2010, 4
        %v2012 = vrot.slane %v943, 5
        %v2013 = vsel %vm1974, %v2011, %v2012
        %v2014 = vrot.slane %v2012, 4
        %v2015 = vrot.slane %v970, 5
        %v2016 = vsel %vm1974, %v2014, %v2015
        %v2017 = vrot.slane %v1930, 5
        %v2018 = vrot.slane %v2017, 4
        %v2019 = vrot.slane %v945, 5
        %v2020 = vsel %vm1974, %v2018, %v2019
        %v2021 = vrot.slane %v2019, 4
        %v2022 = vrot.slane %v971, 5
        %v2023 = vsel %vm1974, %v2021, %v2022
        %v2024 = vrot.slane %v1931, 5
        %v2025 = vrot.slane %v2024, 4
        %v2026 = vrot.slane %v947, 5
        %v2027 = vsel %vm1974, %v2025, %v2026
        %v2028 = vrot.slane %v2026, 4
        %v2029 = vrot.slane %v972, 5
        %v2030 = vsel %vm1974, %v2028, %v2029
        %v2031 = vrot.slane %v1932, 5
        %v2032 = vrot.slane %v2031, 4
        %v2033 = vrot.slane %v949, 5
        %v2034 = vsel %vm1974, %v2032, %v2033
        %v2035 = vrot.slane %v2033, 4
        %v2036 = vrot.slane %v973, 5
        %v2037 = vsel %vm1974, %v2035, %v2036
        %v2038 = vrot.slane %v1933, 5
        %v2039 = vrot.slane %v2038, 4
        %v2040 = vrot.slane %v951, 5
        %v2041 = vsel %vm1974, %v2039, %v2040
        %v2042 = vrot.slane %v2040, 4
        %v2043 = vrot.slane %v974, 5
        %v2044 = vsel %vm1974, %v2042, %v2043
        %v2045 = vrot.slane %v1934, 5
        %v2046 = vrot.slane %v2045, 4
        %v2047 = vrot.slane %v953, 5
        %v2048 = vsel %vm1974, %v2046, %v2047
        %v2049 = vrot.slane %v2047, 4
        %v2050 = vrot.slane %v975, 5
        %v2051 = vsel %vm1974, %v2049, %v2050
        %v2052 = vrot.slane %v1935, 5
        %v2053 = vrot.slane %v2052, 4
        %v2054 = vrot.slane %v955, 5
        %v2055 = vsel %vm1974, %v2053, %v2054
        %v2056 = vrot.slane %v2054, 4
        %v2057 = vrot.slane %v976, 5
        %v2058 = vsel %vm1974, %v2056, %v2057
        %v2059 = vrot.slane %v1936, 5
        %v2060 = vrot.slane %v2059, 4
        %v2061 = vrot.slane %v957, 5
        %v2062 = vsel %vm1974, %v2060, %v2061
        %v2063 = vrot.slane %v2061, 4
        %v2064 = vrot.slane %v977, 5
        %v2065 = vsel %vm1974, %v2063, %v2064
        %v2066 = vrot.slane %v1937, 5
        %v2067 = vrot.slane %v2066, 4
        %v2068 = vrot.slane %v959, 5
        %v2069 = vsel %vm1974, %v2067, %v2068
        %v2070 = vrot.slane %v2068, 4
        %v2071 = vrot.slane %v978, 5
        %v2072 = vsel %vm1974, %v2070, %v2071
        %v2073 = vrot.slane %v1938, 5
        %v2074 = vrot.slane %v2073, 4
        %v2075 = vrot.slane %v961, 5
        %v2076 = vsel %vm1974, %v2074, %v2075
        %v2077 = vrot.slane %v2075, 4
        %v2078 = vrot.slane %v979, 5
        %v2079 = vsel %vm1974, %v2077, %v2078
        %v2080 = vrot.slane %v1939, 5
        %v2081 = vrot.slane %v2080, 4
        %v2082 = vrot.slane %v963, 5
        %v2083 = vsel %vm1974, %v2081, %v2082
        %v2084 = vrot.slane %v2082, 4
        %v2085 = vrot.slane %v980, 5
        %v2086 = vsel %vm1974, %v2084, %v2085
        %s2087 = scalar_lea.vmem %s1, 4
        %v2088 = vld [vmem:[%s2087] sm:$0x3]
        %v2089 = vunpack.c.l.b16 %v1978
        %v2090 = vunpack.c.l.b16 %v1981
        %v2091 = vunpack.c.l.b16 %v1985
        %v2092 = vunpack.c.l.b16 %v1988
        %v2093 = vunpack.c.l.b16 %v1992
        %v2094 = vunpack.c.l.b16 %v1995
        %v2095 = vunpack.c.l.b16 %v1999
        %v2096 = vunpack.c.l.b16 %v2002
        %v2097 = vunpack.c.l.b16 %v2006
        %v2098 = vunpack.c.l.b16 %v2009
        %v2099 = vunpack.c.l.b16 %v2013
        %v2100 = vunpack.c.l.b16 %v2016
        %v2101 = vunpack.c.l.b16 %v2020
        %v2102 = vunpack.c.l.b16 %v2023
        %v2103 = vunpack.c.l.b16 %v2027
        %v2104 = vunpack.c.l.b16 %v2030
        %v2105 = vunpack.c.l.b16 %v2034
        %v2106 = vunpack.c.l.b16 %v2037
        %v2107 = vunpack.c.l.b16 %v2041
        %v2108 = vunpack.c.l.b16 %v2044
        %v2109 = vunpack.c.l.b16 %v2048
        %v2110 = vunpack.c.l.b16 %v2051
        %v2111 = vunpack.c.l.b16 %v2055
        %v2112 = vunpack.c.l.b16 %v2058
        %v2113 = vunpack.c.l.b16 %v2062
        %v2114 = vunpack.c.l.b16 %v2065
        %v2115 = vunpack.c.l.b16 %v2069
        %v2116 = vunpack.c.l.b16 %v2072
        %v2117 = vunpack.c.l.b16 %v2076
        %v2118 = vunpack.c.l.b16 %v2079
        %v2119 = vunpack.c.l.b16 %v2083
        %v2120 = vunpack.c.l.b16 %v2086
        %v2121 = vpack.c.b16 %v2090, %v2089
        %v2122 = vpack.c.b16 %v2092, %v2091
        %v2123 = vpack.c.b16 %v2094, %v2093
        %v2124 = vpack.c.b16 %v2096, %v2095
        %v2125 = vpack.c.b16 %v2098, %v2097
        %v2126 = vpack.c.b16 %v2100, %v2099
        %v2127 = vpack.c.b16 %v2102, %v2101
        %v2128 = vpack.c.b16 %v2104, %v2103
        %v2129 = vpack.c.b16 %v2106, %v2105
        %v2130 = vpack.c.b16 %v2108, %v2107
        %v2131 = vpack.c.b16 %v2110, %v2109
        %v2132 = vpack.c.b16 %v2112, %v2111
        %v2133 = vpack.c.b16 %v2114, %v2113
        %v2134 = vpack.c.b16 %v2116, %v2115
        %v2135 = vpack.c.b16 %v2118, %v2117
        %v2136 = vpack.c.b16 %v2120, %v2119
        %v2138 = vsel %vm1418, %v2121, 0
        %v2141 = vsel %vm1418, %v2122, 0
        %v2144 = vsel %vm1418, %v2123, 0
        %v2147 = vsel %vm1418, %v2124, 0
        %v2150 = vsel %vm1418, %v2125, 0
        %v2153 = vsel %vm1418, %v2126, 0
        %v2156 = vsel %vm1418, %v2127, 0
        %v2159 = vsel %vm1418, %v2128, 0
        %v2162 = vsel %vm1418, %v2129, 0
        %v2165 = vsel %vm1418, %v2130, 0
        %v2168 = vsel %vm1418, %v2131, 0
        %v2171 = vsel %vm1418, %v2132, 0
        %v2174 = vsel %vm1418, %v2133, 0
        %v2177 = vsel %vm1418, %v2134, 0
        %v2180 = vsel %vm1418, %v2135, 0
        %v2183 = vsel %vm1418, %v2136, 0
        %v2186 = vsel %vm1467, %v2088, 0
        %2188 = vmatprep.subr.bf16.mxu0 0
        %2189 = vmatpush1.bf16.msra.mxu0 0
        %2190 = vmatprep.subr.bf16.mxu0 0
        %2191 = vmatpush1.bf16.msra.mxu0 0
        %2192 = vmatprep.subr.bf16.mxu0 0
        %2193 = vmatpush1.bf16.msra.mxu0 0
        %2194 = vmatprep.subr.bf16.mxu0 0
        %2195 = vmatpush1.bf16.msra.mxu0 0
        %2196 = vmatprep.subr.bf16.mxu0 0
        %2197 = vmatpush1.bf16.msra.mxu0 0
        %2198 = vmatprep.subr.bf16.mxu0 0
        %2199 = vmatpush1.bf16.msra.mxu0 0
        %2200 = vmatprep.subr.bf16.mxu0 0
        %2201 = vmatpush1.bf16.msra.mxu0 0
        %2202 = vmatprep.subr.bf16.mxu0 0
        %2203 = vmatpush1.bf16.msra.mxu0 %v2186
        %2204 = vmatprep.subr.bf16.mxu0 0
        %2205 = vmatpush2.bf16.msra.mxu0 0
        %2206 = vmatprep.subr.bf16.mxu0 0
        %2207 = vmatpush2.bf16.msra.mxu0 0
        %2208 = vmatprep.subr.bf16.mxu0 0
        %2209 = vmatpush2.bf16.msra.mxu0 0
        %2210 = vmatprep.subr.bf16.mxu0 0
        %2211 = vmatpush2.bf16.msra.mxu0 0
        %2212 = vmatprep.subr.bf16.mxu0 0
        %2213 = vmatpush2.bf16.msra.mxu0 0
        %2214 = vmatprep.subr.bf16.mxu0 0
        %2215 = vmatpush2.bf16.msra.mxu0 0
        %2216 = vmatprep.subr.bf16.mxu0 0
        %2217 = vmatpush2.bf16.msra.mxu0 0
        %2218 = vmatprep.subr.bf16.mxu0 0
        %2219 = vmatpush2.bf16.msra.mxu0 0
        %2220 = vmatprep.mubr.bf16.mxu0 0
        %2221 = vmatmul.mubr.bf16.gmra.mxu0 %v2138
        %v2222 = vpop.f32.mrf.mxu0
        %v2223 = vadd.f32 0.0, %v2222
        %v2224 = vpop.f32.mrf.mxu0
        %v2225 = vpop.f32.mrf.mxu0
        %v2226 = vadd.f32 0.0, %v2225
        %v2227 = vpop.f32.mrf.mxu0
        %2228 = vmatprep.mubr.bf16.mxu0 0
        %2229 = vmatmul.mubr.bf16.gmra.mxu0 %v2141
        %v2230 = vpop.f32.mrf.mxu0
        %v2231 = vadd.f32 0.0, %v2230
        %v2232 = vpop.f32.mrf.mxu0
        %v2233 = vpop.f32.mrf.mxu0
        %v2234 = vadd.f32 0.0, %v2233
        %v2235 = vpop.f32.mrf.mxu0
        %2236 = vmatprep.mubr.bf16.mxu0 0
        %2237 = vmatmul.mubr.bf16.gmra.mxu0 %v2144
        %v2238 = vpop.f32.mrf.mxu0
        %v2239 = vadd.f32 0.0, %v2238
        %v2240 = vpop.f32.mrf.mxu0
        %v2241 = vpop.f32.mrf.mxu0
        %v2242 = vadd.f32 0.0, %v2241
        %v2243 = vpop.f32.mrf.mxu0
        %2244 = vmatprep.mubr.bf16.mxu0 0
        %2245 = vmatmul.mubr.bf16.gmra.mxu0 %v2147
        %v2246 = vpop.f32.mrf.mxu0
        %v2247 = vadd.f32 0.0, %v2246
        %v2248 = vpop.f32.mrf.mxu0
        %v2249 = vpop.f32.mrf.mxu0
        %v2250 = vadd.f32 0.0, %v2249
        %v2251 = vpop.f32.mrf.mxu0
        %2252 = vmatprep.mubr.bf16.mxu0 0
        %2253 = vmatmul.mubr.bf16.gmra.mxu0 %v2150
        %v2254 = vpop.f32.mrf.mxu0
        %v2255 = vadd.f32 0.0, %v2254
        %v2256 = vpop.f32.mrf.mxu0
        %v2257 = vpop.f32.mrf.mxu0
        %v2258 = vadd.f32 0.0, %v2257
        %v2259 = vpop.f32.mrf.mxu0
        %2260 = vmatprep.mubr.bf16.mxu0 0
        %2261 = vmatmul.mubr.bf16.gmra.mxu0 %v2153
        %v2262 = vpop.f32.mrf.mxu0
        %v2263 = vadd.f32 0.0, %v2262
        %v2264 = vpop.f32.mrf.mxu0
        %v2265 = vpop.f32.mrf.mxu0
        %v2266 = vadd.f32 0.0, %v2265
        %v2267 = vpop.f32.mrf.mxu0
        %2268 = vmatprep.mubr.bf16.mxu0 0
        %2269 = vmatmul.mubr.bf16.gmra.mxu0 %v2156
        %v2270 = vpop.f32.mrf.mxu0
        %v2271 = vadd.f32 0.0, %v2270
        %v2272 = vpop.f32.mrf.mxu0
        %v2273 = vpop.f32.mrf.mxu0
        %v2274 = vadd.f32 0.0, %v2273
        %v2275 = vpop.f32.mrf.mxu0
        %2276 = vmatprep.mubr.bf16.mxu0 0
        %2277 = vmatmul.mubr.bf16.gmra.mxu0 %v2159
        %v2278 = vpop.f32.mrf.mxu0
        %v2279 = vadd.f32 0.0, %v2278
        %v2280 = vpop.f32.mrf.mxu0
        %v2281 = vpop.f32.mrf.mxu0
        %v2282 = vadd.f32 0.0, %v2281
        %v2283 = vpop.f32.mrf.mxu0
        %2284 = vmatprep.mubr.bf16.mxu0 0
        %2285 = vmatmul.mubr.bf16.gmra.mxu0 %v2162
        %v2286 = vpop.f32.mrf.mxu0
        %v2287 = vadd.f32 0.0, %v2286
        %v2288 = vpop.f32.mrf.mxu0
        %v2289 = vpop.f32.mrf.mxu0
        %v2290 = vadd.f32 0.0, %v2289
        %v2291 = vpop.f32.mrf.mxu0
        %2292 = vmatprep.mubr.bf16.mxu0 0
        %2293 = vmatmul.mubr.bf16.gmra.mxu0 %v2165
        %v2294 = vpop.f32.mrf.mxu0
        %v2295 = vadd.f32 0.0, %v2294
        %v2296 = vpop.f32.mrf.mxu0
        %v2297 = vpop.f32.mrf.mxu0
        %v2298 = vadd.f32 0.0, %v2297
        %v2299 = vpop.f32.mrf.mxu0
        %2300 = vmatprep.mubr.bf16.mxu0 0
        %2301 = vmatmul.mubr.bf16.gmra.mxu0 %v2168
        %v2302 = vpop.f32.mrf.mxu0
        %v2303 = vadd.f32 0.0, %v2302
        %v2304 = vpop.f32.mrf.mxu0
        %v2305 = vpop.f32.mrf.mxu0
        %v2306 = vadd.f32 0.0, %v2305
        %v2307 = vpop.f32.mrf.mxu0
        %2308 = vmatprep.mubr.bf16.mxu0 0
        %2309 = vmatmul.mubr.bf16.gmra.mxu0 %v2171
        %v2310 = vpop.f32.mrf.mxu0
        %v2311 = vadd.f32 0.0, %v2310
        %v2312 = vpop.f32.mrf.mxu0
        %v2313 = vpop.f32.mrf.mxu0
        %v2314 = vadd.f32 0.0, %v2313
        %v2315 = vpop.f32.mrf.mxu0
        %2316 = vmatprep.mubr.bf16.mxu0 0
        %2317 = vmatmul.mubr.bf16.gmra.mxu0 %v2174
        %v2318 = vpop.f32.mrf.mxu0
        %v2319 = vadd.f32 0.0, %v2318
        %v2320 = vpop.f32.mrf.mxu0
        %v2321 = vpop.f32.mrf.mxu0
        %v2322 = vadd.f32 0.0, %v2321
        %v2323 = vpop.f32.mrf.mxu0
        %2324 = vmatprep.mubr.bf16.mxu0 0
        %2325 = vmatmul.mubr.bf16.gmra.mxu0 %v2177
        %v2326 = vpop.f32.mrf.mxu0
        %v2327 = vadd.f32 0.0, %v2326
        %v2328 = vpop.f32.mrf.mxu0
        %v2329 = vpop.f32.mrf.mxu0
        %v2330 = vadd.f32 0.0, %v2329
        %v2331 = vpop.f32.mrf.mxu0
        %2332 = vmatprep.mubr.bf16.mxu0 0
        %2333 = vmatmul.mubr.bf16.gmra.mxu0 %v2180
        %v2334 = vpop.f32.mrf.mxu0
        %v2335 = vadd.f32 0.0, %v2334
        %v2336 = vpop.f32.mrf.mxu0
        %v2337 = vpop.f32.mrf.mxu0
        %v2338 = vadd.f32 0.0, %v2337
        %v2339 = vpop.f32.mrf.mxu0
        %2340 = vmatprep.mubr.bf16.mxu0 0
        %2341 = vmatmul.mubr.bf16.gmra.mxu0 %v2183
        %v2342 = vpop.f32.mrf.mxu0
        %v2343 = vadd.f32 0.0, %v2342
        %v2344 = vpop.f32.mrf.mxu0
        %v2345 = vpop.f32.mrf.mxu0
        %v2346 = vadd.f32 0.0, %v2345
        %v2347 = vpop.f32.mrf.mxu0
        %2348 = vdwg.mxu0
        %v2349 = vadd.f32 %v1798, %v2223
        %v2350 = vadd.f32 %v1801, %v2226
        %v2351 = vadd.f32 %v1806, %v2231
        %v2352 = vadd.f32 %v1809, %v2234
        %v2353 = vadd.f32 %v1814, %v2239
        %v2354 = vadd.f32 %v1817, %v2242
        %v2355 = vadd.f32 %v1822, %v2247
        %v2356 = vadd.f32 %v1825, %v2250
        %v2357 = vadd.f32 %v1830, %v2255
        %v2358 = vadd.f32 %v1833, %v2258
        %v2359 = vadd.f32 %v1838, %v2263
        %v2360 = vadd.f32 %v1841, %v2266
        %v2361 = vadd.f32 %v1846, %v2271
        %v2362 = vadd.f32 %v1849, %v2274
        %v2363 = vadd.f32 %v1854, %v2279
        %v2364 = vadd.f32 %v1857, %v2282
        %v2365 = vadd.f32 %v1862, %v2287
        %v2366 = vadd.f32 %v1865, %v2290
        %v2367 = vadd.f32 %v1870, %v2295
        %v2368 = vadd.f32 %v1873, %v2298
        %v2369 = vadd.f32 %v1878, %v2303
        %v2370 = vadd.f32 %v1881, %v2306
        %v2371 = vadd.f32 %v1886, %v2311
        %v2372 = vadd.f32 %v1889, %v2314
        %v2373 = vadd.f32 %v1894, %v2319
        %v2374 = vadd.f32 %v1897, %v2322
        %v2375 = vadd.f32 %v1902, %v2327
        %v2376 = vadd.f32 %v1905, %v2330
        %v2377 = vadd.f32 %v1910, %v2335
        %v2378 = vadd.f32 %v1913, %v2338
        %v2379 = vadd.f32 %v1918, %v2343
        %v2380 = vadd.f32 %v1921, %v2346
        %v2381 = vld [vmem:[%s817] sm:$0xf]
        %v2382 = vld [vmem:[%s817 + $0x4] sm:$0xf]
        %v2383 = vld [vmem:[%s817 + $0xc] sm:$0xf]
        %v2384 = vld [vmem:[%s817 + $0x10] sm:$0xf]
        %v2385 = vld [vmem:[%s817 + $0x18] sm:$0xf]
        %v2386 = vld [vmem:[%s817 + $0x1c] sm:$0xf]
        %v2387 = vld [vmem:[%s817 + $0x24] sm:$0xf]
        %v2388 = vld [vmem:[%s817 + $0x28] sm:$0xf]
        %v2389 = vld [vmem:[%s817 + $0x30] sm:$0xf]
        %v2390 = vld [vmem:[%s817 + $0x34] sm:$0xf]
        %v2391 = vld [vmem:[%s817 + $0x3c] sm:$0xf]
        %v2392 = vld [vmem:[%s817 + $0x40] sm:$0xf]
        %v2393 = vld [vmem:[%s817 + $0x48] sm:$0xf]
        %v2394 = vld [vmem:[%s817 + $0x4c] sm:$0xf]
        %v2395 = vld [vmem:[%s817 + $0x54] sm:$0xf]
        %v2396 = vld [vmem:[%s817 + $0x58] sm:$0xf]
        %v2397 = vld [vmem:[%s817 + $0x60] sm:$0xf]
        %v2398 = vld [vmem:[%s817 + $0x64] sm:$0xf]
        %v2399 = vld [vmem:[%s817 + $0x6c] sm:$0xf]
        %v2400 = vld [vmem:[%s817 + $0x70] sm:$0xf]
        %v2401 = vld [vmem:[%s817 + $0x78] sm:$0xf]
        %v2402 = vld [vmem:[%s817 + $0x7c] sm:$0xf]
        %v2403 = vld [vmem:[%s817 + $0x84] sm:$0xf]
        %v2404 = vld [vmem:[%s817 + $0x88] sm:$0xf]
        %v2405 = vld [vmem:[%s817 + $0x90] sm:$0xf]
        %v2406 = vld [vmem:[%s817 + $0x94] sm:$0xf]
        %v2407 = vld [vmem:[%s817 + $0x9c] sm:$0xf]
        %v2408 = vld [vmem:[%s817 + $0xa0] sm:$0xf]
        %v2409 = vld [vmem:[%s817 + $0xa8] sm:$0xf]
        %v2410 = vld [vmem:[%s817 + $0xac] sm:$0xf]
        %v2411 = vld [vmem:[%s817 + $0xb4] sm:$0xf]
        %v2412 = vld [vmem:[%s817 + $0xb8] sm:$0xf]
        %s2413 = scalar_lea.vmem %s1, 6
        %v2414 = vld [vmem:[%s2413] sm:$0x3]
        %v2447 = vunpack.c.l.b16 %v2381
        %v2448 = vunpack.c.l.b16 %v2382
        %v2449 = vunpack.c.l.b16 %v2383
        %v2450 = vunpack.c.l.b16 %v2384
        %v2451 = vunpack.c.l.b16 %v2385
        %v2452 = vunpack.c.l.b16 %v2386
        %v2453 = vunpack.c.l.b16 %v2387
        %v2454 = vunpack.c.l.b16 %v2388
        %v2455 = vunpack.c.l.b16 %v2389
        %v2456 = vunpack.c.l.b16 %v2390
        %v2457 = vunpack.c.l.b16 %v2391
        %v2458 = vunpack.c.l.b16 %v2392
        %v2459 = vunpack.c.l.b16 %v2393
        %v2460 = vunpack.c.l.b16 %v2394
        %v2461 = vunpack.c.l.b16 %v2395
        %v2462 = vunpack.c.l.b16 %v2396
        %v2463 = vunpack.c.l.b16 %v2397
        %v2464 = vunpack.c.l.b16 %v2398
        %v2465 = vunpack.c.l.b16 %v2399
        %v2466 = vunpack.c.l.b16 %v2400
        %v2467 = vunpack.c.l.b16 %v2401
        %v2468 = vunpack.c.l.b16 %v2402
        %v2469 = vunpack.c.l.b16 %v2403
        %v2470 = vunpack.c.l.b16 %v2404
        %v2471 = vunpack.c.l.b16 %v2405
        %v2472 = vunpack.c.l.b16 %v2406
        %v2473 = vunpack.c.l.b16 %v2407
        %v2474 = vunpack.c.l.b16 %v2408
        %v2475 = vunpack.c.l.b16 %v2409
        %v2476 = vunpack.c.l.b16 %v2410
        %v2477 = vunpack.c.l.b16 %v2411
        %v2478 = vunpack.c.l.b16 %v2412
        %v2479 = vpack.c.b16 %v2448, %v2447
        %v2480 = vpack.c.b16 %v2450, %v2449
        %v2481 = vpack.c.b16 %v2452, %v2451
        %v2482 = vpack.c.b16 %v2454, %v2453
        %v2483 = vpack.c.b16 %v2456, %v2455
        %v2484 = vpack.c.b16 %v2458, %v2457
        %v2485 = vpack.c.b16 %v2460, %v2459
        %v2486 = vpack.c.b16 %v2462, %v2461
        %v2487 = vpack.c.b16 %v2464, %v2463
        %v2488 = vpack.c.b16 %v2466, %v2465
        %v2489 = vpack.c.b16 %v2468, %v2467
        %v2490 = vpack.c.b16 %v2470, %v2469
        %v2491 = vpack.c.b16 %v2472, %v2471
        %v2492 = vpack.c.b16 %v2474, %v2473
        %v2493 = vpack.c.b16 %v2476, %v2475
        %v2494 = vpack.c.b16 %v2478, %v2477
        %v2496 = vsel %vm1418, %v2479, 0
        %v2499 = vsel %vm1418, %v2480, 0
        %v2502 = vsel %vm1418, %v2481, 0
        %v2505 = vsel %vm1418, %v2482, 0
        %v2508 = vsel %vm1418, %v2483, 0
        %v2511 = vsel %vm1418, %v2484, 0
        %v2514 = vsel %vm1418, %v2485, 0
        %v2517 = vsel %vm1418, %v2486, 0
        %v2520 = vsel %vm1418, %v2487, 0
        %v2523 = vsel %vm1418, %v2488, 0
        %v2526 = vsel %vm1418, %v2489, 0
        %v2529 = vsel %vm1418, %v2490, 0
        %v2532 = vsel %vm1418, %v2491, 0
        %v2535 = vsel %vm1418, %v2492, 0
        %v2538 = vsel %vm1418, %v2493, 0
        %v2541 = vsel %vm1418, %v2494, 0
        %v2544 = vsel %vm1467, %v2414, 0
        %2546 = vmatprep.subr.bf16.mxu0 0
        %2547 = vmatpush1.bf16.msra.mxu0 0
        %2548 = vmatprep.subr.bf16.mxu0 0
        %2549 = vmatpush1.bf16.msra.mxu0 0
        %2550 = vmatprep.subr.bf16.mxu0 0
        %2551 = vmatpush1.bf16.msra.mxu0 0
        %2552 = vmatprep.subr.bf16.mxu0 0
        %2553 = vmatpush1.bf16.msra.mxu0 0
        %2554 = vmatprep.subr.bf16.mxu0 0
        %2555 = vmatpush1.bf16.msra.mxu0 0
        %2556 = vmatprep.subr.bf16.mxu0 0
        %2557 = vmatpush1.bf16.msra.mxu0 0
        %2558 = vmatprep.subr.bf16.mxu0 0
        %2559 = vmatpush1.bf16.msra.mxu0 0
        %2560 = vmatprep.subr.bf16.mxu0 0
        %2561 = vmatpush1.bf16.msra.mxu0 %v2544
        %2562 = vmatprep.subr.bf16.mxu0 0
        %2563 = vmatpush2.bf16.msra.mxu0 0
        %2564 = vmatprep.subr.bf16.mxu0 0
        %2565 = vmatpush2.bf16.msra.mxu0 0
        %2566 = vmatprep.subr.bf16.mxu0 0
        %2567 = vmatpush2.bf16.msra.mxu0 0
        %2568 = vmatprep.subr.bf16.mxu0 0
        %2569 = vmatpush2.bf16.msra.mxu0 0
        %2570 = vmatprep.subr.bf16.mxu0 0
        %2571 = vmatpush2.bf16.msra.mxu0 0
        %2572 = vmatprep.subr.bf16.mxu0 0
        %2573 = vmatpush2.bf16.msra.mxu0 0
        %2574 = vmatprep.subr.bf16.mxu0 0
        %2575 = vmatpush2.bf16.msra.mxu0 0
        %2576 = vmatprep.subr.bf16.mxu0 0
        %2577 = vmatpush2.bf16.msra.mxu0 0
        %2578 = vmatprep.mubr.bf16.mxu0 0
        %2579 = vmatmul.mubr.bf16.gmra.mxu0 %v2496
        %v2580 = vpop.f32.mrf.mxu0
        %v2581 = vadd.f32 0.0, %v2580
        %v2582 = vpop.f32.mrf.mxu0
        %v2583 = vpop.f32.mrf.mxu0
        %v2584 = vadd.f32 0.0, %v2583
        %v2585 = vpop.f32.mrf.mxu0
        %2586 = vmatprep.mubr.bf16.mxu0 0
        %2587 = vmatmul.mubr.bf16.gmra.mxu0 %v2499
        %v2588 = vpop.f32.mrf.mxu0
        %v2589 = vadd.f32 0.0, %v2588
        %v2590 = vpop.f32.mrf.mxu0
        %v2591 = vpop.f32.mrf.mxu0
        %v2592 = vadd.f32 0.0, %v2591
        %v2593 = vpop.f32.mrf.mxu0
        %2594 = vmatprep.mubr.bf16.mxu0 0
        %2595 = vmatmul.mubr.bf16.gmra.mxu0 %v2502
        %v2596 = vpop.f32.mrf.mxu0
        %v2597 = vadd.f32 0.0, %v2596
        %v2598 = vpop.f32.mrf.mxu0
        %v2599 = vpop.f32.mrf.mxu0
        %v2600 = vadd.f32 0.0, %v2599
        %v2601 = vpop.f32.mrf.mxu0
        %2602 = vmatprep.mubr.bf16.mxu0 0
        %2603 = vmatmul.mubr.bf16.gmra.mxu0 %v2505
        %v2604 = vpop.f32.mrf.mxu0
        %v2605 = vadd.f32 0.0, %v2604
        %v2606 = vpop.f32.mrf.mxu0
        %v2607 = vpop.f32.mrf.mxu0
        %v2608 = vadd.f32 0.0, %v2607
        %v2609 = vpop.f32.mrf.mxu0
        %2610 = vmatprep.mubr.bf16.mxu0 0
        %2611 = vmatmul.mubr.bf16.gmra.mxu0 %v2508
        %v2612 = vpop.f32.mrf.mxu0
        %v2613 = vadd.f32 0.0, %v2612
        %v2614 = vpop.f32.mrf.mxu0
        %v2615 = vpop.f32.mrf.mxu0
        %v2616 = vadd.f32 0.0, %v2615
        %v2617 = vpop.f32.mrf.mxu0
        %2618 = vmatprep.mubr.bf16.mxu0 0
        %2619 = vmatmul.mubr.bf16.gmra.mxu0 %v2511
        %v2620 = vpop.f32.mrf.mxu0
        %v2621 = vadd.f32 0.0, %v2620
        %v2622 = vpop.f32.mrf.mxu0
        %v2623 = vpop.f32.mrf.mxu0
        %v2624 = vadd.f32 0.0, %v2623
        %v2625 = vpop.f32.mrf.mxu0
        %2626 = vmatprep.mubr.bf16.mxu0 0
        %2627 = vmatmul.mubr.bf16.gmra.mxu0 %v2514
        %v2628 = vpop.f32.mrf.mxu0
        %v2629 = vadd.f32 0.0, %v2628
        %v2630 = vpop.f32.mrf.mxu0
        %v2631 = vpop.f32.mrf.mxu0
        %v2632 = vadd.f32 0.0, %v2631
        %v2633 = vpop.f32.mrf.mxu0
        %2634 = vmatprep.mubr.bf16.mxu0 0
        %2635 = vmatmul.mubr.bf16.gmra.mxu0 %v2517
        %v2636 = vpop.f32.mrf.mxu0
        %v2637 = vadd.f32 0.0, %v2636
        %v2638 = vpop.f32.mrf.mxu0
        %v2639 = vpop.f32.mrf.mxu0
        %v2640 = vadd.f32 0.0, %v2639
        %v2641 = vpop.f32.mrf.mxu0
        %2642 = vmatprep.mubr.bf16.mxu0 0
        %2643 = vmatmul.mubr.bf16.gmra.mxu0 %v2520
        %v2644 = vpop.f32.mrf.mxu0
        %v2645 = vadd.f32 0.0, %v2644
        %v2646 = vpop.f32.mrf.mxu0
        %v2647 = vpop.f32.mrf.mxu0
        %v2648 = vadd.f32 0.0, %v2647
        %v2649 = vpop.f32.mrf.mxu0
        %2650 = vmatprep.mubr.bf16.mxu0 0
        %2651 = vmatmul.mubr.bf16.gmra.mxu0 %v2523
        %v2652 = vpop.f32.mrf.mxu0
        %v2653 = vadd.f32 0.0, %v2652
        %v2654 = vpop.f32.mrf.mxu0
        %v2655 = vpop.f32.mrf.mxu0
        %v2656 = vadd.f32 0.0, %v2655
        %v2657 = vpop.f32.mrf.mxu0
        %2658 = vmatprep.mubr.bf16.mxu0 0
        %2659 = vmatmul.mubr.bf16.gmra.mxu0 %v2526
        %v2660 = vpop.f32.mrf.mxu0
        %v2661 = vadd.f32 0.0, %v2660
        %v2662 = vpop.f32.mrf.mxu0
        %v2663 = vpop.f32.mrf.mxu0
        %v2664 = vadd.f32 0.0, %v2663
        %v2665 = vpop.f32.mrf.mxu0
        %2666 = vmatprep.mubr.bf16.mxu0 0
        %2667 = vmatmul.mubr.bf16.gmra.mxu0 %v2529
        %v2668 = vpop.f32.mrf.mxu0
        %v2669 = vadd.f32 0.0, %v2668
        %v2670 = vpop.f32.mrf.mxu0
        %v2671 = vpop.f32.mrf.mxu0
        %v2672 = vadd.f32 0.0, %v2671
        %v2673 = vpop.f32.mrf.mxu0
        %2674 = vmatprep.mubr.bf16.mxu0 0
        %2675 = vmatmul.mubr.bf16.gmra.mxu0 %v2532
        %v2676 = vpop.f32.mrf.mxu0
        %v2677 = vadd.f32 0.0, %v2676
        %v2678 = vpop.f32.mrf.mxu0
        %v2679 = vpop.f32.mrf.mxu0
        %v2680 = vadd.f32 0.0, %v2679
        %v2681 = vpop.f32.mrf.mxu0
        %2682 = vmatprep.mubr.bf16.mxu0 0
        %2683 = vmatmul.mubr.bf16.gmra.mxu0 %v2535
        %v2684 = vpop.f32.mrf.mxu0
        %v2685 = vadd.f32 0.0, %v2684
        %v2686 = vpop.f32.mrf.mxu0
        %v2687 = vpop.f32.mrf.mxu0
        %v2688 = vadd.f32 0.0, %v2687
        %v2689 = vpop.f32.mrf.mxu0
        %2690 = vmatprep.mubr.bf16.mxu0 0
        %2691 = vmatmul.mubr.bf16.gmra.mxu0 %v2538
        %v2692 = vpop.f32.mrf.mxu0
        %v2693 = vadd.f32 0.0, %v2692
        %v2694 = vpop.f32.mrf.mxu0
        %v2695 = vpop.f32.mrf.mxu0
        %v2696 = vadd.f32 0.0, %v2695
        %v2697 = vpop.f32.mrf.mxu0
        %2698 = vmatprep.mubr.bf16.mxu0 0
        %2699 = vmatmul.mubr.bf16.gmra.mxu0 %v2541
        %v2700 = vpop.f32.mrf.mxu0
        %v2701 = vadd.f32 0.0, %v2700
        %v2702 = vpop.f32.mrf.mxu0
        %v2703 = vpop.f32.mrf.mxu0
        %v2704 = vadd.f32 0.0, %v2703
        %v2705 = vpop.f32.mrf.mxu0
        %2706 = vdwg.mxu0
        %v2707 = vadd.f32 %v2349, %v2581
        %v2708 = vadd.f32 %v2350, %v2584
        %v2709 = vadd.f32 %v2351, %v2589
        %v2710 = vadd.f32 %v2352, %v2592
        %v2711 = vadd.f32 %v2353, %v2597
        %v2712 = vadd.f32 %v2354, %v2600
        %v2713 = vadd.f32 %v2355, %v2605
        %v2714 = vadd.f32 %v2356, %v2608
        %v2715 = vadd.f32 %v2357, %v2613
        %v2716 = vadd.f32 %v2358, %v2616
        %v2717 = vadd.f32 %v2359, %v2621
        %v2718 = vadd.f32 %v2360, %v2624
        %v2719 = vadd.f32 %v2361, %v2629
        %v2720 = vadd.f32 %v2362, %v2632
        %v2721 = vadd.f32 %v2363, %v2637
        %v2722 = vadd.f32 %v2364, %v2640
        %v2723 = vadd.f32 %v2365, %v2645
        %v2724 = vadd.f32 %v2366, %v2648
        %v2725 = vadd.f32 %v2367, %v2653
        %v2726 = vadd.f32 %v2368, %v2656
        %v2727 = vadd.f32 %v2369, %v2661
        %v2728 = vadd.f32 %v2370, %v2664
        %v2729 = vadd.f32 %v2371, %v2669
        %v2730 = vadd.f32 %v2372, %v2672
        %v2731 = vadd.f32 %v2373, %v2677
        %v2732 = vadd.f32 %v2374, %v2680
        %v2733 = vadd.f32 %v2375, %v2685
        %v2734 = vadd.f32 %v2376, %v2688
        %v2735 = vadd.f32 %v2377, %v2693
        %v2736 = vadd.f32 %v2378, %v2696
        %v2737 = vadd.f32 %v2379, %v2701
        %v2738 = vadd.f32 %v2380, %v2704
        %v2739 = vld [vmem:[%s817] sm:$0xf]
        %v2740 = vld [vmem:[%s817 + $0x4] sm:$0xf]
        %v2741 = vld [vmem:[%s817 + $0x8] sm:$0x1]
        %v2742 = vld [vmem:[%s817 + $0xc] sm:$0xf]
        %v2743 = vld [vmem:[%s817 + $0x10] sm:$0xf]
        %v2744 = vld [vmem:[%s817 + $0x14] sm:$0x1]
        %v2745 = vld [vmem:[%s817 + $0x18] sm:$0xf]
        %v2746 = vld [vmem:[%s817 + $0x1c] sm:$0xf]
        %v2747 = vld [vmem:[%s817 + $0x20] sm:$0x1]
        %v2748 = vld [vmem:[%s817 + $0x24] sm:$0xf]
        %v2749 = vld [vmem:[%s817 + $0x28] sm:$0xf]
        %v2750 = vld [vmem:[%s817 + $0x2c] sm:$0x1]
        %v2751 = vld [vmem:[%s817 + $0x30] sm:$0xf]
        %v2752 = vld [vmem:[%s817 + $0x34] sm:$0xf]
        %v2753 = vld [vmem:[%s817 + $0x38] sm:$0x1]
        %v2754 = vld [vmem:[%s817 + $0x3c] sm:$0xf]
        %v2755 = vld [vmem:[%s817 + $0x40] sm:$0xf]
        %v2756 = vld [vmem:[%s817 + $0x44] sm:$0x1]
        %v2757 = vld [vmem:[%s817 + $0x48] sm:$0xf]
        %v2758 = vld [vmem:[%s817 + $0x4c] sm:$0xf]
        %v2759 = vld [vmem:[%s817 + $0x50] sm:$0x1]
        %v2760 = vld [vmem:[%s817 + $0x54] sm:$0xf]
        %v2761 = vld [vmem:[%s817 + $0x58] sm:$0xf]
        %v2762 = vld [vmem:[%s817 + $0x5c] sm:$0x1]
        %v2763 = vld [vmem:[%s817 + $0x60] sm:$0xf]
        %v2764 = vld [vmem:[%s817 + $0x64] sm:$0xf]
        %v2765 = vld [vmem:[%s817 + $0x68] sm:$0x1]
        %v2766 = vld [vmem:[%s817 + $0x6c] sm:$0xf]
        %v2767 = vld [vmem:[%s817 + $0x70] sm:$0xf]
        %v2768 = vld [vmem:[%s817 + $0x74] sm:$0x1]
        %v2769 = vld [vmem:[%s817 + $0x78] sm:$0xf]
        %v2770 = vld [vmem:[%s817 + $0x7c] sm:$0xf]
        %v2771 = vld [vmem:[%s817 + $0x80] sm:$0x1]
        %v2772 = vld [vmem:[%s817 + $0x84] sm:$0xf]
        %v2773 = vld [vmem:[%s817 + $0x88] sm:$0xf]
        %v2774 = vld [vmem:[%s817 + $0x8c] sm:$0x1]
        %v2775 = vld [vmem:[%s817 + $0x90] sm:$0xf]
        %v2776 = vld [vmem:[%s817 + $0x94] sm:$0xf]
        %v2777 = vld [vmem:[%s817 + $0x98] sm:$0x1]
        %v2778 = vld [vmem:[%s817 + $0x9c] sm:$0xf]
        %v2779 = vld [vmem:[%s817 + $0xa0] sm:$0xf]
        %v2780 = vld [vmem:[%s817 + $0xa4] sm:$0x1]
        %v2781 = vld [vmem:[%s817 + $0xa8] sm:$0xf]
        %v2782 = vld [vmem:[%s817 + $0xac] sm:$0xf]
        %v2783 = vld [vmem:[%s817 + $0xb0] sm:$0x1]
        %v2784 = vld [vmem:[%s817 + $0xb4] sm:$0xf]
        %v2785 = vld [vmem:[%s817 + $0xb8] sm:$0xf]
        %v2786 = vld [vmem:[%s817 + $0xbc] sm:$0x1]
        %v2788 = vshrl.u32 %v2739, 16
        %v2790 = vrot.slane %v2788, 4
        %v2791 = vshll.u32 %v2739, 16
        %v2793 = vrot.slane %v2791, 5
        %v2794 = vor.u32 %v2790, %v2793
        %v2795 = vrot.slane %v2794, 4
        %v2797 = vshll.u32 %v2740, 16
        %v2799 = vrot.slane %v2797, 5
        %v2800 = vsel %vm983, %v2795, %v2799
        %v2801 = vshrl.u32 %v2740, 16
        %v2803 = vrot.slane %v2801, 4
        %v2804 = vor.u32 %v2803, %v2799
        %v2805 = vrot.slane %v2804, 4
        %v2807 = vshll.u32 %v2741, 16
        %v2809 = vrot.slane %v2807, 5
        %v2810 = vsel %vm983, %v2805, %v2809
        %v2812 = vshrl.u32 %v2742, 16
        %v2814 = vrot.slane %v2812, 4
        %v2815 = vshll.u32 %v2742, 16
        %v2817 = vrot.slane %v2815, 5
        %v2818 = vor.u32 %v2814, %v2817
        %v2819 = vrot.slane %v2818, 4
        %v2821 = vshll.u32 %v2743, 16
        %v2823 = vrot.slane %v2821, 5
        %v2824 = vsel %vm983, %v2819, %v2823
        %v2825 = vshrl.u32 %v2743, 16
        %v2827 = vrot.slane %v2825, 4
        %v2828 = vor.u32 %v2827, %v2823
        %v2829 = vrot.slane %v2828, 4
        %v2831 = vshll.u32 %v2744, 16
        %v2833 = vrot.slane %v2831, 5
        %v2834 = vsel %vm983, %v2829, %v2833
        %v2836 = vshrl.u32 %v2745, 16
        %v2838 = vrot.slane %v2836, 4
        %v2839 = vshll.u32 %v2745, 16
        %v2841 = vrot.slane %v2839, 5
        %v2842 = vor.u32 %v2838, %v2841
        %v2843 = vrot.slane %v2842, 4
        %v2845 = vshll.u32 %v2746, 16
        %v2847 = vrot.slane %v2845, 5
        %v2848 = vsel %vm983, %v2843, %v2847
        %v2849 = vshrl.u32 %v2746, 16
        %v2851 = vrot.slane %v2849, 4
        %v2852 = vor.u32 %v2851, %v2847
        %v2853 = vrot.slane %v2852, 4
        %v2855 = vshll.u32 %v2747, 16
        %v2857 = vrot.slane %v2855, 5
        %v2858 = vsel %vm983, %v2853, %v2857
        %v2860 = vshrl.u32 %v2748, 16
        %v2862 = vrot.slane %v2860, 4
        %v2863 = vshll.u32 %v2748, 16
        %v2865 = vrot.slane %v2863, 5
        %v2866 = vor.u32 %v2862, %v2865
        %v2867 = vrot.slane %v2866, 4
        %v2869 = vshll.u32 %v2749, 16
        %v2871 = vrot.slane %v2869, 5
        %v2872 = vsel %vm983, %v2867, %v2871
        %v2873 = vshrl.u32 %v2749, 16
        %v2875 = vrot.slane %v2873, 4
        %v2876 = vor.u32 %v2875, %v2871
        %v2877 = vrot.slane %v2876, 4
        %v2879 = vshll.u32 %v2750, 16
        %v2881 = vrot.slane %v2879, 5
        %v2882 = vsel %vm983, %v2877, %v2881
        %v2884 = vshrl.u32 %v2751, 16
        %v2886 = vrot.slane %v2884, 4
        %v2887 = vshll.u32 %v2751, 16
        %v2889 = vrot.slane %v2887, 5
        %v2890 = vor.u32 %v2886, %v2889
        %v2891 = vrot.slane %v2890, 4
        %v2893 = vshll.u32 %v2752, 16
        %v2895 = vrot.slane %v2893, 5
        %v2896 = vsel %vm983, %v2891, %v2895
        %v2897 = vshrl.u32 %v2752, 16
        %v2899 = vrot.slane %v2897, 4
        %v2900 = vor.u32 %v2899, %v2895
        %v2901 = vrot.slane %v2900, 4
        %v2903 = vshll.u32 %v2753, 16
        %v2905 = vrot.slane %v2903, 5
        %v2906 = vsel %vm983, %v2901, %v2905
        %v2908 = vshrl.u32 %v2754, 16
        %v2910 = vrot.slane %v2908, 4
        %v2911 = vshll.u32 %v2754, 16
        %v2913 = vrot.slane %v2911, 5
        %v2914 = vor.u32 %v2910, %v2913
        %v2915 = vrot.slane %v2914, 4
        %v2917 = vshll.u32 %v2755, 16
        %v2919 = vrot.slane %v2917, 5
        %v2920 = vsel %vm983, %v2915, %v2919
        %v2921 = vshrl.u32 %v2755, 16
        %v2923 = vrot.slane %v2921, 4
        %v2924 = vor.u32 %v2923, %v2919
        %v2925 = vrot.slane %v2924, 4
        %v2927 = vshll.u32 %v2756, 16
        %v2929 = vrot.slane %v2927, 5
        %v2930 = vsel %vm983, %v2925, %v2929
        %v2932 = vshrl.u32 %v2757, 16
        %v2934 = vrot.slane %v2932, 4
        %v2935 = vshll.u32 %v2757, 16
        %v2937 = vrot.slane %v2935, 5
        %v2938 = vor.u32 %v2934, %v2937
        %v2939 = vrot.slane %v2938, 4
        %v2941 = vshll.u32 %v2758, 16
        %v2943 = vrot.slane %v2941, 5
        %v2944 = vsel %vm983, %v2939, %v2943
        %v2945 = vshrl.u32 %v2758, 16
        %v2947 = vrot.slane %v2945, 4
        %v2948 = vor.u32 %v2947, %v2943
        %v2949 = vrot.slane %v2948, 4
        %v2951 = vshll.u32 %v2759, 16
        %v2953 = vrot.slane %v2951, 5
        %v2954 = vsel %vm983, %v2949, %v2953
        %v2956 = vshrl.u32 %v2760, 16
        %v2958 = vrot.slane %v2956, 4
        %v2959 = vshll.u32 %v2760, 16
        %v2961 = vrot.slane %v2959, 5
        %v2962 = vor.u32 %v2958, %v2961
        %v2963 = vrot.slane %v2962, 4
        %v2965 = vshll.u32 %v2761, 16
        %v2967 = vrot.slane %v2965, 5
        %v2968 = vsel %vm983, %v2963, %v2967
        %v2969 = vshrl.u32 %v2761, 16
        %v2971 = vrot.slane %v2969, 4
        %v2972 = vor.u32 %v2971, %v2967
        %v2973 = vrot.slane %v2972, 4
        %v2975 = vshll.u32 %v2762, 16
        %v2977 = vrot.slane %v2975, 5
        %v2978 = vsel %vm983, %v2973, %v2977
        %v2980 = vshrl.u32 %v2763, 16
        %v2982 = vrot.slane %v2980, 4
        %v2983 = vshll.u32 %v2763, 16
        %v2985 = vrot.slane %v2983, 5
        %v2986 = vor.u32 %v2982, %v2985
        %v2987 = vrot.slane %v2986, 4
        %v2989 = vshll.u32 %v2764, 16
        %v2991 = vrot.slane %v2989, 5
        %v2992 = vsel %vm983, %v2987, %v2991
        %v2993 = vshrl.u32 %v2764, 16
        %v2995 = vrot.slane %v2993, 4
        %v2996 = vor.u32 %v2995, %v2991
        %v2997 = vrot.slane %v2996, 4
        %v2999 = vshll.u32 %v2765, 16
        %v3001 = vrot.slane %v2999, 5
        %v3002 = vsel %vm983, %v2997, %v3001
        %v3004 = vshrl.u32 %v2766, 16
        %v3006 = vrot.slane %v3004, 4
        %v3007 = vshll.u32 %v2766, 16
        %v3009 = vrot.slane %v3007, 5
        %v3010 = vor.u32 %v3006, %v3009
        %v3011 = vrot.slane %v3010, 4
        %v3013 = vshll.u32 %v2767, 16
        %v3015 = vrot.slane %v3013, 5
        %v3016 = vsel %vm983, %v3011, %v3015
        %v3017 = vshrl.u32 %v2767, 16
        %v3019 = vrot.slane %v3017, 4
        %v3020 = vor.u32 %v3019, %v3015
        %v3021 = vrot.slane %v3020, 4
        %v3023 = vshll.u32 %v2768, 16
        %v3025 = vrot.slane %v3023, 5
        %v3026 = vsel %vm983, %v3021, %v3025
        %v3028 = vshrl.u32 %v2769, 16
        %v3030 = vrot.slane %v3028, 4
        %v3031 = vshll.u32 %v2769, 16
        %v3033 = vrot.slane %v3031, 5
        %v3034 = vor.u32 %v3030, %v3033
        %v3035 = vrot.slane %v3034, 4
        %v3037 = vshll.u32 %v2770, 16
        %v3039 = vrot.slane %v3037, 5
        %v3040 = vsel %vm983, %v3035, %v3039
        %v3041 = vshrl.u32 %v2770, 16
        %v3043 = vrot.slane %v3041, 4
        %v3044 = vor.u32 %v3043, %v3039
        %v3045 = vrot.slane %v3044, 4
        %v3047 = vshll.u32 %v2771, 16
        %v3049 = vrot.slane %v3047, 5
        %v3050 = vsel %vm983, %v3045, %v3049
        %v3052 = vshrl.u32 %v2772, 16
        %v3054 = vrot.slane %v3052, 4
        %v3055 = vshll.u32 %v2772, 16
        %v3057 = vrot.slane %v3055, 5
        %v3058 = vor.u32 %v3054, %v3057
        %v3059 = vrot.slane %v3058, 4
        %v3061 = vshll.u32 %v2773, 16
        %v3063 = vrot.slane %v3061, 5
        %v3064 = vsel %vm983, %v3059, %v3063
        %v3065 = vshrl.u32 %v2773, 16
        %v3067 = vrot.slane %v3065, 4
        %v3068 = vor.u32 %v3067, %v3063
        %v3069 = vrot.slane %v3068, 4
        %v3071 = vshll.u32 %v2774, 16
        %v3073 = vrot.slane %v3071, 5
        %v3074 = vsel %vm983, %v3069, %v3073
        %v3076 = vshrl.u32 %v2775, 16
        %v3078 = vrot.slane %v3076, 4
        %v3079 = vshll.u32 %v2775, 16
        %v3081 = vrot.slane %v3079, 5
        %v3082 = vor.u32 %v3078, %v3081
        %v3083 = vrot.slane %v3082, 4
        %v3085 = vshll.u32 %v2776, 16
        %v3087 = vrot.slane %v3085, 5
        %v3088 = vsel %vm983, %v3083, %v3087
        %v3089 = vshrl.u32 %v2776, 16
        %v3091 = vrot.slane %v3089, 4
        %v3092 = vor.u32 %v3091, %v3087
        %v3093 = vrot.slane %v3092, 4
        %v3095 = vshll.u32 %v2777, 16
        %v3097 = vrot.slane %v3095, 5
        %v3098 = vsel %vm983, %v3093, %v3097
        %v3100 = vshrl.u32 %v2778, 16
        %v3102 = vrot.slane %v3100, 4
        %v3103 = vshll.u32 %v2778, 16
        %v3105 = vrot.slane %v3103, 5
        %v3106 = vor.u32 %v3102, %v3105
        %v3107 = vrot.slane %v3106, 4
        %v3109 = vshll.u32 %v2779, 16
        %v3111 = vrot.slane %v3109, 5
        %v3112 = vsel %vm983, %v3107, %v3111
        %v3113 = vshrl.u32 %v2779, 16
        %v3115 = vrot.slane %v3113, 4
        %v3116 = vor.u32 %v3115, %v3111
        %v3117 = vrot.slane %v3116, 4
        %v3119 = vshll.u32 %v2780, 16
        %v3121 = vrot.slane %v3119, 5
        %v3122 = vsel %vm983, %v3117, %v3121
        %v3124 = vshrl.u32 %v2781, 16
        %v3126 = vrot.slane %v3124, 4
        %v3127 = vshll.u32 %v2781, 16
        %v3129 = vrot.slane %v3127, 5
        %v3130 = vor.u32 %v3126, %v3129
        %v3131 = vrot.slane %v3130, 4
        %v3133 = vshll.u32 %v2782, 16
        %v3135 = vrot.slane %v3133, 5
        %v3136 = vsel %vm983, %v3131, %v3135
        %v3137 = vshrl.u32 %v2782, 16
        %v3139 = vrot.slane %v3137, 4
        %v3140 = vor.u32 %v3139, %v3135
        %v3141 = vrot.slane %v3140, 4
        %v3143 = vshll.u32 %v2783, 16
        %v3145 = vrot.slane %v3143, 5
        %v3146 = vsel %vm983, %v3141, %v3145
        %v3148 = vshrl.u32 %v2784, 16
        %v3150 = vrot.slane %v3148, 4
        %v3151 = vshll.u32 %v2784, 16
        %v3153 = vrot.slane %v3151, 5
        %v3154 = vor.u32 %v3150, %v3153
        %v3155 = vrot.slane %v3154, 4
        %v3157 = vshll.u32 %v2785, 16
        %v3159 = vrot.slane %v3157, 5
        %v3160 = vsel %vm983, %v3155, %v3159
        %v3161 = vshrl.u32 %v2785, 16
        %v3163 = vrot.slane %v3161, 4
        %v3164 = vor.u32 %v3163, %v3159
        %v3165 = vrot.slane %v3164, 4
        %v3167 = vshll.u32 %v2786, 16
        %v3169 = vrot.slane %v3167, 5
        %v3170 = vsel %vm983, %v3165, %v3169
        %s3171 = scalar_lea.vmem %s1, 8
        %v3172 = vld [vmem:[%s3171] sm:$0x3]
        %v3173 = vunpack.c.l.b16 %v2800
        %v3174 = vunpack.c.l.b16 %v2810
        %v3175 = vunpack.c.l.b16 %v2824
        %v3176 = vunpack.c.l.b16 %v2834
        %v3177 = vunpack.c.l.b16 %v2848
        %v3178 = vunpack.c.l.b16 %v2858
        %v3179 = vunpack.c.l.b16 %v2872
        %v3180 = vunpack.c.l.b16 %v2882
        %v3181 = vunpack.c.l.b16 %v2896
        %v3182 = vunpack.c.l.b16 %v2906
        %v3183 = vunpack.c.l.b16 %v2920
        %v3184 = vunpack.c.l.b16 %v2930
        %v3185 = vunpack.c.l.b16 %v2944
        %v3186 = vunpack.c.l.b16 %v2954
        %v3187 = vunpack.c.l.b16 %v2968
        %v3188 = vunpack.c.l.b16 %v2978
        %v3189 = vunpack.c.l.b16 %v2992
        %v3190 = vunpack.c.l.b16 %v3002
        %v3191 = vunpack.c.l.b16 %v3016
        %v3192 = vunpack.c.l.b16 %v3026
        %v3193 = vunpack.c.l.b16 %v3040
        %v3194 = vunpack.c.l.b16 %v3050
        %v3195 = vunpack.c.l.b16 %v3064
        %v3196 = vunpack.c.l.b16 %v3074
        %v3197 = vunpack.c.l.b16 %v3088
        %v3198 = vunpack.c.l.b16 %v3098
        %v3199 = vunpack.c.l.b16 %v3112
        %v3200 = vunpack.c.l.b16 %v3122
        %v3201 = vunpack.c.l.b16 %v3136
        %v3202 = vunpack.c.l.b16 %v3146
        %v3203 = vunpack.c.l.b16 %v3160
        %v3204 = vunpack.c.l.b16 %v3170
        %v3205 = vpack.c.b16 %v3174, %v3173
        %v3206 = vpack.c.b16 %v3176, %v3175
        %v3207 = vpack.c.b16 %v3178, %v3177
        %v3208 = vpack.c.b16 %v3180, %v3179
        %v3209 = vpack.c.b16 %v3182, %v3181
        %v3210 = vpack.c.b16 %v3184, %v3183
        %v3211 = vpack.c.b16 %v3186, %v3185
        %v3212 = vpack.c.b16 %v3188, %v3187
        %v3213 = vpack.c.b16 %v3190, %v3189
        %v3214 = vpack.c.b16 %v3192, %v3191
        %v3215 = vpack.c.b16 %v3194, %v3193
        %v3216 = vpack.c.b16 %v3196, %v3195
        %v3217 = vpack.c.b16 %v3198, %v3197
        %v3218 = vpack.c.b16 %v3200, %v3199
        %v3219 = vpack.c.b16 %v3202, %v3201
        %v3220 = vpack.c.b16 %v3204, %v3203
        %v3222 = vsel %vm1418, %v3205, 0
        %v3225 = vsel %vm1418, %v3206, 0
        %v3228 = vsel %vm1418, %v3207, 0
        %v3231 = vsel %vm1418, %v3208, 0
        %v3234 = vsel %vm1418, %v3209, 0
        %v3237 = vsel %vm1418, %v3210, 0
        %v3240 = vsel %vm1418, %v3211, 0
        %v3243 = vsel %vm1418, %v3212, 0
        %v3246 = vsel %vm1418, %v3213, 0
        %v3249 = vsel %vm1418, %v3214, 0
        %v3252 = vsel %vm1418, %v3215, 0
        %v3255 = vsel %vm1418, %v3216, 0
        %v3258 = vsel %vm1418, %v3217, 0
        %v3261 = vsel %vm1418, %v3218, 0
        %v3264 = vsel %vm1418, %v3219, 0
        %v3267 = vsel %vm1418, %v3220, 0
        %v3270 = vsel %vm1467, %v3172, 0
        %3272 = vmatprep.subr.bf16.mxu0 0
        %3273 = vmatpush1.bf16.msra.mxu0 0
        %3274 = vmatprep.subr.bf16.mxu0 0
        %3275 = vmatpush1.bf16.msra.mxu0 0
        %3276 = vmatprep.subr.bf16.mxu0 0
        %3277 = vmatpush1.bf16.msra.mxu0 0
        %3278 = vmatprep.subr.bf16.mxu0 0
        %3279 = vmatpush1.bf16.msra.mxu0 0
        %3280 = vmatprep.subr.bf16.mxu0 0
        %3281 = vmatpush1.bf16.msra.mxu0 0
        %3282 = vmatprep.subr.bf16.mxu0 0
        %3283 = vmatpush1.bf16.msra.mxu0 0
        %3284 = vmatprep.subr.bf16.mxu0 0
        %3285 = vmatpush1.bf16.msra.mxu0 0
        %3286 = vmatprep.subr.bf16.mxu0 0
        %3287 = vmatpush1.bf16.msra.mxu0 %v3270
        %3288 = vmatprep.subr.bf16.mxu0 0
        %3289 = vmatpush2.bf16.msra.mxu0 0
        %3290 = vmatprep.subr.bf16.mxu0 0
        %3291 = vmatpush2.bf16.msra.mxu0 0
        %3292 = vmatprep.subr.bf16.mxu0 0
        %3293 = vmatpush2.bf16.msra.mxu0 0
        %3294 = vmatprep.subr.bf16.mxu0 0
        %3295 = vmatpush2.bf16.msra.mxu0 0
        %3296 = vmatprep.subr.bf16.mxu0 0
        %3297 = vmatpush2.bf16.msra.mxu0 0
        %3298 = vmatprep.subr.bf16.mxu0 0
        %3299 = vmatpush2.bf16.msra.mxu0 0
        %3300 = vmatprep.subr.bf16.mxu0 0
        %3301 = vmatpush2.bf16.msra.mxu0 0
        %3302 = vmatprep.subr.bf16.mxu0 0
        %3303 = vmatpush2.bf16.msra.mxu0 0
        %3304 = vmatprep.mubr.bf16.mxu0 0
        %3305 = vmatmul.mubr.bf16.gmra.mxu0 %v3222
        %v3306 = vpop.f32.mrf.mxu0
        %v3307 = vadd.f32 0.0, %v3306
        %v3308 = vpop.f32.mrf.mxu0
        %v3309 = vpop.f32.mrf.mxu0
        %v3310 = vadd.f32 0.0, %v3309
        %v3311 = vpop.f32.mrf.mxu0
        %3312 = vmatprep.mubr.bf16.mxu0 0
        %3313 = vmatmul.mubr.bf16.gmra.mxu0 %v3225
        %v3314 = vpop.f32.mrf.mxu0
        %v3315 = vadd.f32 0.0, %v3314
        %v3316 = vpop.f32.mrf.mxu0
        %v3317 = vpop.f32.mrf.mxu0
        %v3318 = vadd.f32 0.0, %v3317
        %v3319 = vpop.f32.mrf.mxu0
        %3320 = vmatprep.mubr.bf16.mxu0 0
        %3321 = vmatmul.mubr.bf16.gmra.mxu0 %v3228
        %v3322 = vpop.f32.mrf.mxu0
        %v3323 = vadd.f32 0.0, %v3322
        %v3324 = vpop.f32.mrf.mxu0
        %v3325 = vpop.f32.mrf.mxu0
        %v3326 = vadd.f32 0.0, %v3325
        %v3327 = vpop.f32.mrf.mxu0
        %3328 = vmatprep.mubr.bf16.mxu0 0
        %3329 = vmatmul.mubr.bf16.gmra.mxu0 %v3231
        %v3330 = vpop.f32.mrf.mxu0
        %v3331 = vadd.f32 0.0, %v3330
        %v3332 = vpop.f32.mrf.mxu0
        %v3333 = vpop.f32.mrf.mxu0
        %v3334 = vadd.f32 0.0, %v3333
        %v3335 = vpop.f32.mrf.mxu0
        %3336 = vmatprep.mubr.bf16.mxu0 0
        %3337 = vmatmul.mubr.bf16.gmra.mxu0 %v3234
        %v3338 = vpop.f32.mrf.mxu0
        %v3339 = vadd.f32 0.0, %v3338
        %v3340 = vpop.f32.mrf.mxu0
        %v3341 = vpop.f32.mrf.mxu0
        %v3342 = vadd.f32 0.0, %v3341
        %v3343 = vpop.f32.mrf.mxu0
        %3344 = vmatprep.mubr.bf16.mxu0 0
        %3345 = vmatmul.mubr.bf16.gmra.mxu0 %v3237
        %v3346 = vpop.f32.mrf.mxu0
        %v3347 = vadd.f32 0.0, %v3346
        %v3348 = vpop.f32.mrf.mxu0
        %v3349 = vpop.f32.mrf.mxu0
        %v3350 = vadd.f32 0.0, %v3349
        %v3351 = vpop.f32.mrf.mxu0
        %3352 = vmatprep.mubr.bf16.mxu0 0
        %3353 = vmatmul.mubr.bf16.gmra.mxu0 %v3240
        %v3354 = vpop.f32.mrf.mxu0
        %v3355 = vadd.f32 0.0, %v3354
        %v3356 = vpop.f32.mrf.mxu0
        %v3357 = vpop.f32.mrf.mxu0
        %v3358 = vadd.f32 0.0, %v3357
        %v3359 = vpop.f32.mrf.mxu0
        %3360 = vmatprep.mubr.bf16.mxu0 0
        %3361 = vmatmul.mubr.bf16.gmra.mxu0 %v3243
        %v3362 = vpop.f32.mrf.mxu0
        %v3363 = vadd.f32 0.0, %v3362
        %v3364 = vpop.f32.mrf.mxu0
        %v3365 = vpop.f32.mrf.mxu0
        %v3366 = vadd.f32 0.0, %v3365
        %v3367 = vpop.f32.mrf.mxu0
        %3368 = vmatprep.mubr.bf16.mxu0 0
        %3369 = vmatmul.mubr.bf16.gmra.mxu0 %v3246
        %v3370 = vpop.f32.mrf.mxu0
        %v3371 = vadd.f32 0.0, %v3370
        %v3372 = vpop.f32.mrf.mxu0
        %v3373 = vpop.f32.mrf.mxu0
        %v3374 = vadd.f32 0.0, %v3373
        %v3375 = vpop.f32.mrf.mxu0
        %3376 = vmatprep.mubr.bf16.mxu0 0
        %3377 = vmatmul.mubr.bf16.gmra.mxu0 %v3249
        %v3378 = vpop.f32.mrf.mxu0
        %v3379 = vadd.f32 0.0, %v3378
        %v3380 = vpop.f32.mrf.mxu0
        %v3381 = vpop.f32.mrf.mxu0
        %v3382 = vadd.f32 0.0, %v3381
        %v3383 = vpop.f32.mrf.mxu0
        %3384 = vmatprep.mubr.bf16.mxu0 0
        %3385 = vmatmul.mubr.bf16.gmra.mxu0 %v3252
        %v3386 = vpop.f32.mrf.mxu0
        %v3387 = vadd.f32 0.0, %v3386
        %v3388 = vpop.f32.mrf.mxu0
        %v3389 = vpop.f32.mrf.mxu0
        %v3390 = vadd.f32 0.0, %v3389
        %v3391 = vpop.f32.mrf.mxu0
        %3392 = vmatprep.mubr.bf16.mxu0 0
        %3393 = vmatmul.mubr.bf16.gmra.mxu0 %v3255
        %v3394 = vpop.f32.mrf.mxu0
        %v3395 = vadd.f32 0.0, %v3394
        %v3396 = vpop.f32.mrf.mxu0
        %v3397 = vpop.f32.mrf.mxu0
        %v3398 = vadd.f32 0.0, %v3397
        %v3399 = vpop.f32.mrf.mxu0
        %3400 = vmatprep.mubr.bf16.mxu0 0
        %3401 = vmatmul.mubr.bf16.gmra.mxu0 %v3258
        %v3402 = vpop.f32.mrf.mxu0
        %v3403 = vadd.f32 0.0, %v3402
        %v3404 = vpop.f32.mrf.mxu0
        %v3405 = vpop.f32.mrf.mxu0
        %v3406 = vadd.f32 0.0, %v3405
        %v3407 = vpop.f32.mrf.mxu0
        %3408 = vmatprep.mubr.bf16.mxu0 0
        %3409 = vmatmul.mubr.bf16.gmra.mxu0 %v3261
        %v3410 = vpop.f32.mrf.mxu0
        %v3411 = vadd.f32 0.0, %v3410
        %v3412 = vpop.f32.mrf.mxu0
        %v3413 = vpop.f32.mrf.mxu0
        %v3414 = vadd.f32 0.0, %v3413
        %v3415 = vpop.f32.mrf.mxu0
        %3416 = vmatprep.mubr.bf16.mxu0 0
        %3417 = vmatmul.mubr.bf16.gmra.mxu0 %v3264
        %v3418 = vpop.f32.mrf.mxu0
        %v3419 = vadd.f32 0.0, %v3418
        %v3420 = vpop.f32.mrf.mxu0
        %v3421 = vpop.f32.mrf.mxu0
        %v3422 = vadd.f32 0.0, %v3421
        %v3423 = vpop.f32.mrf.mxu0
        %3424 = vmatprep.mubr.bf16.mxu0 0
        %3425 = vmatmul.mubr.bf16.gmra.mxu0 %v3267
        %v3426 = vpop.f32.mrf.mxu0
        %v3427 = vadd.f32 0.0, %v3426
        %v3428 = vpop.f32.mrf.mxu0
        %v3429 = vpop.f32.mrf.mxu0
        %v3430 = vadd.f32 0.0, %v3429
        %v3431 = vpop.f32.mrf.mxu0
        %3432 = vdwg.mxu0
        %v3433 = vadd.f32 %v2707, %v3307
        %v3434 = vadd.f32 %v2708, %v3310
        %v3435 = vadd.f32 %v2709, %v3315
        %v3436 = vadd.f32 %v2710, %v3318
        %v3437 = vadd.f32 %v2711, %v3323
        %v3438 = vadd.f32 %v2712, %v3326
        %v3439 = vadd.f32 %v2713, %v3331
        %v3440 = vadd.f32 %v2714, %v3334
        %v3441 = vadd.f32 %v2715, %v3339
        %v3442 = vadd.f32 %v2716, %v3342
        %v3443 = vadd.f32 %v2717, %v3347
        %v3444 = vadd.f32 %v2718, %v3350
        %v3445 = vadd.f32 %v2719, %v3355
        %v3446 = vadd.f32 %v2720, %v3358
        %v3447 = vadd.f32 %v2721, %v3363
        %v3448 = vadd.f32 %v2722, %v3366
        %v3449 = vadd.f32 %v2723, %v3371
        %v3450 = vadd.f32 %v2724, %v3374
        %v3451 = vadd.f32 %v2725, %v3379
        %v3452 = vadd.f32 %v2726, %v3382
        %v3453 = vadd.f32 %v2727, %v3387
        %v3454 = vadd.f32 %v2728, %v3390
        %v3455 = vadd.f32 %v2729, %v3395
        %v3456 = vadd.f32 %v2730, %v3398
        %v3457 = vadd.f32 %v2731, %v3403
        %v3458 = vadd.f32 %v2732, %v3406
        %v3459 = vadd.f32 %v2733, %v3411
        %v3460 = vadd.f32 %v2734, %v3414
        %v3461 = vadd.f32 %v2735, %v3419
        %v3462 = vadd.f32 %v2736, %v3422
        %v3463 = vadd.f32 %v2737, %v3427
        %v3464 = vadd.f32 %v2738, %v3430
        %v3465 = vld [vmem:[%s817] sm:$0xe]
        %v3466 = vld [vmem:[%s817 + $0xc] sm:$0xe]
        %v3467 = vld [vmem:[%s817 + $0x18] sm:$0xe]
        %v3468 = vld [vmem:[%s817 + $0x24] sm:$0xe]
        %v3469 = vld [vmem:[%s817 + $0x30] sm:$0xe]
        %v3470 = vld [vmem:[%s817 + $0x3c] sm:$0xe]
        %v3471 = vld [vmem:[%s817 + $0x48] sm:$0xe]
        %v3472 = vld [vmem:[%s817 + $0x54] sm:$0xe]
        %v3473 = vld [vmem:[%s817 + $0x60] sm:$0xe]
        %v3474 = vld [vmem:[%s817 + $0x6c] sm:$0xe]
        %v3475 = vld [vmem:[%s817 + $0x78] sm:$0xe]
        %v3476 = vld [vmem:[%s817 + $0x84] sm:$0xe]
        %v3477 = vld [vmem:[%s817 + $0x90] sm:$0xe]
        %v3478 = vld [vmem:[%s817 + $0x9c] sm:$0xe]
        %v3479 = vld [vmem:[%s817 + $0xa8] sm:$0xe]
        %v3480 = vld [vmem:[%s817 + $0xb4] sm:$0xe]
        %v3529 = vrot.slane %v3465, 5
        %v3530 = vrot.slane %v3529, 4
        %v3531 = vrot.slane %v2740, 5
        %v3532 = vsel %vm1974, %v3530, %v3531
        %v3533 = vrot.slane %v3531, 4
        %v3534 = vrot.slane %v2741, 5
        %v3535 = vsel %vm1974, %v3533, %v3534
        %v3536 = vrot.slane %v3466, 5
        %v3537 = vrot.slane %v3536, 4
        %v3538 = vrot.slane %v2743, 5
        %v3539 = vsel %vm1974, %v3537, %v3538
        %v3540 = vrot.slane %v3538, 4
        %v3541 = vrot.slane %v2744, 5
        %v3542 = vsel %vm1974, %v3540, %v3541
        %v3543 = vrot.slane %v3467, 5
        %v3544 = vrot.slane %v3543, 4
        %v3545 = vrot.slane %v2746, 5
        %v3546 = vsel %vm1974, %v3544, %v3545
        %v3547 = vrot.slane %v3545, 4
        %v3548 = vrot.slane %v2747, 5
        %v3549 = vsel %vm1974, %v3547, %v3548
        %v3550 = vrot.slane %v3468, 5
        %v3551 = vrot.slane %v3550, 4
        %v3552 = vrot.slane %v2749, 5
        %v3553 = vsel %vm1974, %v3551, %v3552
        %v3554 = vrot.slane %v3552, 4
        %v3555 = vrot.slane %v2750, 5
        %v3556 = vsel %vm1974, %v3554, %v3555
        %v3557 = vrot.slane %v3469, 5
        %v3558 = vrot.slane %v3557, 4
        %v3559 = vrot.slane %v2752, 5
        %v3560 = vsel %vm1974, %v3558, %v3559
        %v3561 = vrot.slane %v3559, 4
        %v3562 = vrot.slane %v2753, 5
        %v3563 = vsel %vm1974, %v3561, %v3562
        %v3564 = vrot.slane %v3470, 5
        %v3565 = vrot.slane %v3564, 4
        %v3566 = vrot.slane %v2755, 5
        %v3567 = vsel %vm1974, %v3565, %v3566
        %v3568 = vrot.slane %v3566, 4
        %v3569 = vrot.slane %v2756, 5
        %v3570 = vsel %vm1974, %v3568, %v3569
        %v3571 = vrot.slane %v3471, 5
        %v3572 = vrot.slane %v3571, 4
        %v3573 = vrot.slane %v2758, 5
        %v3574 = vsel %vm1974, %v3572, %v3573
        %v3575 = vrot.slane %v3573, 4
        %v3576 = vrot.slane %v2759, 5
        %v3577 = vsel %vm1974, %v3575, %v3576
        %v3578 = vrot.slane %v3472, 5
        %v3579 = vrot.slane %v3578, 4
        %v3580 = vrot.slane %v2761, 5
        %v3581 = vsel %vm1974, %v3579, %v3580
        %v3582 = vrot.slane %v3580, 4
        %v3583 = vrot.slane %v2762, 5
        %v3584 = vsel %vm1974, %v3582, %v3583
        %v3585 = vrot.slane %v3473, 5
        %v3586 = vrot.slane %v3585, 4
        %v3587 = vrot.slane %v2764, 5
        %v3588 = vsel %vm1974, %v3586, %v3587
        %v3589 = vrot.slane %v3587, 4
        %v3590 = vrot.slane %v2765, 5
        %v3591 = vsel %vm1974, %v3589, %v3590
        %v3592 = vrot.slane %v3474, 5
        %v3593 = vrot.slane %v3592, 4
        %v3594 = vrot.slane %v2767, 5
        %v3595 = vsel %vm1974, %v3593, %v3594
        %v3596 = vrot.slane %v3594, 4
        %v3597 = vrot.slane %v2768, 5
        %v3598 = vsel %vm1974, %v3596, %v3597
        %v3599 = vrot.slane %v3475, 5
        %v3600 = vrot.slane %v3599, 4
        %v3601 = vrot.slane %v2770, 5
        %v3602 = vsel %vm1974, %v3600, %v3601
        %v3603 = vrot.slane %v3601, 4
        %v3604 = vrot.slane %v2771, 5
        %v3605 = vsel %vm1974, %v3603, %v3604
        %v3606 = vrot.slane %v3476, 5
        %v3607 = vrot.slane %v3606, 4
        %v3608 = vrot.slane %v2773, 5
        %v3609 = vsel %vm1974, %v3607, %v3608
        %v3610 = vrot.slane %v3608, 4
        %v3611 = vrot.slane %v2774, 5
        %v3612 = vsel %vm1974, %v3610, %v3611
        %v3613 = vrot.slane %v3477, 5
        %v3614 = vrot.slane %v3613, 4
        %v3615 = vrot.slane %v2776, 5
        %v3616 = vsel %vm1974, %v3614, %v3615
        %v3617 = vrot.slane %v3615, 4
        %v3618 = vrot.slane %v2777, 5
        %v3619 = vsel %vm1974, %v3617, %v3618
        %v3620 = vrot.slane %v3478, 5
        %v3621 = vrot.slane %v3620, 4
        %v3622 = vrot.slane %v2779, 5
        %v3623 = vsel %vm1974, %v3621, %v3622
        %v3624 = vrot.slane %v3622, 4
        %v3625 = vrot.slane %v2780, 5
        %v3626 = vsel %vm1974, %v3624, %v3625
        %v3627 = vrot.slane %v3479, 5
        %v3628 = vrot.slane %v3627, 4
        %v3629 = vrot.slane %v2782, 5
        %v3630 = vsel %vm1974, %v3628, %v3629
        %v3631 = vrot.slane %v3629, 4
        %v3632 = vrot.slane %v2783, 5
        %v3633 = vsel %vm1974, %v3631, %v3632
        %v3634 = vrot.slane %v3480, 5
        %v3635 = vrot.slane %v3634, 4
        %v3636 = vrot.slane %v2785, 5
        %v3637 = vsel %vm1974, %v3635, %v3636
        %v3638 = vrot.slane %v3636, 4
        %v3639 = vrot.slane %v2786, 5
        %v3640 = vsel %vm1974, %v3638, %v3639
        %s3641 = scalar_lea.vmem %s1, 10
        %v3642 = vld [vmem:[%s3641] sm:$0x3]
        %v3643 = vunpack.c.l.b16 %v3532
        %v3644 = vunpack.c.l.b16 %v3535
        %v3645 = vunpack.c.l.b16 %v3539
        %v3646 = vunpack.c.l.b16 %v3542
        %v3647 = vunpack.c.l.b16 %v3546
        %v3648 = vunpack.c.l.b16 %v3549
        %v3649 = vunpack.c.l.b16 %v3553
        %v3650 = vunpack.c.l.b16 %v3556
        %v3651 = vunpack.c.l.b16 %v3560
        %v3652 = vunpack.c.l.b16 %v3563
        %v3653 = vunpack.c.l.b16 %v3567
        %v3654 = vunpack.c.l.b16 %v3570
        %v3655 = vunpack.c.l.b16 %v3574
        %v3656 = vunpack.c.l.b16 %v3577
        %v3657 = vunpack.c.l.b16 %v3581
        %v3658 = vunpack.c.l.b16 %v3584
        %v3659 = vunpack.c.l.b16 %v3588
        %v3660 = vunpack.c.l.b16 %v3591
        %v3661 = vunpack.c.l.b16 %v3595
        %v3662 = vunpack.c.l.b16 %v3598
        %v3663 = vunpack.c.l.b16 %v3602
        %v3664 = vunpack.c.l.b16 %v3605
        %v3665 = vunpack.c.l.b16 %v3609
        %v3666 = vunpack.c.l.b16 %v3612
        %v3667 = vunpack.c.l.b16 %v3616
        %v3668 = vunpack.c.l.b16 %v3619
        %v3669 = vunpack.c.l.b16 %v3623
        %v3670 = vunpack.c.l.b16 %v3626
        %v3671 = vunpack.c.l.b16 %v3630
        %v3672 = vunpack.c.l.b16 %v3633
        %v3673 = vunpack.c.l.b16 %v3637
        %v3674 = vunpack.c.l.b16 %v3640
        %v3675 = vpack.c.b16 %v3644, %v3643
        %v3676 = vpack.c.b16 %v3646, %v3645
        %v3677 = vpack.c.b16 %v3648, %v3647
        %v3678 = vpack.c.b16 %v3650, %v3649
        %v3679 = vpack.c.b16 %v3652, %v3651
        %v3680 = vpack.c.b16 %v3654, %v3653
        %v3681 = vpack.c.b16 %v3656, %v3655
        %v3682 = vpack.c.b16 %v3658, %v3657
        %v3683 = vpack.c.b16 %v3660, %v3659
        %v3684 = vpack.c.b16 %v3662, %v3661
        %v3685 = vpack.c.b16 %v3664, %v3663
        %v3686 = vpack.c.b16 %v3666, %v3665
        %v3687 = vpack.c.b16 %v3668, %v3667
        %v3688 = vpack.c.b16 %v3670, %v3669
        %v3689 = vpack.c.b16 %v3672, %v3671
        %v3690 = vpack.c.b16 %v3674, %v3673
        %v3692 = vsel %vm1418, %v3675, 0
        %v3695 = vsel %vm1418, %v3676, 0
        %v3698 = vsel %vm1418, %v3677, 0
        %v3701 = vsel %vm1418, %v3678, 0
        %v3704 = vsel %vm1418, %v3679, 0
        %v3707 = vsel %vm1418, %v3680, 0
        %v3710 = vsel %vm1418, %v3681, 0
        %v3713 = vsel %vm1418, %v3682, 0
        %v3716 = vsel %vm1418, %v3683, 0
        %v3719 = vsel %vm1418, %v3684, 0
        %v3722 = vsel %vm1418, %v3685, 0
        %v3725 = vsel %vm1418, %v3686, 0
        %v3728 = vsel %vm1418, %v3687, 0
        %v3731 = vsel %vm1418, %v3688, 0
        %v3734 = vsel %vm1418, %v3689, 0
        %v3737 = vsel %vm1418, %v3690, 0
        %v3740 = vsel %vm1467, %v3642, 0
        %3742 = vmatprep.subr.bf16.mxu0 0
        %3743 = vmatpush1.bf16.msra.mxu0 0
        %3744 = vmatprep.subr.bf16.mxu0 0
        %3745 = vmatpush1.bf16.msra.mxu0 0
        %3746 = vmatprep.subr.bf16.mxu0 0
        %3747 = vmatpush1.bf16.msra.mxu0 0
        %3748 = vmatprep.subr.bf16.mxu0 0
        %3749 = vmatpush1.bf16.msra.mxu0 0
        %3750 = vmatprep.subr.bf16.mxu0 0
        %3751 = vmatpush1.bf16.msra.mxu0 0
        %3752 = vmatprep.subr.bf16.mxu0 0
        %3753 = vmatpush1.bf16.msra.mxu0 0
        %3754 = vmatprep.subr.bf16.mxu0 0
        %3755 = vmatpush1.bf16.msra.mxu0 0
        %3756 = vmatprep.subr.bf16.mxu0 0
        %3757 = vmatpush1.bf16.msra.mxu0 %v3740
        %3758 = vmatprep.subr.bf16.mxu0 0
        %3759 = vmatpush2.bf16.msra.mxu0 0
        %3760 = vmatprep.subr.bf16.mxu0 0
        %3761 = vmatpush2.bf16.msra.mxu0 0
        %3762 = vmatprep.subr.bf16.mxu0 0
        %3763 = vmatpush2.bf16.msra.mxu0 0
        %3764 = vmatprep.subr.bf16.mxu0 0
        %3765 = vmatpush2.bf16.msra.mxu0 0
        %3766 = vmatprep.subr.bf16.mxu0 0
        %3767 = vmatpush2.bf16.msra.mxu0 0
        %3768 = vmatprep.subr.bf16.mxu0 0
        %3769 = vmatpush2.bf16.msra.mxu0 0
        %3770 = vmatprep.subr.bf16.mxu0 0
        %3771 = vmatpush2.bf16.msra.mxu0 0
        %3772 = vmatprep.subr.bf16.mxu0 0
        %3773 = vmatpush2.bf16.msra.mxu0 0
        %3774 = vmatprep.mubr.bf16.mxu0 0
        %3775 = vmatmul.mubr.bf16.gmra.mxu0 %v3692
        %v3776 = vpop.f32.mrf.mxu0
        %v3777 = vadd.f32 0.0, %v3776
        %v3778 = vpop.f32.mrf.mxu0
        %v3779 = vpop.f32.mrf.mxu0
        %v3780 = vadd.f32 0.0, %v3779
        %v3781 = vpop.f32.mrf.mxu0
        %3782 = vmatprep.mubr.bf16.mxu0 0
        %3783 = vmatmul.mubr.bf16.gmra.mxu0 %v3695
        %v3784 = vpop.f32.mrf.mxu0
        %v3785 = vadd.f32 0.0, %v3784
        %v3786 = vpop.f32.mrf.mxu0
        %v3787 = vpop.f32.mrf.mxu0
        %v3788 = vadd.f32 0.0, %v3787
        %v3789 = vpop.f32.mrf.mxu0
        %3790 = vmatprep.mubr.bf16.mxu0 0
        %3791 = vmatmul.mubr.bf16.gmra.mxu0 %v3698
        %v3792 = vpop.f32.mrf.mxu0
        %v3793 = vadd.f32 0.0, %v3792
        %v3794 = vpop.f32.mrf.mxu0
        %v3795 = vpop.f32.mrf.mxu0
        %v3796 = vadd.f32 0.0, %v3795
        %v3797 = vpop.f32.mrf.mxu0
        %3798 = vmatprep.mubr.bf16.mxu0 0
        %3799 = vmatmul.mubr.bf16.gmra.mxu0 %v3701
        %v3800 = vpop.f32.mrf.mxu0
        %v3801 = vadd.f32 0.0, %v3800
        %v3802 = vpop.f32.mrf.mxu0
        %v3803 = vpop.f32.mrf.mxu0
        %v3804 = vadd.f32 0.0, %v3803
        %v3805 = vpop.f32.mrf.mxu0
        %3806 = vmatprep.mubr.bf16.mxu0 0
        %3807 = vmatmul.mubr.bf16.gmra.mxu0 %v3704
        %v3808 = vpop.f32.mrf.mxu0
        %v3809 = vadd.f32 0.0, %v3808
        %v3810 = vpop.f32.mrf.mxu0
        %v3811 = vpop.f32.mrf.mxu0
        %v3812 = vadd.f32 0.0, %v3811
        %v3813 = vpop.f32.mrf.mxu0
        %3814 = vmatprep.mubr.bf16.mxu0 0
        %3815 = vmatmul.mubr.bf16.gmra.mxu0 %v3707
        %v3816 = vpop.f32.mrf.mxu0
        %v3817 = vadd.f32 0.0, %v3816
        %v3818 = vpop.f32.mrf.mxu0
        %v3819 = vpop.f32.mrf.mxu0
        %v3820 = vadd.f32 0.0, %v3819
        %v3821 = vpop.f32.mrf.mxu0
        %3822 = vmatprep.mubr.bf16.mxu0 0
        %3823 = vmatmul.mubr.bf16.gmra.mxu0 %v3710
        %v3824 = vpop.f32.mrf.mxu0
        %v3825 = vadd.f32 0.0, %v3824
        %v3826 = vpop.f32.mrf.mxu0
        %v3827 = vpop.f32.mrf.mxu0
        %v3828 = vadd.f32 0.0, %v3827
        %v3829 = vpop.f32.mrf.mxu0
        %3830 = vmatprep.mubr.bf16.mxu0 0
        %3831 = vmatmul.mubr.bf16.gmra.mxu0 %v3713
        %v3832 = vpop.f32.mrf.mxu0
        %v3833 = vadd.f32 0.0, %v3832
        %v3834 = vpop.f32.mrf.mxu0
        %v3835 = vpop.f32.mrf.mxu0
        %v3836 = vadd.f32 0.0, %v3835
        %v3837 = vpop.f32.mrf.mxu0
        %3838 = vmatprep.mubr.bf16.mxu0 0
        %3839 = vmatmul.mubr.bf16.gmra.mxu0 %v3716
        %v3840 = vpop.f32.mrf.mxu0
        %v3841 = vadd.f32 0.0, %v3840
        %v3842 = vpop.f32.mrf.mxu0
        %v3843 = vpop.f32.mrf.mxu0
        %v3844 = vadd.f32 0.0, %v3843
        %v3845 = vpop.f32.mrf.mxu0
        %3846 = vmatprep.mubr.bf16.mxu0 0
        %3847 = vmatmul.mubr.bf16.gmra.mxu0 %v3719
        %v3848 = vpop.f32.mrf.mxu0
        %v3849 = vadd.f32 0.0, %v3848
        %v3850 = vpop.f32.mrf.mxu0
        %v3851 = vpop.f32.mrf.mxu0
        %v3852 = vadd.f32 0.0, %v3851
        %v3853 = vpop.f32.mrf.mxu0
        %3854 = vmatprep.mubr.bf16.mxu0 0
        %3855 = vmatmul.mubr.bf16.gmra.mxu0 %v3722
        %v3856 = vpop.f32.mrf.mxu0
        %v3857 = vadd.f32 0.0, %v3856
        %v3858 = vpop.f32.mrf.mxu0
        %v3859 = vpop.f32.mrf.mxu0
        %v3860 = vadd.f32 0.0, %v3859
        %v3861 = vpop.f32.mrf.mxu0
        %3862 = vmatprep.mubr.bf16.mxu0 0
        %3863 = vmatmul.mubr.bf16.gmra.mxu0 %v3725
        %v3864 = vpop.f32.mrf.mxu0
        %v3865 = vadd.f32 0.0, %v3864
        %v3866 = vpop.f32.mrf.mxu0
        %v3867 = vpop.f32.mrf.mxu0
        %v3868 = vadd.f32 0.0, %v3867
        %v3869 = vpop.f32.mrf.mxu0
        %3870 = vmatprep.mubr.bf16.mxu0 0
        %3871 = vmatmul.mubr.bf16.gmra.mxu0 %v3728
        %v3872 = vpop.f32.mrf.mxu0
        %v3873 = vadd.f32 0.0, %v3872
        %v3874 = vpop.f32.mrf.mxu0
        %v3875 = vpop.f32.mrf.mxu0
        %v3876 = vadd.f32 0.0, %v3875
        %v3877 = vpop.f32.mrf.mxu0
        %3878 = vmatprep.mubr.bf16.mxu0 0
        %3879 = vmatmul.mubr.bf16.gmra.mxu0 %v3731
        %v3880 = vpop.f32.mrf.mxu0
        %v3881 = vadd.f32 0.0, %v3880
        %v3882 = vpop.f32.mrf.mxu0
        %v3883 = vpop.f32.mrf.mxu0
        %v3884 = vadd.f32 0.0, %v3883
        %v3885 = vpop.f32.mrf.mxu0
        %3886 = vmatprep.mubr.bf16.mxu0 0
        %3887 = vmatmul.mubr.bf16.gmra.mxu0 %v3734
        %v3888 = vpop.f32.mrf.mxu0
        %v3889 = vadd.f32 0.0, %v3888
        %v3890 = vpop.f32.mrf.mxu0
        %v3891 = vpop.f32.mrf.mxu0
        %v3892 = vadd.f32 0.0, %v3891
        %v3893 = vpop.f32.mrf.mxu0
        %3894 = vmatprep.mubr.bf16.mxu0 0
        %3895 = vmatmul.mubr.bf16.gmra.mxu0 %v3737
        %v3896 = vpop.f32.mrf.mxu0
        %v3897 = vadd.f32 0.0, %v3896
        %v3898 = vpop.f32.mrf.mxu0
        %v3899 = vpop.f32.mrf.mxu0
        %v3900 = vadd.f32 0.0, %v3899
        %v3901 = vpop.f32.mrf.mxu0
        %3902 = vdwg.mxu0
        %v3903 = vadd.f32 %v3433, %v3777
        %v3904 = vadd.f32 %v3434, %v3780
        %v3905 = vadd.f32 %v3435, %v3785
        %v3906 = vadd.f32 %v3436, %v3788
        %v3907 = vadd.f32 %v3437, %v3793
        %v3908 = vadd.f32 %v3438, %v3796
        %v3909 = vadd.f32 %v3439, %v3801
        %v3910 = vadd.f32 %v3440, %v3804
        %v3911 = vadd.f32 %v3441, %v3809
        %v3912 = vadd.f32 %v3442, %v3812
        %v3913 = vadd.f32 %v3443, %v3817
        %v3914 = vadd.f32 %v3444, %v3820
        %v3915 = vadd.f32 %v3445, %v3825
        %v3916 = vadd.f32 %v3446, %v3828
        %v3917 = vadd.f32 %v3447, %v3833
        %v3918 = vadd.f32 %v3448, %v3836
        %v3919 = vadd.f32 %v3449, %v3841
        %v3920 = vadd.f32 %v3450, %v3844
        %v3921 = vadd.f32 %v3451, %v3849
        %v3922 = vadd.f32 %v3452, %v3852
        %v3923 = vadd.f32 %v3453, %v3857
        %v3924 = vadd.f32 %v3454, %v3860
        %v3925 = vadd.f32 %v3455, %v3865
        %v3926 = vadd.f32 %v3456, %v3868
        %v3927 = vadd.f32 %v3457, %v3873
        %v3928 = vadd.f32 %v3458, %v3876
        %v3929 = vadd.f32 %v3459, %v3881
        %v3930 = vadd.f32 %v3460, %v3884
        %v3931 = vadd.f32 %v3461, %v3889
        %v3932 = vadd.f32 %v3462, %v3892
        %v3933 = vadd.f32 %v3463, %v3897
        %v3934 = vadd.f32 %v3464, %v3900
        %s3935 = scalar_lea.vmem [#allocation2], 24
        %v3936 = vld [vmem:[%s3935] sm:$0xf]
        %v3937 = vld [vmem:[%s3935 + $0x4] sm:$0xf]
        %v3938 = vld [vmem:[%s3935 + $0xc] sm:$0xf]
        %v3939 = vld [vmem:[%s3935 + $0x10] sm:$0xf]
        %v3940 = vld [vmem:[%s3935 + $0x18] sm:$0xf]
        %v3941 = vld [vmem:[%s3935 + $0x1c] sm:$0xf]
        %v3942 = vld [vmem:[%s3935 + $0x24] sm:$0xf]
        %v3943 = vld [vmem:[%s3935 + $0x28] sm:$0xf]
        %v3944 = vld [vmem:[%s3935 + $0x30] sm:$0xf]
        %v3945 = vld [vmem:[%s3935 + $0x34] sm:$0xf]
        %v3946 = vld [vmem:[%s3935 + $0x3c] sm:$0xf]
        %v3947 = vld [vmem:[%s3935 + $0x40] sm:$0xf]
        %v3948 = vld [vmem:[%s3935 + $0x48] sm:$0xf]
        %v3949 = vld [vmem:[%s3935 + $0x4c] sm:$0xf]
        %v3950 = vld [vmem:[%s3935 + $0x54] sm:$0xf]
        %v3951 = vld [vmem:[%s3935 + $0x58] sm:$0xf]
        %v3952 = vld [vmem:[%s3935 + $0x60] sm:$0xf]
        %v3953 = vld [vmem:[%s3935 + $0x64] sm:$0xf]
        %v3954 = vld [vmem:[%s3935 + $0x6c] sm:$0xf]
        %v3955 = vld [vmem:[%s3935 + $0x70] sm:$0xf]
        %v3956 = vld [vmem:[%s3935 + $0x78] sm:$0xf]
        %v3957 = vld [vmem:[%s3935 + $0x7c] sm:$0xf]
        %v3958 = vld [vmem:[%s3935 + $0x84] sm:$0xf]
        %v3959 = vld [vmem:[%s3935 + $0x88] sm:$0xf]
        %v3960 = vld [vmem:[%s3935 + $0x90] sm:$0xf]
        %v3961 = vld [vmem:[%s3935 + $0x94] sm:$0xf]
        %v3962 = vld [vmem:[%s3935 + $0x9c] sm:$0xf]
        %v3963 = vld [vmem:[%s3935 + $0xa0] sm:$0xf]
        %v3964 = vld [vmem:[%s3935 + $0xa8] sm:$0xf]
        %v3965 = vld [vmem:[%s3935 + $0xac] sm:$0xf]
        %v3966 = vld [vmem:[%s3935 + $0xb4] sm:$0xf]
        %v3967 = vld [vmem:[%s3935 + $0xb8] sm:$0xf]
        %s3968 = scalar_lea.vmem %s1, 12
        %v3969 = vld [vmem:[%s3968] sm:$0x3]
        %v4002 = vunpack.c.l.b16 %v3936
        %v4003 = vunpack.c.l.b16 %v3937
        %v4004 = vunpack.c.l.b16 %v3938
        %v4005 = vunpack.c.l.b16 %v3939
        %v4006 = vunpack.c.l.b16 %v3940
        %v4007 = vunpack.c.l.b16 %v3941
        %v4008 = vunpack.c.l.b16 %v3942
        %v4009 = vunpack.c.l.b16 %v3943
        %v4010 = vunpack.c.l.b16 %v3944
        %v4011 = vunpack.c.l.b16 %v3945
        %v4012 = vunpack.c.l.b16 %v3946
        %v4013 = vunpack.c.l.b16 %v3947
        %v4014 = vunpack.c.l.b16 %v3948
        %v4015 = vunpack.c.l.b16 %v3949
        %v4016 = vunpack.c.l.b16 %v3950
        %v4017 = vunpack.c.l.b16 %v3951
        %v4018 = vunpack.c.l.b16 %v3952
        %v4019 = vunpack.c.l.b16 %v3953
        %v4020 = vunpack.c.l.b16 %v3954
        %v4021 = vunpack.c.l.b16 %v3955
        %v4022 = vunpack.c.l.b16 %v3956
        %v4023 = vunpack.c.l.b16 %v3957
        %v4024 = vunpack.c.l.b16 %v3958
        %v4025 = vunpack.c.l.b16 %v3959
        %v4026 = vunpack.c.l.b16 %v3960
        %v4027 = vunpack.c.l.b16 %v3961
        %v4028 = vunpack.c.l.b16 %v3962
        %v4029 = vunpack.c.l.b16 %v3963
        %v4030 = vunpack.c.l.b16 %v3964
        %v4031 = vunpack.c.l.b16 %v3965
        %v4032 = vunpack.c.l.b16 %v3966
        %v4033 = vunpack.c.l.b16 %v3967
        %v4034 = vpack.c.b16 %v4003, %v4002
        %v4035 = vpack.c.b16 %v4005, %v4004
        %v4036 = vpack.c.b16 %v4007, %v4006
        %v4037 = vpack.c.b16 %v4009, %v4008
        %v4038 = vpack.c.b16 %v4011, %v4010
        %v4039 = vpack.c.b16 %v4013, %v4012
        %v4040 = vpack.c.b16 %v4015, %v4014
        %v4041 = vpack.c.b16 %v4017, %v4016
        %v4042 = vpack.c.b16 %v4019, %v4018
        %v4043 = vpack.c.b16 %v4021, %v4020
        %v4044 = vpack.c.b16 %v4023, %v4022
        %v4045 = vpack.c.b16 %v4025, %v4024
        %v4046 = vpack.c.b16 %v4027, %v4026
        %v4047 = vpack.c.b16 %v4029, %v4028
        %v4048 = vpack.c.b16 %v4031, %v4030
        %v4049 = vpack.c.b16 %v4033, %v4032
        %v4051 = vsel %vm1418, %v4034, 0
        %v4054 = vsel %vm1418, %v4035, 0
        %v4057 = vsel %vm1418, %v4036, 0
        %v4060 = vsel %vm1418, %v4037, 0
        %v4063 = vsel %vm1418, %v4038, 0
        %v4066 = vsel %vm1418, %v4039, 0
        %v4069 = vsel %vm1418, %v4040, 0
        %v4072 = vsel %vm1418, %v4041, 0
        %v4075 = vsel %vm1418, %v4042, 0
        %v4078 = vsel %vm1418, %v4043, 0
        %v4081 = vsel %vm1418, %v4044, 0
        %v4084 = vsel %vm1418, %v4045, 0
        %v4087 = vsel %vm1418, %v4046, 0
        %v4090 = vsel %vm1418, %v4047, 0
        %v4093 = vsel %vm1418, %v4048, 0
        %v4096 = vsel %vm1418, %v4049, 0
        %v4099 = vsel %vm1467, %v3969, 0
        %4101 = vmatprep.subr.bf16.mxu0 0
        %4102 = vmatpush1.bf16.msra.mxu0 0
        %4103 = vmatprep.subr.bf16.mxu0 0
        %4104 = vmatpush1.bf16.msra.mxu0 0
        %4105 = vmatprep.subr.bf16.mxu0 0
        %4106 = vmatpush1.bf16.msra.mxu0 0
        %4107 = vmatprep.subr.bf16.mxu0 0
        %4108 = vmatpush1.bf16.msra.mxu0 0
        %4109 = vmatprep.subr.bf16.mxu0 0
        %4110 = vmatpush1.bf16.msra.mxu0 0
        %4111 = vmatprep.subr.bf16.mxu0 0
        %4112 = vmatpush1.bf16.msra.mxu0 0
        %4113 = vmatprep.subr.bf16.mxu0 0
        %4114 = vmatpush1.bf16.msra.mxu0 0
        %4115 = vmatprep.subr.bf16.mxu0 0
        %4116 = vmatpush1.bf16.msra.mxu0 %v4099
        %4117 = vmatprep.subr.bf16.mxu0 0
        %4118 = vmatpush2.bf16.msra.mxu0 0
        %4119 = vmatprep.subr.bf16.mxu0 0
        %4120 = vmatpush2.bf16.msra.mxu0 0
        %4121 = vmatprep.subr.bf16.mxu0 0
        %4122 = vmatpush2.bf16.msra.mxu0 0
        %4123 = vmatprep.subr.bf16.mxu0 0
        %4124 = vmatpush2.bf16.msra.mxu0 0
        %4125 = vmatprep.subr.bf16.mxu0 0
        %4126 = vmatpush2.bf16.msra.mxu0 0
        %4127 = vmatprep.subr.bf16.mxu0 0
        %4128 = vmatpush2.bf16.msra.mxu0 0
        %4129 = vmatprep.subr.bf16.mxu0 0
        %4130 = vmatpush2.bf16.msra.mxu0 0
        %4131 = vmatprep.subr.bf16.mxu0 0
        %4132 = vmatpush2.bf16.msra.mxu0 0
        %4133 = vmatprep.mubr.bf16.mxu0 0
        %4134 = vmatmul.mubr.bf16.gmra.mxu0 %v4051
        %v4135 = vpop.f32.mrf.mxu0
        %v4136 = vadd.f32 0.0, %v4135
        %v4137 = vpop.f32.mrf.mxu0
        %v4138 = vpop.f32.mrf.mxu0
        %v4139 = vadd.f32 0.0, %v4138
        %v4140 = vpop.f32.mrf.mxu0
        %4141 = vmatprep.mubr.bf16.mxu0 0
        %4142 = vmatmul.mubr.bf16.gmra.mxu0 %v4054
        %v4143 = vpop.f32.mrf.mxu0
        %v4144 = vadd.f32 0.0, %v4143
        %v4145 = vpop.f32.mrf.mxu0
        %v4146 = vpop.f32.mrf.mxu0
        %v4147 = vadd.f32 0.0, %v4146
        %v4148 = vpop.f32.mrf.mxu0
        %4149 = vmatprep.mubr.bf16.mxu0 0
        %4150 = vmatmul.mubr.bf16.gmra.mxu0 %v4057
        %v4151 = vpop.f32.mrf.mxu0
        %v4152 = vadd.f32 0.0, %v4151
        %v4153 = vpop.f32.mrf.mxu0
        %v4154 = vpop.f32.mrf.mxu0
        %v4155 = vadd.f32 0.0, %v4154
        %v4156 = vpop.f32.mrf.mxu0
        %4157 = vmatprep.mubr.bf16.mxu0 0
        %4158 = vmatmul.mubr.bf16.gmra.mxu0 %v4060
        %v4159 = vpop.f32.mrf.mxu0
        %v4160 = vadd.f32 0.0, %v4159
        %v4161 = vpop.f32.mrf.mxu0
        %v4162 = vpop.f32.mrf.mxu0
        %v4163 = vadd.f32 0.0, %v4162
        %v4164 = vpop.f32.mrf.mxu0
        %4165 = vmatprep.mubr.bf16.mxu0 0
        %4166 = vmatmul.mubr.bf16.gmra.mxu0 %v4063
        %v4167 = vpop.f32.mrf.mxu0
        %v4168 = vadd.f32 0.0, %v4167
        %v4169 = vpop.f32.mrf.mxu0
        %v4170 = vpop.f32.mrf.mxu0
        %v4171 = vadd.f32 0.0, %v4170
        %v4172 = vpop.f32.mrf.mxu0
        %4173 = vmatprep.mubr.bf16.mxu0 0
        %4174 = vmatmul.mubr.bf16.gmra.mxu0 %v4066
        %v4175 = vpop.f32.mrf.mxu0
        %v4176 = vadd.f32 0.0, %v4175
        %v4177 = vpop.f32.mrf.mxu0
        %v4178 = vpop.f32.mrf.mxu0
        %v4179 = vadd.f32 0.0, %v4178
        %v4180 = vpop.f32.mrf.mxu0
        %4181 = vmatprep.mubr.bf16.mxu0 0
        %4182 = vmatmul.mubr.bf16.gmra.mxu0 %v4069
        %v4183 = vpop.f32.mrf.mxu0
        %v4184 = vadd.f32 0.0, %v4183
        %v4185 = vpop.f32.mrf.mxu0
        %v4186 = vpop.f32.mrf.mxu0
        %v4187 = vadd.f32 0.0, %v4186
        %v4188 = vpop.f32.mrf.mxu0
        %4189 = vmatprep.mubr.bf16.mxu0 0
        %4190 = vmatmul.mubr.bf16.gmra.mxu0 %v4072
        %v4191 = vpop.f32.mrf.mxu0
        %v4192 = vadd.f32 0.0, %v4191
        %v4193 = vpop.f32.mrf.mxu0
        %v4194 = vpop.f32.mrf.mxu0
        %v4195 = vadd.f32 0.0, %v4194
        %v4196 = vpop.f32.mrf.mxu0
        %4197 = vmatprep.mubr.bf16.mxu0 0
        %4198 = vmatmul.mubr.bf16.gmra.mxu0 %v4075
        %v4199 = vpop.f32.mrf.mxu0
        %v4200 = vadd.f32 0.0, %v4199
        %v4201 = vpop.f32.mrf.mxu0
        %v4202 = vpop.f32.mrf.mxu0
        %v4203 = vadd.f32 0.0, %v4202
        %v4204 = vpop.f32.mrf.mxu0
        %4205 = vmatprep.mubr.bf16.mxu0 0
        %4206 = vmatmul.mubr.bf16.gmra.mxu0 %v4078
        %v4207 = vpop.f32.mrf.mxu0
        %v4208 = vadd.f32 0.0, %v4207
        %v4209 = vpop.f32.mrf.mxu0
        %v4210 = vpop.f32.mrf.mxu0
        %v4211 = vadd.f32 0.0, %v4210
        %v4212 = vpop.f32.mrf.mxu0
        %4213 = vmatprep.mubr.bf16.mxu0 0
        %4214 = vmatmul.mubr.bf16.gmra.mxu0 %v4081
        %v4215 = vpop.f32.mrf.mxu0
        %v4216 = vadd.f32 0.0, %v4215
        %v4217 = vpop.f32.mrf.mxu0
        %v4218 = vpop.f32.mrf.mxu0
        %v4219 = vadd.f32 0.0, %v4218
        %v4220 = vpop.f32.mrf.mxu0
        %4221 = vmatprep.mubr.bf16.mxu0 0
        %4222 = vmatmul.mubr.bf16.gmra.mxu0 %v4084
        %v4223 = vpop.f32.mrf.mxu0
        %v4224 = vadd.f32 0.0, %v4223
        %v4225 = vpop.f32.mrf.mxu0
        %v4226 = vpop.f32.mrf.mxu0
        %v4227 = vadd.f32 0.0, %v4226
        %v4228 = vpop.f32.mrf.mxu0
        %4229 = vmatprep.mubr.bf16.mxu0 0
        %4230 = vmatmul.mubr.bf16.gmra.mxu0 %v4087
        %v4231 = vpop.f32.mrf.mxu0
        %v4232 = vadd.f32 0.0, %v4231
        %v4233 = vpop.f32.mrf.mxu0
        %v4234 = vpop.f32.mrf.mxu0
        %v4235 = vadd.f32 0.0, %v4234
        %v4236 = vpop.f32.mrf.mxu0
        %4237 = vmatprep.mubr.bf16.mxu0 0
        %4238 = vmatmul.mubr.bf16.gmra.mxu0 %v4090
        %v4239 = vpop.f32.mrf.mxu0
        %v4240 = vadd.f32 0.0, %v4239
        %v4241 = vpop.f32.mrf.mxu0
        %v4242 = vpop.f32.mrf.mxu0
        %v4243 = vadd.f32 0.0, %v4242
        %v4244 = vpop.f32.mrf.mxu0
        %4245 = vmatprep.mubr.bf16.mxu0 0
        %4246 = vmatmul.mubr.bf16.gmra.mxu0 %v4093
        %v4247 = vpop.f32.mrf.mxu0
        %v4248 = vadd.f32 0.0, %v4247
        %v4249 = vpop.f32.mrf.mxu0
        %v4250 = vpop.f32.mrf.mxu0
        %v4251 = vadd.f32 0.0, %v4250
        %v4252 = vpop.f32.mrf.mxu0
        %4253 = vmatprep.mubr.bf16.mxu0 0
        %4254 = vmatmul.mubr.bf16.gmra.mxu0 %v4096
        %v4255 = vpop.f32.mrf.mxu0
        %v4256 = vadd.f32 0.0, %v4255
        %v4257 = vpop.f32.mrf.mxu0
        %v4258 = vpop.f32.mrf.mxu0
        %v4259 = vadd.f32 0.0, %v4258
        %v4260 = vpop.f32.mrf.mxu0
        %4261 = vdwg.mxu0
        %v4262 = vadd.f32 %v3903, %v4136
        %v4263 = vadd.f32 %v3904, %v4139
        %v4264 = vadd.f32 %v3905, %v4144
        %v4265 = vadd.f32 %v3906, %v4147
        %v4266 = vadd.f32 %v3907, %v4152
        %v4267 = vadd.f32 %v3908, %v4155
        %v4268 = vadd.f32 %v3909, %v4160
        %v4269 = vadd.f32 %v3910, %v4163
        %v4270 = vadd.f32 %v3911, %v4168
        %v4271 = vadd.f32 %v3912, %v4171
        %v4272 = vadd.f32 %v3913, %v4176
        %v4273 = vadd.f32 %v3914, %v4179
        %v4274 = vadd.f32 %v3915, %v4184
        %v4275 = vadd.f32 %v3916, %v4187
        %v4276 = vadd.f32 %v3917, %v4192
        %v4277 = vadd.f32 %v3918, %v4195
        %v4278 = vadd.f32 %v3919, %v4200
        %v4279 = vadd.f32 %v3920, %v4203
        %v4280 = vadd.f32 %v3921, %v4208
        %v4281 = vadd.f32 %v3922, %v4211
        %v4282 = vadd.f32 %v3923, %v4216
        %v4283 = vadd.f32 %v3924, %v4219
        %v4284 = vadd.f32 %v3925, %v4224
        %v4285 = vadd.f32 %v3926, %v4227
        %v4286 = vadd.f32 %v3927, %v4232
        %v4287 = vadd.f32 %v3928, %v4235
        %v4288 = vadd.f32 %v3929, %v4240
        %v4289 = vadd.f32 %v3930, %v4243
        %v4290 = vadd.f32 %v3931, %v4248
        %v4291 = vadd.f32 %v3932, %v4251
        %v4292 = vadd.f32 %v3933, %v4256
        %v4293 = vadd.f32 %v3934, %v4259
        %v4294 = vld [vmem:[%s3935] sm:$0xf]
        %v4295 = vld [vmem:[%s3935 + $0x4] sm:$0xf]
        %v4296 = vld [vmem:[%s3935 + $0x8] sm:$0x1]
        %v4297 = vld [vmem:[%s3935 + $0xc] sm:$0xf]
        %v4298 = vld [vmem:[%s3935 + $0x10] sm:$0xf]
        %v4299 = vld [vmem:[%s3935 + $0x14] sm:$0x1]
        %v4300 = vld [vmem:[%s3935 + $0x18] sm:$0xf]
        %v4301 = vld [vmem:[%s3935 + $0x1c] sm:$0xf]
        %v4302 = vld [vmem:[%s3935 + $0x20] sm:$0x1]
        %v4303 = vld [vmem:[%s3935 + $0x24] sm:$0xf]
        %v4304 = vld [vmem:[%s3935 + $0x28] sm:$0xf]
        %v4305 = vld [vmem:[%s3935 + $0x2c] sm:$0x1]
        %v4306 = vld [vmem:[%s3935 + $0x30] sm:$0xf]
        %v4307 = vld [vmem:[%s3935 + $0x34] sm:$0xf]
        %v4308 = vld [vmem:[%s3935 + $0x38] sm:$0x1]
        %v4309 = vld [vmem:[%s3935 + $0x3c] sm:$0xf]
        %v4310 = vld [vmem:[%s3935 + $0x40] sm:$0xf]
        %v4311 = vld [vmem:[%s3935 + $0x44] sm:$0x1]
        %v4312 = vld [vmem:[%s3935 + $0x48] sm:$0xf]
        %v4313 = vld [vmem:[%s3935 + $0x4c] sm:$0xf]
        %v4314 = vld [vmem:[%s3935 + $0x50] sm:$0x1]
        %v4315 = vld [vmem:[%s3935 + $0x54] sm:$0xf]
        %v4316 = vld [vmem:[%s3935 + $0x58] sm:$0xf]
        %v4317 = vld [vmem:[%s3935 + $0x5c] sm:$0x1]
        %v4318 = vld [vmem:[%s3935 + $0x60] sm:$0xf]
        %v4319 = vld [vmem:[%s3935 + $0x64] sm:$0xf]
        %v4320 = vld [vmem:[%s3935 + $0x68] sm:$0x1]
        %v4321 = vld [vmem:[%s3935 + $0x6c] sm:$0xf]
        %v4322 = vld [vmem:[%s3935 + $0x70] sm:$0xf]
        %v4323 = vld [vmem:[%s3935 + $0x74] sm:$0x1]
        %v4324 = vld [vmem:[%s3935 + $0x78] sm:$0xf]
        %v4325 = vld [vmem:[%s3935 + $0x7c] sm:$0xf]
        %v4326 = vld [vmem:[%s3935 + $0x80] sm:$0x1]
        %v4327 = vld [vmem:[%s3935 + $0x84] sm:$0xf]
        %v4328 = vld [vmem:[%s3935 + $0x88] sm:$0xf]
        %v4329 = vld [vmem:[%s3935 + $0x8c] sm:$0x1]
        %v4330 = vld [vmem:[%s3935 + $0x90] sm:$0xf]
        %v4331 = vld [vmem:[%s3935 + $0x94] sm:$0xf]
        %v4332 = vld [vmem:[%s3935 + $0x98] sm:$0x1]
        %v4333 = vld [vmem:[%s3935 + $0x9c] sm:$0xf]
        %v4334 = vld [vmem:[%s3935 + $0xa0] sm:$0xf]
        %v4335 = vld [vmem:[%s3935 + $0xa4] sm:$0x1]
        %v4336 = vld [vmem:[%s3935 + $0xa8] sm:$0xf]
        %v4337 = vld [vmem:[%s3935 + $0xac] sm:$0xf]
        %v4338 = vld [vmem:[%s3935 + $0xb0] sm:$0x1]
        %v4339 = vld [vmem:[%s3935 + $0xb4] sm:$0xf]
        %v4340 = vld [vmem:[%s3935 + $0xb8] sm:$0xf]
        %v4341 = vld [vmem:[%s3935 + $0xbc] sm:$0x1]
        %v4343 = vshrl.u32 %v4294, 16
        %v4345 = vrot.slane %v4343, 4
        %v4346 = vshll.u32 %v4294, 16
        %v4348 = vrot.slane %v4346, 5
        %v4349 = vor.u32 %v4345, %v4348
        %v4350 = vrot.slane %v4349, 4
        %v4352 = vshll.u32 %v4295, 16
        %v4354 = vrot.slane %v4352, 5
        %v4355 = vsel %vm983, %v4350, %v4354
        %v4356 = vshrl.u32 %v4295, 16
        %v4358 = vrot.slane %v4356, 4
        %v4359 = vor.u32 %v4358, %v4354
        %v4360 = vrot.slane %v4359, 4
        %v4362 = vshll.u32 %v4296, 16
        %v4364 = vrot.slane %v4362, 5
        %v4365 = vsel %vm983, %v4360, %v4364
        %v4367 = vshrl.u32 %v4297, 16
        %v4369 = vrot.slane %v4367, 4
        %v4370 = vshll.u32 %v4297, 16
        %v4372 = vrot.slane %v4370, 5
        %v4373 = vor.u32 %v4369, %v4372
        %v4374 = vrot.slane %v4373, 4
        %v4376 = vshll.u32 %v4298, 16
        %v4378 = vrot.slane %v4376, 5
        %v4379 = vsel %vm983, %v4374, %v4378
        %v4380 = vshrl.u32 %v4298, 16
        %v4382 = vrot.slane %v4380, 4
        %v4383 = vor.u32 %v4382, %v4378
        %v4384 = vrot.slane %v4383, 4
        %v4386 = vshll.u32 %v4299, 16
        %v4388 = vrot.slane %v4386, 5
        %v4389 = vsel %vm983, %v4384, %v4388
        %v4391 = vshrl.u32 %v4300, 16
        %v4393 = vrot.slane %v4391, 4
        %v4394 = vshll.u32 %v4300, 16
        %v4396 = vrot.slane %v4394, 5
        %v4397 = vor.u32 %v4393, %v4396
        %v4398 = vrot.slane %v4397, 4
        %v4400 = vshll.u32 %v4301, 16
        %v4402 = vrot.slane %v4400, 5
        %v4403 = vsel %vm983, %v4398, %v4402
        %v4404 = vshrl.u32 %v4301, 16
        %v4406 = vrot.slane %v4404, 4
        %v4407 = vor.u32 %v4406, %v4402
        %v4408 = vrot.slane %v4407, 4
        %v4410 = vshll.u32 %v4302, 16
        %v4412 = vrot.slane %v4410, 5
        %v4413 = vsel %vm983, %v4408, %v4412
        %v4415 = vshrl.u32 %v4303, 16
        %v4417 = vrot.slane %v4415, 4
        %v4418 = vshll.u32 %v4303, 16
        %v4420 = vrot.slane %v4418, 5
        %v4421 = vor.u32 %v4417, %v4420
        %v4422 = vrot.slane %v4421, 4
        %v4424 = vshll.u32 %v4304, 16
        %v4426 = vrot.slane %v4424, 5
        %v4427 = vsel %vm983, %v4422, %v4426
        %v4428 = vshrl.u32 %v4304, 16
        %v4430 = vrot.slane %v4428, 4
        %v4431 = vor.u32 %v4430, %v4426
        %v4432 = vrot.slane %v4431, 4
        %v4434 = vshll.u32 %v4305, 16
        %v4436 = vrot.slane %v4434, 5
        %v4437 = vsel %vm983, %v4432, %v4436
        %v4439 = vshrl.u32 %v4306, 16
        %v4441 = vrot.slane %v4439, 4
        %v4442 = vshll.u32 %v4306, 16
        %v4444 = vrot.slane %v4442, 5
        %v4445 = vor.u32 %v4441, %v4444
        %v4446 = vrot.slane %v4445, 4
        %v4448 = vshll.u32 %v4307, 16
        %v4450 = vrot.slane %v4448, 5
        %v4451 = vsel %vm983, %v4446, %v4450
        %v4452 = vshrl.u32 %v4307, 16
        %v4454 = vrot.slane %v4452, 4
        %v4455 = vor.u32 %v4454, %v4450
        %v4456 = vrot.slane %v4455, 4
        %v4458 = vshll.u32 %v4308, 16
        %v4460 = vrot.slane %v4458, 5
        %v4461 = vsel %vm983, %v4456, %v4460
        %v4463 = vshrl.u32 %v4309, 16
        %v4465 = vrot.slane %v4463, 4
        %v4466 = vshll.u32 %v4309, 16
        %v4468 = vrot.slane %v4466, 5
        %v4469 = vor.u32 %v4465, %v4468
        %v4470 = vrot.slane %v4469, 4
        %v4472 = vshll.u32 %v4310, 16
        %v4474 = vrot.slane %v4472, 5
        %v4475 = vsel %vm983, %v4470, %v4474
        %v4476 = vshrl.u32 %v4310, 16
        %v4478 = vrot.slane %v4476, 4
        %v4479 = vor.u32 %v4478, %v4474
        %v4480 = vrot.slane %v4479, 4
        %v4482 = vshll.u32 %v4311, 16
        %v4484 = vrot.slane %v4482, 5
        %v4485 = vsel %vm983, %v4480, %v4484
        %v4487 = vshrl.u32 %v4312, 16
        %v4489 = vrot.slane %v4487, 4
        %v4490 = vshll.u32 %v4312, 16
        %v4492 = vrot.slane %v4490, 5
        %v4493 = vor.u32 %v4489, %v4492
        %v4494 = vrot.slane %v4493, 4
        %v4496 = vshll.u32 %v4313, 16
        %v4498 = vrot.slane %v4496, 5
        %v4499 = vsel %vm983, %v4494, %v4498
        %v4500 = vshrl.u32 %v4313, 16
        %v4502 = vrot.slane %v4500, 4
        %v4503 = vor.u32 %v4502, %v4498
        %v4504 = vrot.slane %v4503, 4
        %v4506 = vshll.u32 %v4314, 16
        %v4508 = vrot.slane %v4506, 5
        %v4509 = vsel %vm983, %v4504, %v4508
        %v4511 = vshrl.u32 %v4315, 16
        %v4513 = vrot.slane %v4511, 4
        %v4514 = vshll.u32 %v4315, 16
        %v4516 = vrot.slane %v4514, 5
        %v4517 = vor.u32 %v4513, %v4516
        %v4518 = vrot.slane %v4517, 4
        %v4520 = vshll.u32 %v4316, 16
        %v4522 = vrot.slane %v4520, 5
        %v4523 = vsel %vm983, %v4518, %v4522
        %v4524 = vshrl.u32 %v4316, 16
        %v4526 = vrot.slane %v4524, 4
        %v4527 = vor.u32 %v4526, %v4522
        %v4528 = vrot.slane %v4527, 4
        %v4530 = vshll.u32 %v4317, 16
        %v4532 = vrot.slane %v4530, 5
        %v4533 = vsel %vm983, %v4528, %v4532
        %v4535 = vshrl.u32 %v4318, 16
        %v4537 = vrot.slane %v4535, 4
        %v4538 = vshll.u32 %v4318, 16
        %v4540 = vrot.slane %v4538, 5
        %v4541 = vor.u32 %v4537, %v4540
        %v4542 = vrot.slane %v4541, 4
        %v4544 = vshll.u32 %v4319, 16
        %v4546 = vrot.slane %v4544, 5
        %v4547 = vsel %vm983, %v4542, %v4546
        %v4548 = vshrl.u32 %v4319, 16
        %v4550 = vrot.slane %v4548, 4
        %v4551 = vor.u32 %v4550, %v4546
        %v4552 = vrot.slane %v4551, 4
        %v4554 = vshll.u32 %v4320, 16
        %v4556 = vrot.slane %v4554, 5
        %v4557 = vsel %vm983, %v4552, %v4556
        %v4559 = vshrl.u32 %v4321, 16
        %v4561 = vrot.slane %v4559, 4
        %v4562 = vshll.u32 %v4321, 16
        %v4564 = vrot.slane %v4562, 5
        %v4565 = vor.u32 %v4561, %v4564
        %v4566 = vrot.slane %v4565, 4
        %v4568 = vshll.u32 %v4322, 16
        %v4570 = vrot.slane %v4568, 5
        %v4571 = vsel %vm983, %v4566, %v4570
        %v4572 = vshrl.u32 %v4322, 16
        %v4574 = vrot.slane %v4572, 4
        %v4575 = vor.u32 %v4574, %v4570
        %v4576 = vrot.slane %v4575, 4
        %v4578 = vshll.u32 %v4323, 16
        %v4580 = vrot.slane %v4578, 5
        %v4581 = vsel %vm983, %v4576, %v4580
        %v4583 = vshrl.u32 %v4324, 16
        %v4585 = vrot.slane %v4583, 4
        %v4586 = vshll.u32 %v4324, 16
        %v4588 = vrot.slane %v4586, 5
        %v4589 = vor.u32 %v4585, %v4588
        %v4590 = vrot.slane %v4589, 4
        %v4592 = vshll.u32 %v4325, 16
        %v4594 = vrot.slane %v4592, 5
        %v4595 = vsel %vm983, %v4590, %v4594
        %v4596 = vshrl.u32 %v4325, 16
        %v4598 = vrot.slane %v4596, 4
        %v4599 = vor.u32 %v4598, %v4594
        %v4600 = vrot.slane %v4599, 4
        %v4602 = vshll.u32 %v4326, 16
        %v4604 = vrot.slane %v4602, 5
        %v4605 = vsel %vm983, %v4600, %v4604
        %v4607 = vshrl.u32 %v4327, 16
        %v4609 = vrot.slane %v4607, 4
        %v4610 = vshll.u32 %v4327, 16
        %v4612 = vrot.slane %v4610, 5
        %v4613 = vor.u32 %v4609, %v4612
        %v4614 = vrot.slane %v4613, 4
        %v4616 = vshll.u32 %v4328, 16
        %v4618 = vrot.slane %v4616, 5
        %v4619 = vsel %vm983, %v4614, %v4618
        %v4620 = vshrl.u32 %v4328, 16
        %v4622 = vrot.slane %v4620, 4
        %v4623 = vor.u32 %v4622, %v4618
        %v4624 = vrot.slane %v4623, 4
        %v4626 = vshll.u32 %v4329, 16
        %v4628 = vrot.slane %v4626, 5
        %v4629 = vsel %vm983, %v4624, %v4628
        %v4631 = vshrl.u32 %v4330, 16
        %v4633 = vrot.slane %v4631, 4
        %v4634 = vshll.u32 %v4330, 16
        %v4636 = vrot.slane %v4634, 5
        %v4637 = vor.u32 %v4633, %v4636
        %v4638 = vrot.slane %v4637, 4
        %v4640 = vshll.u32 %v4331, 16
        %v4642 = vrot.slane %v4640, 5
        %v4643 = vsel %vm983, %v4638, %v4642
        %v4644 = vshrl.u32 %v4331, 16
        %v4646 = vrot.slane %v4644, 4
        %v4647 = vor.u32 %v4646, %v4642
        %v4648 = vrot.slane %v4647, 4
        %v4650 = vshll.u32 %v4332, 16
        %v4652 = vrot.slane %v4650, 5
        %v4653 = vsel %vm983, %v4648, %v4652
        %v4655 = vshrl.u32 %v4333, 16
        %v4657 = vrot.slane %v4655, 4
        %v4658 = vshll.u32 %v4333, 16
        %v4660 = vrot.slane %v4658, 5
        %v4661 = vor.u32 %v4657, %v4660
        %v4662 = vrot.slane %v4661, 4
        %v4664 = vshll.u32 %v4334, 16
        %v4666 = vrot.slane %v4664, 5
        %v4667 = vsel %vm983, %v4662, %v4666
        %v4668 = vshrl.u32 %v4334, 16
        %v4670 = vrot.slane %v4668, 4
        %v4671 = vor.u32 %v4670, %v4666
        %v4672 = vrot.slane %v4671, 4
        %v4674 = vshll.u32 %v4335, 16
        %v4676 = vrot.slane %v4674, 5
        %v4677 = vsel %vm983, %v4672, %v4676
        %v4679 = vshrl.u32 %v4336, 16
        %v4681 = vrot.slane %v4679, 4
        %v4682 = vshll.u32 %v4336, 16
        %v4684 = vrot.slane %v4682, 5
        %v4685 = vor.u32 %v4681, %v4684
        %v4686 = vrot.slane %v4685, 4
        %v4688 = vshll.u32 %v4337, 16
        %v4690 = vrot.slane %v4688, 5
        %v4691 = vsel %vm983, %v4686, %v4690
        %v4692 = vshrl.u32 %v4337, 16
        %v4694 = vrot.slane %v4692, 4
        %v4695 = vor.u32 %v4694, %v4690
        %v4696 = vrot.slane %v4695, 4
        %v4698 = vshll.u32 %v4338, 16
        %v4700 = vrot.slane %v4698, 5
        %v4701 = vsel %vm983, %v4696, %v4700
        %v4703 = vshrl.u32 %v4339, 16
        %v4705 = vrot.slane %v4703, 4
        %v4706 = vshll.u32 %v4339, 16
        %v4708 = vrot.slane %v4706, 5
        %v4709 = vor.u32 %v4705, %v4708
        %v4710 = vrot.slane %v4709, 4
        %v4712 = vshll.u32 %v4340, 16
        %v4714 = vrot.slane %v4712, 5
        %v4715 = vsel %vm983, %v4710, %v4714
        %v4716 = vshrl.u32 %v4340, 16
        %v4718 = vrot.slane %v4716, 4
        %v4719 = vor.u32 %v4718, %v4714
        %v4720 = vrot.slane %v4719, 4
        %v4722 = vshll.u32 %v4341, 16
        %v4724 = vrot.slane %v4722, 5
        %v4725 = vsel %vm983, %v4720, %v4724
        %s4726 = scalar_lea.vmem %s1, 14
        %v4727 = vld [vmem:[%s4726] sm:$0x3]
        %v4728 = vunpack.c.l.b16 %v4355
        %v4729 = vunpack.c.l.b16 %v4365
        %v4730 = vunpack.c.l.b16 %v4379
        %v4731 = vunpack.c.l.b16 %v4389
        %v4732 = vunpack.c.l.b16 %v4403
        %v4733 = vunpack.c.l.b16 %v4413
        %v4734 = vunpack.c.l.b16 %v4427
        %v4735 = vunpack.c.l.b16 %v4437
        %v4736 = vunpack.c.l.b16 %v4451
        %v4737 = vunpack.c.l.b16 %v4461
        %v4738 = vunpack.c.l.b16 %v4475
        %v4739 = vunpack.c.l.b16 %v4485
        %v4740 = vunpack.c.l.b16 %v4499
        %v4741 = vunpack.c.l.b16 %v4509
        %v4742 = vunpack.c.l.b16 %v4523
        %v4743 = vunpack.c.l.b16 %v4533
        %v4744 = vunpack.c.l.b16 %v4547
        %v4745 = vunpack.c.l.b16 %v4557
        %v4746 = vunpack.c.l.b16 %v4571
        %v4747 = vunpack.c.l.b16 %v4581
        %v4748 = vunpack.c.l.b16 %v4595
        %v4749 = vunpack.c.l.b16 %v4605
        %v4750 = vunpack.c.l.b16 %v4619
        %v4751 = vunpack.c.l.b16 %v4629
        %v4752 = vunpack.c.l.b16 %v4643
        %v4753 = vunpack.c.l.b16 %v4653
        %v4754 = vunpack.c.l.b16 %v4667
        %v4755 = vunpack.c.l.b16 %v4677
        %v4756 = vunpack.c.l.b16 %v4691
        %v4757 = vunpack.c.l.b16 %v4701
        %v4758 = vunpack.c.l.b16 %v4715
        %v4759 = vunpack.c.l.b16 %v4725
        %v4760 = vpack.c.b16 %v4729, %v4728
        %v4761 = vpack.c.b16 %v4731, %v4730
        %v4762 = vpack.c.b16 %v4733, %v4732
        %v4763 = vpack.c.b16 %v4735, %v4734
        %v4764 = vpack.c.b16 %v4737, %v4736
        %v4765 = vpack.c.b16 %v4739, %v4738
        %v4766 = vpack.c.b16 %v4741, %v4740
        %v4767 = vpack.c.b16 %v4743, %v4742
        %v4768 = vpack.c.b16 %v4745, %v4744
        %v4769 = vpack.c.b16 %v4747, %v4746
        %v4770 = vpack.c.b16 %v4749, %v4748
        %v4771 = vpack.c.b16 %v4751, %v4750
        %v4772 = vpack.c.b16 %v4753, %v4752
        %v4773 = vpack.c.b16 %v4755, %v4754
        %v4774 = vpack.c.b16 %v4757, %v4756
        %v4775 = vpack.c.b16 %v4759, %v4758
        %v4777 = vsel %vm1418, %v4760, 0
        %v4780 = vsel %vm1418, %v4761, 0
        %v4783 = vsel %vm1418, %v4762, 0
        %v4786 = vsel %vm1418, %v4763, 0
        %v4789 = vsel %vm1418, %v4764, 0
        %v4792 = vsel %vm1418, %v4765, 0
        %v4795 = vsel %vm1418, %v4766, 0
        %v4798 = vsel %vm1418, %v4767, 0
        %v4801 = vsel %vm1418, %v4768, 0
        %v4804 = vsel %vm1418, %v4769, 0
        %v4807 = vsel %vm1418, %v4770, 0
        %v4810 = vsel %vm1418, %v4771, 0
        %v4813 = vsel %vm1418, %v4772, 0
        %v4816 = vsel %vm1418, %v4773, 0
        %v4819 = vsel %vm1418, %v4774, 0
        %v4822 = vsel %vm1418, %v4775, 0
        %v4825 = vsel %vm1467, %v4727, 0
        %4827 = vmatprep.subr.bf16.mxu0 0
        %4828 = vmatpush1.bf16.msra.mxu0 0
        %4829 = vmatprep.subr.bf16.mxu0 0
        %4830 = vmatpush1.bf16.msra.mxu0 0
        %4831 = vmatprep.subr.bf16.mxu0 0
        %4832 = vmatpush1.bf16.msra.mxu0 0
        %4833 = vmatprep.subr.bf16.mxu0 0
        %4834 = vmatpush1.bf16.msra.mxu0 0
        %4835 = vmatprep.subr.bf16.mxu0 0
        %4836 = vmatpush1.bf16.msra.mxu0 0
        %4837 = vmatprep.subr.bf16.mxu0 0
        %4838 = vmatpush1.bf16.msra.mxu0 0
        %4839 = vmatprep.subr.bf16.mxu0 0
        %4840 = vmatpush1.bf16.msra.mxu0 0
        %4841 = vmatprep.subr.bf16.mxu0 0
        %4842 = vmatpush1.bf16.msra.mxu0 %v4825
        %4843 = vmatprep.subr.bf16.mxu0 0
        %4844 = vmatpush2.bf16.msra.mxu0 0
        %4845 = vmatprep.subr.bf16.mxu0 0
        %4846 = vmatpush2.bf16.msra.mxu0 0
        %4847 = vmatprep.subr.bf16.mxu0 0
        %4848 = vmatpush2.bf16.msra.mxu0 0
        %4849 = vmatprep.subr.bf16.mxu0 0
        %4850 = vmatpush2.bf16.msra.mxu0 0
        %4851 = vmatprep.subr.bf16.mxu0 0
        %4852 = vmatpush2.bf16.msra.mxu0 0
        %4853 = vmatprep.subr.bf16.mxu0 0
        %4854 = vmatpush2.bf16.msra.mxu0 0
        %4855 = vmatprep.subr.bf16.mxu0 0
        %4856 = vmatpush2.bf16.msra.mxu0 0
        %4857 = vmatprep.subr.bf16.mxu0 0
        %4858 = vmatpush2.bf16.msra.mxu0 0
        %4859 = vmatprep.mubr.bf16.mxu0 0
        %4860 = vmatmul.mubr.bf16.gmra.mxu0 %v4777
        %v4861 = vpop.f32.mrf.mxu0
        %v4862 = vadd.f32 0.0, %v4861
        %v4863 = vpop.f32.mrf.mxu0
        %v4864 = vpop.f32.mrf.mxu0
        %v4865 = vadd.f32 0.0, %v4864
        %v4866 = vpop.f32.mrf.mxu0
        %4867 = vmatprep.mubr.bf16.mxu0 0
        %4868 = vmatmul.mubr.bf16.gmra.mxu0 %v4780
        %v4869 = vpop.f32.mrf.mxu0
        %v4870 = vadd.f32 0.0, %v4869
        %v4871 = vpop.f32.mrf.mxu0
        %v4872 = vpop.f32.mrf.mxu0
        %v4873 = vadd.f32 0.0, %v4872
        %v4874 = vpop.f32.mrf.mxu0
        %4875 = vmatprep.mubr.bf16.mxu0 0
        %4876 = vmatmul.mubr.bf16.gmra.mxu0 %v4783
        %v4877 = vpop.f32.mrf.mxu0
        %v4878 = vadd.f32 0.0, %v4877
        %v4879 = vpop.f32.mrf.mxu0
        %v4880 = vpop.f32.mrf.mxu0
        %v4881 = vadd.f32 0.0, %v4880
        %v4882 = vpop.f32.mrf.mxu0
        %4883 = vmatprep.mubr.bf16.mxu0 0
        %4884 = vmatmul.mubr.bf16.gmra.mxu0 %v4786
        %v4885 = vpop.f32.mrf.mxu0
        %v4886 = vadd.f32 0.0, %v4885
        %v4887 = vpop.f32.mrf.mxu0
        %v4888 = vpop.f32.mrf.mxu0
        %v4889 = vadd.f32 0.0, %v4888
        %v4890 = vpop.f32.mrf.mxu0
        %4891 = vmatprep.mubr.bf16.mxu0 0
        %4892 = vmatmul.mubr.bf16.gmra.mxu0 %v4789
        %v4893 = vpop.f32.mrf.mxu0
        %v4894 = vadd.f32 0.0, %v4893
        %v4895 = vpop.f32.mrf.mxu0
        %v4896 = vpop.f32.mrf.mxu0
        %v4897 = vadd.f32 0.0, %v4896
        %v4898 = vpop.f32.mrf.mxu0
        %4899 = vmatprep.mubr.bf16.mxu0 0
        %4900 = vmatmul.mubr.bf16.gmra.mxu0 %v4792
        %v4901 = vpop.f32.mrf.mxu0
        %v4902 = vadd.f32 0.0, %v4901
        %v4903 = vpop.f32.mrf.mxu0
        %v4904 = vpop.f32.mrf.mxu0
        %v4905 = vadd.f32 0.0, %v4904
        %v4906 = vpop.f32.mrf.mxu0
        %4907 = vmatprep.mubr.bf16.mxu0 0
        %4908 = vmatmul.mubr.bf16.gmra.mxu0 %v4795
        %v4909 = vpop.f32.mrf.mxu0
        %v4910 = vadd.f32 0.0, %v4909
        %v4911 = vpop.f32.mrf.mxu0
        %v4912 = vpop.f32.mrf.mxu0
        %v4913 = vadd.f32 0.0, %v4912
        %v4914 = vpop.f32.mrf.mxu0
        %4915 = vmatprep.mubr.bf16.mxu0 0
        %4916 = vmatmul.mubr.bf16.gmra.mxu0 %v4798
        %v4917 = vpop.f32.mrf.mxu0
        %v4918 = vadd.f32 0.0, %v4917
        %v4919 = vpop.f32.mrf.mxu0
        %v4920 = vpop.f32.mrf.mxu0
        %v4921 = vadd.f32 0.0, %v4920
        %v4922 = vpop.f32.mrf.mxu0
        %4923 = vmatprep.mubr.bf16.mxu0 0
        %4924 = vmatmul.mubr.bf16.gmra.mxu0 %v4801
        %v4925 = vpop.f32.mrf.mxu0
        %v4926 = vadd.f32 0.0, %v4925
        %v4927 = vpop.f32.mrf.mxu0
        %v4928 = vpop.f32.mrf.mxu0
        %v4929 = vadd.f32 0.0, %v4928
        %v4930 = vpop.f32.mrf.mxu0
        %4931 = vmatprep.mubr.bf16.mxu0 0
        %4932 = vmatmul.mubr.bf16.gmra.mxu0 %v4804
        %v4933 = vpop.f32.mrf.mxu0
        %v4934 = vadd.f32 0.0, %v4933
        %v4935 = vpop.f32.mrf.mxu0
        %v4936 = vpop.f32.mrf.mxu0
        %v4937 = vadd.f32 0.0, %v4936
        %v4938 = vpop.f32.mrf.mxu0
        %4939 = vmatprep.mubr.bf16.mxu0 0
        %4940 = vmatmul.mubr.bf16.gmra.mxu0 %v4807
        %v4941 = vpop.f32.mrf.mxu0
        %v4942 = vadd.f32 0.0, %v4941
        %v4943 = vpop.f32.mrf.mxu0
        %v4944 = vpop.f32.mrf.mxu0
        %v4945 = vadd.f32 0.0, %v4944
        %v4946 = vpop.f32.mrf.mxu0
        %4947 = vmatprep.mubr.bf16.mxu0 0
        %4948 = vmatmul.mubr.bf16.gmra.mxu0 %v4810
        %v4949 = vpop.f32.mrf.mxu0
        %v4950 = vadd.f32 0.0, %v4949
        %v4951 = vpop.f32.mrf.mxu0
        %v4952 = vpop.f32.mrf.mxu0
        %v4953 = vadd.f32 0.0, %v4952
        %v4954 = vpop.f32.mrf.mxu0
        %4955 = vmatprep.mubr.bf16.mxu0 0
        %4956 = vmatmul.mubr.bf16.gmra.mxu0 %v4813
        %v4957 = vpop.f32.mrf.mxu0
        %v4958 = vadd.f32 0.0, %v4957
        %v4959 = vpop.f32.mrf.mxu0
        %v4960 = vpop.f32.mrf.mxu0
        %v4961 = vadd.f32 0.0, %v4960
        %v4962 = vpop.f32.mrf.mxu0
        %4963 = vmatprep.mubr.bf16.mxu0 0
        %4964 = vmatmul.mubr.bf16.gmra.mxu0 %v4816
        %v4965 = vpop.f32.mrf.mxu0
        %v4966 = vadd.f32 0.0, %v4965
        %v4967 = vpop.f32.mrf.mxu0
        %v4968 = vpop.f32.mrf.mxu0
        %v4969 = vadd.f32 0.0, %v4968
        %v4970 = vpop.f32.mrf.mxu0
        %4971 = vmatprep.mubr.bf16.mxu0 0
        %4972 = vmatmul.mubr.bf16.gmra.mxu0 %v4819
        %v4973 = vpop.f32.mrf.mxu0
        %v4974 = vadd.f32 0.0, %v4973
        %v4975 = vpop.f32.mrf.mxu0
        %v4976 = vpop.f32.mrf.mxu0
        %v4977 = vadd.f32 0.0, %v4976
        %v4978 = vpop.f32.mrf.mxu0
        %4979 = vmatprep.mubr.bf16.mxu0 0
        %4980 = vmatmul.mubr.bf16.gmra.mxu0 %v4822
        %v4981 = vpop.f32.mrf.mxu0
        %v4982 = vadd.f32 0.0, %v4981
        %v4983 = vpop.f32.mrf.mxu0
        %v4984 = vpop.f32.mrf.mxu0
        %v4985 = vadd.f32 0.0, %v4984
        %v4986 = vpop.f32.mrf.mxu0
        %4987 = vdwg.mxu0
        %v4988 = vadd.f32 %v4262, %v4862
        %v4989 = vadd.f32 %v4263, %v4865
        %v4990 = vadd.f32 %v4264, %v4870
        %v4991 = vadd.f32 %v4265, %v4873
        %v4992 = vadd.f32 %v4266, %v4878
        %v4993 = vadd.f32 %v4267, %v4881
        %v4994 = vadd.f32 %v4268, %v4886
        %v4995 = vadd.f32 %v4269, %v4889
        %v4996 = vadd.f32 %v4270, %v4894
        %v4997 = vadd.f32 %v4271, %v4897
        %v4998 = vadd.f32 %v4272, %v4902
        %v4999 = vadd.f32 %v4273, %v4905
        %v5000 = vadd.f32 %v4274, %v4910
        %v5001 = vadd.f32 %v4275, %v4913
        %v5002 = vadd.f32 %v4276, %v4918
        %v5003 = vadd.f32 %v4277, %v4921
        %v5004 = vadd.f32 %v4278, %v4926
        %v5005 = vadd.f32 %v4279, %v4929
        %v5006 = vadd.f32 %v4280, %v4934
        %v5007 = vadd.f32 %v4281, %v4937
        %v5008 = vadd.f32 %v4282, %v4942
        %v5009 = vadd.f32 %v4283, %v4945
        %v5010 = vadd.f32 %v4284, %v4950
        %v5011 = vadd.f32 %v4285, %v4953
        %v5012 = vadd.f32 %v4286, %v4958
        %v5013 = vadd.f32 %v4287, %v4961
        %v5014 = vadd.f32 %v4288, %v4966
        %v5015 = vadd.f32 %v4289, %v4969
        %v5016 = vadd.f32 %v4290, %v4974
        %v5017 = vadd.f32 %v4291, %v4977
        %v5018 = vadd.f32 %v4292, %v4982
        %v5019 = vadd.f32 %v4293, %v4985
        %v5020 = vld [vmem:[%s3935] sm:$0xe]
        %v5021 = vld [vmem:[%s3935 + $0xc] sm:$0xe]
        %v5022 = vld [vmem:[%s3935 + $0x18] sm:$0xe]
        %v5023 = vld [vmem:[%s3935 + $0x24] sm:$0xe]
        %v5024 = vld [vmem:[%s3935 + $0x30] sm:$0xe]
        %v5025 = vld [vmem:[%s3935 + $0x3c] sm:$0xe]
        %v5026 = vld [vmem:[%s3935 + $0x48] sm:$0xe]
        %v5027 = vld [vmem:[%s3935 + $0x54] sm:$0xe]
        %v5028 = vld [vmem:[%s3935 + $0x60] sm:$0xe]
        %v5029 = vld [vmem:[%s3935 + $0x6c] sm:$0xe]
        %v5030 = vld [vmem:[%s3935 + $0x78] sm:$0xe]
        %v5031 = vld [vmem:[%s3935 + $0x84] sm:$0xe]
        %v5032 = vld [vmem:[%s3935 + $0x90] sm:$0xe]
        %v5033 = vld [vmem:[%s3935 + $0x9c] sm:$0xe]
        %v5034 = vld [vmem:[%s3935 + $0xa8] sm:$0xe]
        %v5035 = vld [vmem:[%s3935 + $0xb4] sm:$0xe]
        %v5084 = vrot.slane %v5020, 5
        %v5085 = vrot.slane %v5084, 4
        %v5086 = vrot.slane %v4295, 5
        %v5087 = vsel %vm1974, %v5085, %v5086
        %v5088 = vrot.slane %v5086, 4
        %v5089 = vrot.slane %v4296, 5
        %v5090 = vsel %vm1974, %v5088, %v5089
        %v5091 = vrot.slane %v5021, 5
        %v5092 = vrot.slane %v5091, 4
        %v5093 = vrot.slane %v4298, 5
        %v5094 = vsel %vm1974, %v5092, %v5093
        %v5095 = vrot.slane %v5093, 4
        %v5096 = vrot.slane %v4299, 5
        %v5097 = vsel %vm1974, %v5095, %v5096
        %v5098 = vrot.slane %v5022, 5
        %v5099 = vrot.slane %v5098, 4
        %v5100 = vrot.slane %v4301, 5
        %v5101 = vsel %vm1974, %v5099, %v5100
        %v5102 = vrot.slane %v5100, 4
        %v5103 = vrot.slane %v4302, 5
        %v5104 = vsel %vm1974, %v5102, %v5103
        %v5105 = vrot.slane %v5023, 5
        %v5106 = vrot.slane %v5105, 4
        %v5107 = vrot.slane %v4304, 5
        %v5108 = vsel %vm1974, %v5106, %v5107
        %v5109 = vrot.slane %v5107, 4
        %v5110 = vrot.slane %v4305, 5
        %v5111 = vsel %vm1974, %v5109, %v5110
        %v5112 = vrot.slane %v5024, 5
        %v5113 = vrot.slane %v5112, 4
        %v5114 = vrot.slane %v4307, 5
        %v5115 = vsel %vm1974, %v5113, %v5114
        %v5116 = vrot.slane %v5114, 4
        %v5117 = vrot.slane %v4308, 5
        %v5118 = vsel %vm1974, %v5116, %v5117
        %v5119 = vrot.slane %v5025, 5
        %v5120 = vrot.slane %v5119, 4
        %v5121 = vrot.slane %v4310, 5
        %v5122 = vsel %vm1974, %v5120, %v5121
        %v5123 = vrot.slane %v5121, 4
        %v5124 = vrot.slane %v4311, 5
        %v5125 = vsel %vm1974, %v5123, %v5124
        %v5126 = vrot.slane %v5026, 5
        %v5127 = vrot.slane %v5126, 4
        %v5128 = vrot.slane %v4313, 5
        %v5129 = vsel %vm1974, %v5127, %v5128
        %v5130 = vrot.slane %v5128, 4
        %v5131 = vrot.slane %v4314, 5
        %v5132 = vsel %vm1974, %v5130, %v5131
        %v5133 = vrot.slane %v5027, 5
        %v5134 = vrot.slane %v5133, 4
        %v5135 = vrot.slane %v4316, 5
        %v5136 = vsel %vm1974, %v5134, %v5135
        %v5137 = vrot.slane %v5135, 4
        %v5138 = vrot.slane %v4317, 5
        %v5139 = vsel %vm1974, %v5137, %v5138
        %v5140 = vrot.slane %v5028, 5
        %v5141 = vrot.slane %v5140, 4
        %v5142 = vrot.slane %v4319, 5
        %v5143 = vsel %vm1974, %v5141, %v5142
        %v5144 = vrot.slane %v5142, 4
        %v5145 = vrot.slane %v4320, 5
        %v5146 = vsel %vm1974, %v5144, %v5145
        %v5147 = vrot.slane %v5029, 5
        %v5148 = vrot.slane %v5147, 4
        %v5149 = vrot.slane %v4322, 5
        %v5150 = vsel %vm1974, %v5148, %v5149
        %v5151 = vrot.slane %v5149, 4
        %v5152 = vrot.slane %v4323, 5
        %v5153 = vsel %vm1974, %v5151, %v5152
        %v5154 = vrot.slane %v5030, 5
        %v5155 = vrot.slane %v5154, 4
        %v5156 = vrot.slane %v4325, 5
        %v5157 = vsel %vm1974, %v5155, %v5156
        %v5158 = vrot.slane %v5156, 4
        %v5159 = vrot.slane %v4326, 5
        %v5160 = vsel %vm1974, %v5158, %v5159
        %v5161 = vrot.slane %v5031, 5
        %v5162 = vrot.slane %v5161, 4
        %v5163 = vrot.slane %v4328, 5
        %v5164 = vsel %vm1974, %v5162, %v5163
        %v5165 = vrot.slane %v5163, 4
        %v5166 = vrot.slane %v4329, 5
        %v5167 = vsel %vm1974, %v5165, %v5166
        %v5168 = vrot.slane %v5032, 5
        %v5169 = vrot.slane %v5168, 4
        %v5170 = vrot.slane %v4331, 5
        %v5171 = vsel %vm1974, %v5169, %v5170
        %v5172 = vrot.slane %v5170, 4
        %v5173 = vrot.slane %v4332, 5
        %v5174 = vsel %vm1974, %v5172, %v5173
        %v5175 = vrot.slane %v5033, 5
        %v5176 = vrot.slane %v5175, 4
        %v5177 = vrot.slane %v4334, 5
        %v5178 = vsel %vm1974, %v5176, %v5177
        %v5179 = vrot.slane %v5177, 4
        %v5180 = vrot.slane %v4335, 5
        %v5181 = vsel %vm1974, %v5179, %v5180
        %v5182 = vrot.slane %v5034, 5
        %v5183 = vrot.slane %v5182, 4
        %v5184 = vrot.slane %v4337, 5
        %v5185 = vsel %vm1974, %v5183, %v5184
        %v5186 = vrot.slane %v5184, 4
        %v5187 = vrot.slane %v4338, 5
        %v5188 = vsel %vm1974, %v5186, %v5187
        %v5189 = vrot.slane %v5035, 5
        %v5190 = vrot.slane %v5189, 4
        %v5191 = vrot.slane %v4340, 5
        %v5192 = vsel %vm1974, %v5190, %v5191
        %v5193 = vrot.slane %v5191, 4
        %v5194 = vrot.slane %v4341, 5
        %v5195 = vsel %vm1974, %v5193, %v5194
        %s5196 = scalar_lea.vmem %s1, 16
        %v5197 = vld [vmem:[%s5196] sm:$0x3]
        %v5198 = vunpack.c.l.b16 %v5087
        %v5199 = vunpack.c.l.b16 %v5090
        %v5200 = vunpack.c.l.b16 %v5094
        %v5201 = vunpack.c.l.b16 %v5097
        %v5202 = vunpack.c.l.b16 %v5101
        %v5203 = vunpack.c.l.b16 %v5104
        %v5204 = vunpack.c.l.b16 %v5108
        %v5205 = vunpack.c.l.b16 %v5111
        %v5206 = vunpack.c.l.b16 %v5115
        %v5207 = vunpack.c.l.b16 %v5118
        %v5208 = vunpack.c.l.b16 %v5122
        %v5209 = vunpack.c.l.b16 %v5125
        %v5210 = vunpack.c.l.b16 %v5129
        %v5211 = vunpack.c.l.b16 %v5132
        %v5212 = vunpack.c.l.b16 %v5136
        %v5213 = vunpack.c.l.b16 %v5139
        %v5214 = vunpack.c.l.b16 %v5143
        %v5215 = vunpack.c.l.b16 %v5146
        %v5216 = vunpack.c.l.b16 %v5150
        %v5217 = vunpack.c.l.b16 %v5153
        %v5218 = vunpack.c.l.b16 %v5157
        %v5219 = vunpack.c.l.b16 %v5160
        %v5220 = vunpack.c.l.b16 %v5164
        %v5221 = vunpack.c.l.b16 %v5167
        %v5222 = vunpack.c.l.b16 %v5171
        %v5223 = vunpack.c.l.b16 %v5174
        %v5224 = vunpack.c.l.b16 %v5178
        %v5225 = vunpack.c.l.b16 %v5181
        %v5226 = vunpack.c.l.b16 %v5185
        %v5227 = vunpack.c.l.b16 %v5188
        %v5228 = vunpack.c.l.b16 %v5192
        %v5229 = vunpack.c.l.b16 %v5195
        %v5230 = vpack.c.b16 %v5199, %v5198
        %v5231 = vpack.c.b16 %v5201, %v5200
        %v5232 = vpack.c.b16 %v5203, %v5202
        %v5233 = vpack.c.b16 %v5205, %v5204
        %v5234 = vpack.c.b16 %v5207, %v5206
        %v5235 = vpack.c.b16 %v5209, %v5208
        %v5236 = vpack.c.b16 %v5211, %v5210
        %v5237 = vpack.c.b16 %v5213, %v5212
        %v5238 = vpack.c.b16 %v5215, %v5214
        %v5239 = vpack.c.b16 %v5217, %v5216
        %v5240 = vpack.c.b16 %v5219, %v5218
        %v5241 = vpack.c.b16 %v5221, %v5220
        %v5242 = vpack.c.b16 %v5223, %v5222
        %v5243 = vpack.c.b16 %v5225, %v5224
        %v5244 = vpack.c.b16 %v5227, %v5226
        %v5245 = vpack.c.b16 %v5229, %v5228
        %v5247 = vsel %vm1418, %v5230, 0
        %v5250 = vsel %vm1418, %v5231, 0
        %v5253 = vsel %vm1418, %v5232, 0
        %v5256 = vsel %vm1418, %v5233, 0
        %v5259 = vsel %vm1418, %v5234, 0
        %v5262 = vsel %vm1418, %v5235, 0
        %v5265 = vsel %vm1418, %v5236, 0
        %v5268 = vsel %vm1418, %v5237, 0
        %v5271 = vsel %vm1418, %v5238, 0
        %v5274 = vsel %vm1418, %v5239, 0
        %v5277 = vsel %vm1418, %v5240, 0
        %v5280 = vsel %vm1418, %v5241, 0
        %v5283 = vsel %vm1418, %v5242, 0
        %v5286 = vsel %vm1418, %v5243, 0
        %v5289 = vsel %vm1418, %v5244, 0
        %v5292 = vsel %vm1418, %v5245, 0
        %v5295 = vsel %vm1467, %v5197, 0
        %5297 = vmatprep.subr.bf16.mxu0 0
        %5298 = vmatpush1.bf16.msra.mxu0 0
        %5299 = vmatprep.subr.bf16.mxu0 0
        %5300 = vmatpush1.bf16.msra.mxu0 0
        %5301 = vmatprep.subr.bf16.mxu0 0
        %5302 = vmatpush1.bf16.msra.mxu0 0
        %5303 = vmatprep.subr.bf16.mxu0 0
        %5304 = vmatpush1.bf16.msra.mxu0 0
        %5305 = vmatprep.subr.bf16.mxu0 0
        %5306 = vmatpush1.bf16.msra.mxu0 0
        %5307 = vmatprep.subr.bf16.mxu0 0
        %5308 = vmatpush1.bf16.msra.mxu0 0
        %5309 = vmatprep.subr.bf16.mxu0 0
        %5310 = vmatpush1.bf16.msra.mxu0 0
        %5311 = vmatprep.subr.bf16.mxu0 0
        %5312 = vmatpush1.bf16.msra.mxu0 %v5295
        %5313 = vmatprep.subr.bf16.mxu0 0
        %5314 = vmatpush2.bf16.msra.mxu0 0
        %5315 = vmatprep.subr.bf16.mxu0 0
        %5316 = vmatpush2.bf16.msra.mxu0 0
        %5317 = vmatprep.subr.bf16.mxu0 0
        %5318 = vmatpush2.bf16.msra.mxu0 0
        %5319 = vmatprep.subr.bf16.mxu0 0
        %5320 = vmatpush2.bf16.msra.mxu0 0
        %5321 = vmatprep.subr.bf16.mxu0 0
        %5322 = vmatpush2.bf16.msra.mxu0 0
        %5323 = vmatprep.subr.bf16.mxu0 0
        %5324 = vmatpush2.bf16.msra.mxu0 0
        %5325 = vmatprep.subr.bf16.mxu0 0
        %5326 = vmatpush2.bf16.msra.mxu0 0
        %5327 = vmatprep.subr.bf16.mxu0 0
        %5328 = vmatpush2.bf16.msra.mxu0 0
        %5329 = vmatprep.mubr.bf16.mxu0 0
        %5330 = vmatmul.mubr.bf16.gmra.mxu0 %v5247
        %v5331 = vpop.f32.mrf.mxu0
        %v5332 = vadd.f32 0.0, %v5331
        %v5333 = vpop.f32.mrf.mxu0
        %v5334 = vpop.f32.mrf.mxu0
        %v5335 = vadd.f32 0.0, %v5334
        %v5336 = vpop.f32.mrf.mxu0
        %5337 = vmatprep.mubr.bf16.mxu0 0
        %5338 = vmatmul.mubr.bf16.gmra.mxu0 %v5250
        %v5339 = vpop.f32.mrf.mxu0
        %v5340 = vadd.f32 0.0, %v5339
        %v5341 = vpop.f32.mrf.mxu0
        %v5342 = vpop.f32.mrf.mxu0
        %v5343 = vadd.f32 0.0, %v5342
        %v5344 = vpop.f32.mrf.mxu0
        %5345 = vmatprep.mubr.bf16.mxu0 0
        %5346 = vmatmul.mubr.bf16.gmra.mxu0 %v5253
        %v5347 = vpop.f32.mrf.mxu0
        %v5348 = vadd.f32 0.0, %v5347
        %v5349 = vpop.f32.mrf.mxu0
        %v5350 = vpop.f32.mrf.mxu0
        %v5351 = vadd.f32 0.0, %v5350
        %v5352 = vpop.f32.mrf.mxu0
        %5353 = vmatprep.mubr.bf16.mxu0 0
        %5354 = vmatmul.mubr.bf16.gmra.mxu0 %v5256
        %v5355 = vpop.f32.mrf.mxu0
        %v5356 = vadd.f32 0.0, %v5355
        %v5357 = vpop.f32.mrf.mxu0
        %v5358 = vpop.f32.mrf.mxu0
        %v5359 = vadd.f32 0.0, %v5358
        %v5360 = vpop.f32.mrf.mxu0
        %5361 = vmatprep.mubr.bf16.mxu0 0
        %5362 = vmatmul.mubr.bf16.gmra.mxu0 %v5259
        %v5363 = vpop.f32.mrf.mxu0
        %v5364 = vadd.f32 0.0, %v5363
        %v5365 = vpop.f32.mrf.mxu0
        %v5366 = vpop.f32.mrf.mxu0
        %v5367 = vadd.f32 0.0, %v5366
        %v5368 = vpop.f32.mrf.mxu0
        %5369 = vmatprep.mubr.bf16.mxu0 0
        %5370 = vmatmul.mubr.bf16.gmra.mxu0 %v5262
        %v5371 = vpop.f32.mrf.mxu0
        %v5372 = vadd.f32 0.0, %v5371
        %v5373 = vpop.f32.mrf.mxu0
        %v5374 = vpop.f32.mrf.mxu0
        %v5375 = vadd.f32 0.0, %v5374
        %v5376 = vpop.f32.mrf.mxu0
        %5377 = vmatprep.mubr.bf16.mxu0 0
        %5378 = vmatmul.mubr.bf16.gmra.mxu0 %v5265
        %v5379 = vpop.f32.mrf.mxu0
        %v5380 = vadd.f32 0.0, %v5379
        %v5381 = vpop.f32.mrf.mxu0
        %v5382 = vpop.f32.mrf.mxu0
        %v5383 = vadd.f32 0.0, %v5382
        %v5384 = vpop.f32.mrf.mxu0
        %5385 = vmatprep.mubr.bf16.mxu0 0
        %5386 = vmatmul.mubr.bf16.gmra.mxu0 %v5268
        %v5387 = vpop.f32.mrf.mxu0
        %v5388 = vadd.f32 0.0, %v5387
        %v5389 = vpop.f32.mrf.mxu0
        %v5390 = vpop.f32.mrf.mxu0
        %v5391 = vadd.f32 0.0, %v5390
        %v5392 = vpop.f32.mrf.mxu0
        %5393 = vmatprep.mubr.bf16.mxu0 0
        %5394 = vmatmul.mubr.bf16.gmra.mxu0 %v5271
        %v5395 = vpop.f32.mrf.mxu0
        %v5396 = vadd.f32 0.0, %v5395
        %v5397 = vpop.f32.mrf.mxu0
        %v5398 = vpop.f32.mrf.mxu0
        %v5399 = vadd.f32 0.0, %v5398
        %v5400 = vpop.f32.mrf.mxu0
        %5401 = vmatprep.mubr.bf16.mxu0 0
        %5402 = vmatmul.mubr.bf16.gmra.mxu0 %v5274
        %v5403 = vpop.f32.mrf.mxu0
        %v5404 = vadd.f32 0.0, %v5403
        %v5405 = vpop.f32.mrf.mxu0
        %v5406 = vpop.f32.mrf.mxu0
        %v5407 = vadd.f32 0.0, %v5406
        %v5408 = vpop.f32.mrf.mxu0
        %5409 = vmatprep.mubr.bf16.mxu0 0
        %5410 = vmatmul.mubr.bf16.gmra.mxu0 %v5277
        %v5411 = vpop.f32.mrf.mxu0
        %v5412 = vadd.f32 0.0, %v5411
        %v5413 = vpop.f32.mrf.mxu0
        %v5414 = vpop.f32.mrf.mxu0
        %v5415 = vadd.f32 0.0, %v5414
        %v5416 = vpop.f32.mrf.mxu0
        %5417 = vmatprep.mubr.bf16.mxu0 0
        %5418 = vmatmul.mubr.bf16.gmra.mxu0 %v5280
        %v5419 = vpop.f32.mrf.mxu0
        %v5420 = vadd.f32 0.0, %v5419
        %v5421 = vpop.f32.mrf.mxu0
        %v5422 = vpop.f32.mrf.mxu0
        %v5423 = vadd.f32 0.0, %v5422
        %v5424 = vpop.f32.mrf.mxu0
        %5425 = vmatprep.mubr.bf16.mxu0 0
        %5426 = vmatmul.mubr.bf16.gmra.mxu0 %v5283
        %v5427 = vpop.f32.mrf.mxu0
        %v5428 = vadd.f32 0.0, %v5427
        %v5429 = vpop.f32.mrf.mxu0
        %v5430 = vpop.f32.mrf.mxu0
        %v5431 = vadd.f32 0.0, %v5430
        %v5432 = vpop.f32.mrf.mxu0
        %5433 = vmatprep.mubr.bf16.mxu0 0
        %5434 = vmatmul.mubr.bf16.gmra.mxu0 %v5286
        %v5435 = vpop.f32.mrf.mxu0
        %v5436 = vadd.f32 0.0, %v5435
        %v5437 = vpop.f32.mrf.mxu0
        %v5438 = vpop.f32.mrf.mxu0
        %v5439 = vadd.f32 0.0, %v5438
        %v5440 = vpop.f32.mrf.mxu0
        %5441 = vmatprep.mubr.bf16.mxu0 0
        %5442 = vmatmul.mubr.bf16.gmra.mxu0 %v5289
        %v5443 = vpop.f32.mrf.mxu0
        %v5444 = vadd.f32 0.0, %v5443
        %v5445 = vpop.f32.mrf.mxu0
        %v5446 = vpop.f32.mrf.mxu0
        %v5447 = vadd.f32 0.0, %v5446
        %v5448 = vpop.f32.mrf.mxu0
        %5449 = vmatprep.mubr.bf16.mxu0 0
        %5450 = vmatmul.mubr.bf16.gmra.mxu0 %v5292
        %v5451 = vpop.f32.mrf.mxu0
        %v5452 = vadd.f32 0.0, %v5451
        %v5453 = vpop.f32.mrf.mxu0
        %v5454 = vpop.f32.mrf.mxu0
        %v5455 = vadd.f32 0.0, %v5454
        %v5456 = vpop.f32.mrf.mxu0
        %5457 = vdwg.mxu0
        %v5458 = vadd.f32 %v4988, %v5332
        %v5459 = vadd.f32 %v4989, %v5335
        %v5460 = vadd.f32 %v4990, %v5340
        %v5461 = vadd.f32 %v4991, %v5343
        %v5462 = vadd.f32 %v4992, %v5348
        %v5463 = vadd.f32 %v4993, %v5351
        %v5464 = vadd.f32 %v4994, %v5356
        %v5465 = vadd.f32 %v4995, %v5359
        %v5466 = vadd.f32 %v4996, %v5364
        %v5467 = vadd.f32 %v4997, %v5367
        %v5468 = vadd.f32 %v4998, %v5372
        %v5469 = vadd.f32 %v4999, %v5375
        %v5470 = vadd.f32 %v5000, %v5380
        %v5471 = vadd.f32 %v5001, %v5383
        %v5472 = vadd.f32 %v5002, %v5388
        %v5473 = vadd.f32 %v5003, %v5391
        %v5474 = vadd.f32 %v5004, %v5396
        %v5475 = vadd.f32 %v5005, %v5399
        %v5476 = vadd.f32 %v5006, %v5404
        %v5477 = vadd.f32 %v5007, %v5407
        %v5478 = vadd.f32 %v5008, %v5412
        %v5479 = vadd.f32 %v5009, %v5415
        %v5480 = vadd.f32 %v5010, %v5420
        %v5481 = vadd.f32 %v5011, %v5423
        %v5482 = vadd.f32 %v5012, %v5428
        %v5483 = vadd.f32 %v5013, %v5431
        %v5484 = vadd.f32 %v5014, %v5436
        %v5485 = vadd.f32 %v5015, %v5439
        %v5486 = vadd.f32 %v5016, %v5444
        %v5487 = vadd.f32 %v5017, %v5447
        %v5488 = vadd.f32 %v5018, %v5452
        %v5489 = vadd.f32 %v5019, %v5455
        %v5490 = vld [vmem:[%s2] sm:$0x1]
        %v5492 = vlaneseq
        %v5493 = vshrl.u32 %v5492, 7
        %v5494 = vsub.s32 0, %v5493
        %v5495 = vrot.slane %v5490, %v5494
        %v5497 = vadd.f32 %v5458, %v5495
        %v5498 = vadd.f32 %v5459, %v5495
        %v5499 = vadd.f32 %v5460, %v5495
        %v5500 = vadd.f32 %v5461, %v5495
        %v5501 = vadd.f32 %v5462, %v5495
        %v5502 = vadd.f32 %v5463, %v5495
        %v5503 = vadd.f32 %v5464, %v5495
        %v5504 = vadd.f32 %v5465, %v5495
        %v5505 = vadd.f32 %v5466, %v5495
        %v5506 = vadd.f32 %v5467, %v5495
        %v5507 = vadd.f32 %v5468, %v5495
        %v5508 = vadd.f32 %v5469, %v5495
        %v5509 = vadd.f32 %v5470, %v5495
        %v5510 = vadd.f32 %v5471, %v5495
        %v5511 = vadd.f32 %v5472, %v5495
        %v5512 = vadd.f32 %v5473, %v5495
        %v5513 = vadd.f32 %v5474, %v5495
        %v5514 = vadd.f32 %v5475, %v5495
        %v5515 = vadd.f32 %v5476, %v5495
        %v5516 = vadd.f32 %v5477, %v5495
        %v5517 = vadd.f32 %v5478, %v5495
        %v5518 = vadd.f32 %v5479, %v5495
        %v5519 = vadd.f32 %v5480, %v5495
        %v5520 = vadd.f32 %v5481, %v5495
        %v5521 = vadd.f32 %v5482, %v5495
        %v5522 = vadd.f32 %v5483, %v5495
        %v5523 = vadd.f32 %v5484, %v5495
        %v5524 = vadd.f32 %v5485, %v5495
        %v5525 = vadd.f32 %v5486, %v5495
        %v5526 = vadd.f32 %v5487, %v5495
        %v5527 = vadd.f32 %v5488, %v5495
        %v5528 = vadd.f32 %v5489, %v5495
        %v5529 = vpack.c.bf16 %v5498, %v5497
        %v5530 = vpack.c.bf16 %v5500, %v5499
        %v5531 = vpack.c.bf16 %v5502, %v5501
        %v5532 = vpack.c.bf16 %v5504, %v5503
        %v5533 = vpack.c.bf16 %v5506, %v5505
        %v5534 = vpack.c.bf16 %v5508, %v5507
        %v5535 = vpack.c.bf16 %v5510, %v5509
        %v5536 = vpack.c.bf16 %v5512, %v5511
        %v5537 = vpack.c.bf16 %v5514, %v5513
        %v5538 = vpack.c.bf16 %v5516, %v5515
        %v5539 = vpack.c.bf16 %v5518, %v5517
        %v5540 = vpack.c.bf16 %v5520, %v5519
        %v5541 = vpack.c.bf16 %v5522, %v5521
        %v5542 = vpack.c.bf16 %v5524, %v5523
        %v5543 = vpack.c.bf16 %v5526, %v5525
        %v5544 = vpack.c.bf16 %v5528, %v5527
        %v5561 = vunpack.c.l.b16 %v5529
        %v5562 = vunpack.c.h.b16 %v5529
        %v5563 = vunpack.c.l.b16 %v5530
        %v5564 = vunpack.c.h.b16 %v5530
        %v5565 = vunpack.c.l.b16 %v5531
        %v5566 = vunpack.c.h.b16 %v5531
        %v5567 = vunpack.c.l.b16 %v5532
        %v5568 = vunpack.c.h.b16 %v5532
        %v5569 = vunpack.c.l.b16 %v5533
        %v5570 = vunpack.c.h.b16 %v5533
        %v5571 = vunpack.c.l.b16 %v5534
        %v5572 = vunpack.c.h.b16 %v5534
        %v5573 = vunpack.c.l.b16 %v5535
        %v5574 = vunpack.c.h.b16 %v5535
        %v5575 = vunpack.c.l.b16 %v5536
        %v5576 = vunpack.c.h.b16 %v5536
        %v5577 = vunpack.c.l.b16 %v5537
        %v5578 = vunpack.c.h.b16 %v5537
        %v5579 = vunpack.c.l.b16 %v5538
        %v5580 = vunpack.c.h.b16 %v5538
        %v5581 = vunpack.c.l.b16 %v5539
        %v5582 = vunpack.c.h.b16 %v5539
        %v5583 = vunpack.c.l.b16 %v5540
        %v5584 = vunpack.c.h.b16 %v5540
        %v5585 = vunpack.c.l.b16 %v5541
        %v5586 = vunpack.c.h.b16 %v5541
        %v5587 = vunpack.c.l.b16 %v5542
        %v5588 = vunpack.c.h.b16 %v5542
        %v5589 = vunpack.c.l.b16 %v5543
        %v5590 = vunpack.c.h.b16 %v5543
        %v5591 = vunpack.c.l.b16 %v5544
        %v5592 = vunpack.c.h.b16 %v5544
        %v5593 = vpack.c.b16 %v5561, %v5561
        %v5594 = vpack.c.b16 %v5562, %v5562
        %v5595 = vpack.c.b16 %v5563, %v5563
        %v5596 = vpack.c.b16 %v5564, %v5564
        %v5597 = vpack.c.b16 %v5565, %v5565
        %v5598 = vpack.c.b16 %v5566, %v5566
        %v5599 = vpack.c.b16 %v5567, %v5567
        %v5600 = vpack.c.b16 %v5568, %v5568
        %v5601 = vpack.c.b16 %v5569, %v5569
        %v5602 = vpack.c.b16 %v5570, %v5570
        %v5603 = vpack.c.b16 %v5571, %v5571
        %v5604 = vpack.c.b16 %v5572, %v5572
        %v5605 = vpack.c.b16 %v5573, %v5573
        %v5606 = vpack.c.b16 %v5574, %v5574
        %v5607 = vpack.c.b16 %v5575, %v5575
        %v5608 = vpack.c.b16 %v5576, %v5576
        %v5609 = vpack.c.b16 %v5577, %v5577
        %v5610 = vpack.c.b16 %v5578, %v5578
        %v5611 = vpack.c.b16 %v5579, %v5579
        %v5612 = vpack.c.b16 %v5580, %v5580
        %v5613 = vpack.c.b16 %v5581, %v5581
        %v5614 = vpack.c.b16 %v5582, %v5582
        %v5615 = vpack.c.b16 %v5583, %v5583
        %v5616 = vpack.c.b16 %v5584, %v5584
        %v5617 = vpack.c.b16 %v5585, %v5585
        %v5618 = vpack.c.b16 %v5586, %v5586
        %v5619 = vpack.c.b16 %v5587, %v5587
        %v5620 = vpack.c.b16 %v5588, %v5588
        %v5621 = vpack.c.b16 %v5589, %v5589
        %v5622 = vpack.c.b16 %v5590, %v5590
        %v5623 = vpack.c.b16 %v5591, %v5591
        %v5624 = vpack.c.b16 %v5592, %v5592
        %vm5657 = vcmask 60416
        %5658 = vst.msk [vmem:[%s243] sm:$0xf] %vm5657, %v5593
        %5659 = vst.msk [vmem:[%s243 + $0x4] sm:$0xf] %vm5657, %v5594
        %5660 = vst.msk [vmem:[%s243 + $0x8] sm:$0xf] %vm5657, %v5595
        %5661 = vst.msk [vmem:[%s243 + $0xc] sm:$0xf] %vm5657, %v5596
        %5662 = vst.msk [vmem:[%s243 + $0x10] sm:$0xf] %vm5657, %v5597
        %5663 = vst.msk [vmem:[%s243 + $0x14] sm:$0xf] %vm5657, %v5598
        %5664 = vst.msk [vmem:[%s243 + $0x18] sm:$0xf] %vm5657, %v5599
        %5665 = vst.msk [vmem:[%s243 + $0x1c] sm:$0xf] %vm5657, %v5600
        %5666 = vst.msk [vmem:[%s243 + $0x20] sm:$0xf] %vm5657, %v5601
        %5667 = vst.msk [vmem:[%s243 + $0x24] sm:$0xf] %vm5657, %v5602
        %5668 = vst.msk [vmem:[%s243 + $0x28] sm:$0xf] %vm5657, %v5603
        %5669 = vst.msk [vmem:[%s243 + $0x2c] sm:$0xf] %vm5657, %v5604
        %5670 = vst.msk [vmem:[%s243 + $0x30] sm:$0xf] %vm5657, %v5605
        %5671 = vst.msk [vmem:[%s243 + $0x34] sm:$0xf] %vm5657, %v5606
        %5672 = vst.msk [vmem:[%s243 + $0x38] sm:$0xf] %vm5657, %v5607
        %5673 = vst.msk [vmem:[%s243 + $0x3c] sm:$0xf] %vm5657, %v5608
        %5674 = vst.msk [vmem:[%s243 + $0x40] sm:$0xf] %vm5657, %v5609
        %5675 = vst.msk [vmem:[%s243 + $0x44] sm:$0xf] %vm5657, %v5610
        %5676 = vst.msk [vmem:[%s243 + $0x48] sm:$0xf] %vm5657, %v5611
        %5677 = vst.msk [vmem:[%s243 + $0x4c] sm:$0xf] %vm5657, %v5612
        %5678 = vst.msk [vmem:[%s243 + $0x50] sm:$0xf] %vm5657, %v5613
        %5679 = vst.msk [vmem:[%s243 + $0x54] sm:$0xf] %vm5657, %v5614
        %5680 = vst.msk [vmem:[%s243 + $0x58] sm:$0xf] %vm5657, %v5615
        %5681 = vst.msk [vmem:[%s243 + $0x5c] sm:$0xf] %vm5657, %v5616
        %5682 = vst.msk [vmem:[%s243 + $0x60] sm:$0xf] %vm5657, %v5617
        %5683 = vst.msk [vmem:[%s243 + $0x64] sm:$0xf] %vm5657, %v5618
        %5684 = vst.msk [vmem:[%s243 + $0x68] sm:$0xf] %vm5657, %v5619
        %5685 = vst.msk [vmem:[%s243 + $0x6c] sm:$0xf] %vm5657, %v5620
        %5686 = vst.msk [vmem:[%s243 + $0x70] sm:$0xf] %vm5657, %v5621
        %5687 = vst.msk [vmem:[%s243 + $0x74] sm:$0xf] %vm5657, %v5622
        %5688 = vst.msk [vmem:[%s243 + $0x78] sm:$0xf] %vm5657, %v5623
        %5689 = vst.msk [vmem:[%s243 + $0x7c] sm:$0xf] %vm5657, %v5624
        %vm5690 = vcmask 64512
        %v5691 = vsel %vm5690, %v5497, 0.0
        %v5692 = vsel %vm5690, %v5498, 0.0
        %v5693 = vadd.f32 %v5691, %v5692
        %v5694 = vsel %vm5690, %v5499, 0.0
        %v5695 = vadd.f32 %v5693, %v5694
        %v5696 = vsel %vm5690, %v5500, 0.0
        %v5697 = vadd.f32 %v5695, %v5696
        %v5698 = vsel %vm5690, %v5501, 0.0
        %v5699 = vadd.f32 %v5697, %v5698
        %v5700 = vsel %vm5690, %v5502, 0.0
        %v5701 = vadd.f32 %v5699, %v5700
        %v5702 = vsel %vm5690, %v5503, 0.0
        %v5703 = vadd.f32 %v5701, %v5702
        %v5704 = vsel %vm5690, %v5504, 0.0
        %v5705 = vadd.f32 %v5703, %v5704
        %v5706 = vsel %vm5690, %v5505, 0.0
        %v5707 = vadd.f32 %v5705, %v5706
        %v5708 = vsel %vm5690, %v5506, 0.0
        %v5709 = vadd.f32 %v5707, %v5708
        %v5710 = vsel %vm5690, %v5507, 0.0
        %v5711 = vadd.f32 %v5709, %v5710
        %v5712 = vsel %vm5690, %v5508, 0.0
        %v5713 = vadd.f32 %v5711, %v5712
        %v5714 = vsel %vm5690, %v5509, 0.0
        %v5715 = vadd.f32 %v5713, %v5714
        %v5716 = vsel %vm5690, %v5510, 0.0
        %v5717 = vadd.f32 %v5715, %v5716
        %v5718 = vsel %vm5690, %v5511, 0.0
        %v5719 = vadd.f32 %v5717, %v5718
        %v5720 = vsel %vm5690, %v5512, 0.0
        %v5721 = vadd.f32 %v5719, %v5720
        %v5722 = vsel %vm5690, %v5513, 0.0
        %v5723 = vadd.f32 %v5721, %v5722
        %v5724 = vsel %vm5690, %v5514, 0.0
        %v5725 = vadd.f32 %v5723, %v5724
        %v5726 = vsel %vm5690, %v5515, 0.0
        %v5727 = vadd.f32 %v5725, %v5726
        %v5728 = vsel %vm5690, %v5516, 0.0
        %v5729 = vadd.f32 %v5727, %v5728
        %v5730 = vsel %vm5690, %v5517, 0.0
        %v5731 = vadd.f32 %v5729, %v5730
        %v5732 = vsel %vm5690, %v5518, 0.0
        %v5733 = vadd.f32 %v5731, %v5732
        %v5734 = vsel %vm5690, %v5519, 0.0
        %v5735 = vadd.f32 %v5733, %v5734
        %v5736 = vsel %vm5690, %v5520, 0.0
        %v5737 = vadd.f32 %v5735, %v5736
        %v5738 = vsel %vm5690, %v5521, 0.0
        %v5739 = vadd.f32 %v5737, %v5738
        %v5740 = vsel %vm5690, %v5522, 0.0
        %v5741 = vadd.f32 %v5739, %v5740
        %v5742 = vsel %vm5690, %v5523, 0.0
        %v5743 = vadd.f32 %v5741, %v5742
        %v5744 = vsel %vm5690, %v5524, 0.0
        %v5745 = vadd.f32 %v5743, %v5744
        %v5746 = vsel %vm5690, %v5525, 0.0
        %v5747 = vadd.f32 %v5745, %v5746
        %v5748 = vsel %vm5690, %v5526, 0.0
        %v5749 = vadd.f32 %v5747, %v5748
        %v5750 = vsel %vm5690, %v5527, 0.0
        %v5751 = vadd.f32 %v5749, %v5750
        %v5752 = vsel %vm5690, %v5528, 0.0
        %v5753 = vadd.f32 %v5751, %v5752
        %v5754 = vrot.slane %v5753, 4
        %v5755 = vadd.f32 %v5753, %v5754
        %v5756 = vrot.slane %v5755, 2
        %v5757 = vadd.f32 %v5755, %v5756
        %v5758 = vrot.slane %v5757, 1
        %v5759 = vadd.f32 %v5757, %v5758
        %vm5760 = vcmask 57344
        %5761 = vst.msk [vmem:[%s227] sm:$0x1] %vm5760, %v5759
        %v5762 = vmul.f32 %v5497, %v5497
        %v5763 = vmul.f32 %v5498, %v5498
        %v5764 = vmul.f32 %v5499, %v5499
        %v5765 = vmul.f32 %v5500, %v5500
        %v5766 = vmul.f32 %v5501, %v5501
        %v5767 = vmul.f32 %v5502, %v5502
        %v5768 = vmul.f32 %v5503, %v5503
        %v5769 = vmul.f32 %v5504, %v5504
        %v5770 = vmul.f32 %v5505, %v5505
        %v5771 = vmul.f32 %v5506, %v5506
        %v5772 = vmul.f32 %v5507, %v5507
        %v5773 = vmul.f32 %v5508, %v5508
        %v5774 = vmul.f32 %v5509, %v5509
        %v5775 = vmul.f32 %v5510, %v5510
        %v5776 = vmul.f32 %v5511, %v5511
        %v5777 = vmul.f32 %v5512, %v5512
        %v5778 = vmul.f32 %v5513, %v5513
        %v5779 = vmul.f32 %v5514, %v5514
        %v5780 = vmul.f32 %v5515, %v5515
        %v5781 = vmul.f32 %v5516, %v5516
        %v5782 = vmul.f32 %v5517, %v5517
        %v5783 = vmul.f32 %v5518, %v5518
        %v5784 = vmul.f32 %v5519, %v5519
        %v5785 = vmul.f32 %v5520, %v5520
        %v5786 = vmul.f32 %v5521, %v5521
        %v5787 = vmul.f32 %v5522, %v5522
        %v5788 = vmul.f32 %v5523, %v5523
        %v5789 = vmul.f32 %v5524, %v5524
        %v5790 = vmul.f32 %v5525, %v5525
        %v5791 = vmul.f32 %v5526, %v5526
        %v5792 = vmul.f32 %v5527, %v5527
        %v5793 = vmul.f32 %v5528, %v5528
        %v5794 = vsel %vm5690, %v5762, 0.0
        %v5795 = vsel %vm5690, %v5763, 0.0
        %v5796 = vadd.f32 %v5794, %v5795
        %v5797 = vsel %vm5690, %v5764, 0.0
        %v5798 = vadd.f32 %v5796, %v5797
        %v5799 = vsel %vm5690, %v5765, 0.0
        %v5800 = vadd.f32 %v5798, %v5799
        %v5801 = vsel %vm5690, %v5766, 0.0
        %v5802 = vadd.f32 %v5800, %v5801
        %v5803 = vsel %vm5690, %v5767, 0.0
        %v5804 = vadd.f32 %v5802, %v5803
        %v5805 = vsel %vm5690, %v5768, 0.0
        %v5806 = vadd.f32 %v5804, %v5805
        %v5807 = vsel %vm5690, %v5769, 0.0
        %v5808 = vadd.f32 %v5806, %v5807
        %v5809 = vsel %vm5690, %v5770, 0.0
        %v5810 = vadd.f32 %v5808, %v5809
        %v5811 = vsel %vm5690, %v5771, 0.0
        %v5812 = vadd.f32 %v5810, %v5811
        %v5813 = vsel %vm5690, %v5772, 0.0
        %v5814 = vadd.f32 %v5812, %v5813
        %v5815 = vsel %vm5690, %v5773, 0.0
        %v5816 = vadd.f32 %v5814, %v5815
        %v5817 = vsel %vm5690, %v5774, 0.0
        %v5818 = vadd.f32 %v5816, %v5817
        %v5819 = vsel %vm5690, %v5775, 0.0
        %v5820 = vadd.f32 %v5818, %v5819
        %v5821 = vsel %vm5690, %v5776, 0.0
        %v5822 = vadd.f32 %v5820, %v5821
        %v5823 = vsel %vm5690, %v5777, 0.0
        %v5824 = vadd.f32 %v5822, %v5823
        %v5825 = vsel %vm5690, %v5778, 0.0
        %v5826 = vadd.f32 %v5824, %v5825
        %v5827 = vsel %vm5690, %v5779, 0.0
        %v5828 = vadd.f32 %v5826, %v5827
        %v5829 = vsel %vm5690, %v5780, 0.0
        %v5830 = vadd.f32 %v5828, %v5829
        %v5831 = vsel %vm5690, %v5781, 0.0
        %v5832 = vadd.f32 %v5830, %v5831
        %v5833 = vsel %vm5690, %v5782, 0.0
        %v5834 = vadd.f32 %v5832, %v5833
        %v5835 = vsel %vm5690, %v5783, 0.0
        %v5836 = vadd.f32 %v5834, %v5835
        %v5837 = vsel %vm5690, %v5784, 0.0
        %v5838 = vadd.f32 %v5836, %v5837
        %v5839 = vsel %vm5690, %v5785, 0.0
        %v5840 = vadd.f32 %v5838, %v5839
        %v5841 = vsel %vm5690, %v5786, 0.0
        %v5842 = vadd.f32 %v5840, %v5841
        %v5843 = vsel %vm5690, %v5787, 0.0
        %v5844 = vadd.f32 %v5842, %v5843
        %v5845 = vsel %vm5690, %v5788, 0.0
        %v5846 = vadd.f32 %v5844, %v5845
        %v5847 = vsel %vm5690, %v5789, 0.0
        %v5848 = vadd.f32 %v5846, %v5847
        %v5849 = vsel %vm5690, %v5790, 0.0
        %v5850 = vadd.f32 %v5848, %v5849
        %v5851 = vsel %vm5690, %v5791, 0.0
        %v5852 = vadd.f32 %v5850, %v5851
        %v5853 = vsel %vm5690, %v5792, 0.0
        %v5854 = vadd.f32 %v5852, %v5853
        %v5855 = vsel %vm5690, %v5793, 0.0
        %v5856 = vadd.f32 %v5854, %v5855
        %v5857 = vrot.slane %v5856, 4
        %v5858 = vadd.f32 %v5856, %v5857
        %v5859 = vrot.slane %v5858, 2
        %v5860 = vadd.f32 %v5858, %v5859
        %v5861 = vrot.slane %v5860, 1
        %v5862 = vadd.f32 %v5860, %v5861
        %5863 = vst.msk [vmem:[%s233] sm:$0x1] %vm5760, %v5862
        %p5864 = scmp.lt.s32.totalorder %s23, 1
        %s5865 = scalar_select %p5864, %s23, 1
        %s5866 = smul.addr %s5865, 32
        %s5867 = smul.addr %s5866, 4
        %s5868 = scalar_lea.vmem %s3, %s5867
        %s5869 = sand.u32 %s125, 1
        %s5870 = scalar_lea.sflag [#allocation4], %s5869
        %s5871 = sand.u32 %s125, 1
        %s5872 = scalar_lea.vmem [#allocation3], %s5871
        %s5873 = sand.u32 %s151, 1
        %s5874 = scalar_lea.sflag [#allocation6], %s5873
        %s5875 = sand.u32 %s151, 1
        %s5876 = scalar_lea.vmem [#allocation5], %s5875
        // Predicated region
        $region33: #{tpu_custom_call.1} parent=31 // pred_check
          %p5877 = pneg %p109
        $region34: #{tpu_custom_call.1} parent=31 // pred_check_branch
          %5879 = sbr.rel (%p5877) target = $region36
        $region35: #{tpu_custom_call.1} parent=31 // pred_region
          _
        $region36: #{tpu_custom_call.1} parent=31 // pred_fallthru
          _
        // Predicated region
        $region37: #{tpu_custom_call.1} parent=31 // pred_check
          %p5880 = pneg %p135
        $region38: #{tpu_custom_call.1} parent=31 // pred_check_branch
          %5882 = sbr.rel (%p5880) target = $region40
        $region39: #{tpu_custom_call.1} parent=31 // pred_region
          %s5884 = ssub.s32 16, 16
          %5885 = vsyncadd %s5870, %s5884
          %s5886 = smul.addr %s23, 16
          %s5887 = scalar_lea.hbm %s4, %s5886
          %s5889 = sshll.u32 %s5872, 4
          %s5890 = int_to_ptr.vmem [resolvable:$true] %s5889
          %5892 = dma.vmem_to_hbm [thread:$0]  %s5890, 16, %s5887, %s5870
        $region40: #{tpu_custom_call.1} parent=31 // pred_fallthru
          _
        // Predicated region
        $region41: #{tpu_custom_call.1} parent=31 // pred_check
          %p5893 = pneg %p161
        $region42: #{tpu_custom_call.1} parent=31 // pred_check_branch
          %5895 = sbr.rel (%p5893) target = $region44
        $region43: #{tpu_custom_call.1} parent=31 // pred_region
          %s5897 = ssub.s32 16, 16
          %5898 = vsyncadd %s5874, %s5897
          %s5899 = smul.addr %s23, 16
          %s5900 = scalar_lea.hbm %s5, %s5899
          %s5902 = sshll.u32 %s5876, 4
          %s5903 = int_to_ptr.vmem [resolvable:$true] %s5902
          %5905 = dma.vmem_to_hbm [thread:$0]  %s5903, 16, %s5900, %s5874
        $region44: #{tpu_custom_call.1} parent=31 // pred_fallthru
          _
      $region32: #{tpu_custom_call.1} parent=5 // pred_fallthru
        _
      %p5906 = scmp.le.s32.totalorder 2, %s18
      // Predicated region
      $region45: #{tpu_custom_call.1} parent=5 // pred_check
        %p5907 = pneg %p5906
      $region46: #{tpu_custom_call.1} parent=5 // pred_check_branch
        %5909 = sbr.rel (%p5907) target = $region48
      $region47: #{tpu_custom_call.1} parent=5 // pred_region
        %s5910 = ssub.s32 %s18, 2
        // Predicated region
        $region49: #{tpu_custom_call.1} parent=47 // pred_check
          %p5911 = pneg %p115
        $region50: #{tpu_custom_call.1} parent=47 // pred_check_branch
          %5913 = sbr.rel (%p5911) target = $region52
        $region51: #{tpu_custom_call.1} parent=47 // pred_region
          %p5914 = scmp.lt.s32.totalorder %s24, 1
          %s5915 = scalar_select %p5914, %s24, 1
          %s5916 = smul.addr %s5915, 32
          %s5917 = smul.addr %s5916, 4
          %s5918 = scalar_lea.vmem %s3, %s5917
        $region52: #{tpu_custom_call.1} parent=47 // pred_fallthru
          _
        // Predicated region
        $region53: #{tpu_custom_call.1} parent=47 // pred_check
          %p5919 = pneg %p141
        $region54: #{tpu_custom_call.1} parent=47 // pred_check_branch
          %5921 = sbr.rel (%p5919) target = $region56
        $region55: #{tpu_custom_call.1} parent=47 // pred_region
          %s5922 = sand.u32 %s126, 1
          %s5923 = scalar_lea.sflag [#allocation4], %s5922
          %s5924 = sand.u32 %s126, 1
          %s5925 = scalar_lea.vmem [#allocation3], %s5924
          %5926 = dma.done %s5923, 16
        $region56: #{tpu_custom_call.1} parent=47 // pred_fallthru
          _
        // Predicated region
        $region57: #{tpu_custom_call.1} parent=47 // pred_check
          %p5927 = pneg %p167
        $region58: #{tpu_custom_call.1} parent=47 // pred_check_branch
          %5929 = sbr.rel (%p5927) target = $region60
        $region59: #{tpu_custom_call.1} parent=47 // pred_region
          %s5930 = sand.u32 %s152, 1
          %s5931 = scalar_lea.sflag [#allocation6], %s5930
          %s5932 = sand.u32 %s152, 1
          %s5933 = scalar_lea.vmem [#allocation5], %s5932
          %5934 = dma.done %s5931, 16
        $region60: #{tpu_custom_call.1} parent=47 // pred_fallthru
          _
      $region48: #{tpu_custom_call.1} parent=5 // pred_fallthru
        _
    $region6: #{tpu_custom_call.1} parent=1 // loop_footer
      %s22 = sadd.s32 1, %s18
    $region7: #{tpu_custom_call.1} parent=1 // loop_footer_branch
      %17 = sbr.rel target = $region3
    $region8: #{tpu_custom_call.1} parent=1 // loop_exit
      _
    %5935 = vsyncpa [#allocation4], 1
    %s5936 = scalar_lea.sflag [#allocation4], 1
    %5937 = vsyncpa %s5936, 1
    %5938 = vsyncpa [#allocation6], 1
    %s5939 = scalar_lea.sflag [#allocation6], 1
    %5940 = vsyncpa %s5939, 1

</llo_original>
